<compile_context>
chip_gen: v5e
topology: v5e:2x2
jax: 0.10.0
libtpu: 0.0.40
codegen_flags: <defaults>
</compile_context>

<pallas_src>
import jax
import jax.numpy as jnp
from jax import lax
from jax.experimental import pallas as pl
from jax.experimental.pallas import tpu as pltpu

TB = 128        # images per grid step -> lane dimension
S_PAD = 800     # padded flattened input spatial length (28*28 = 784 -> 800)
P1 = 736        # conv1 output rows kept (28-stride flat layout; covers conv2's loads)
P2 = 672        # conv2 output rows kept (24 output rows x 28-stride)
CHUNK = 32      # output spatial rows produced per inner iteration (multiple of 8)
LOAD = 96       # input rows loaded per iteration (CHUNK + max tap offset 58 -> 96)


def cnn_kernel(w1_ref, b1_ref, w2_ref, b2_ref, x_ref, wl_ref, bl_ref,
               out_ref, h1_ref, h2_ref):
    f32 = jnp.float32

    # ---------------- Conv2d(1 -> 10, 3x3, valid) + ReLU ----------------------
    # h1[c1, i*28+j, b] = relu(b1[c1] + sum_{dh,dw} x[(i+dh)*28+(j+dw), b] * w1[c1,dh,dw])
    def conv1_chunk(k, carry):
        base = pl.multiple_of(k * CHUNK, CHUNK)
        xblk = x_ref[pl.ds(base, LOAD), :]                      # (LOAD, TB)
        patches = [xblk[dh * 28 + dw: dh * 28 + dw + CHUNK, :]  # 9 x (CHUNK, TB)
                   for dh in range(3) for dw in range(3)]
        for c1 in range(10):
            acc = patches[0] * w1_ref[c1 * 9]
            for t in range(1, 9):
                acc = acc + patches[t] * w1_ref[c1 * 9 + t]
            h1_ref[c1, pl.ds(base, CHUNK), :] = jnp.maximum(acc + b1_ref[c1], 0.0)
        return carry

    lax.fori_loop(0, P1 // CHUNK, conv1_chunk, 0)

    # ---------------- Conv2d(10 -> 4, 3x3, valid) + ReLU ----------------------
    # h2[c2, i*28+j, b] = relu(b2[c2] + sum_{c1,dh,dw} h1[c1,(i+dh)*28+(j+dw),b]*w2[c2,c1,dh,dw])
    def conv2_chunk(k, carry):
        base = pl.multiple_of(k * CHUNK, CHUNK)

        def accum_c1(c1, accs):
            blk = h1_ref[c1, pl.ds(base, LOAD), :]              # (LOAD, TB)
            new = list(accs)
            for dh in range(3):
                for dw in range(3):
                    patch = blk[dh * 28 + dw: dh * 28 + dw + CHUNK, :]
                    wbase = c1 * 36 + dh * 12 + dw * 4          # w2 flat: (c1,dh,dw,c2)
                    for c2 in range(4):
                        new[c2] = new[c2] + patch * w2_ref[wbase + c2]
            return tuple(new)

        accs = tuple(jnp.zeros((CHUNK, TB), f32) for _ in range(4))
        accs = lax.fori_loop(0, 10, accum_c1, accs)
        for c2 in range(4):
            h2_ref[c2, pl.ds(base, CHUNK), :] = jnp.maximum(accs[c2] + b2_ref[c2], 0.0)
        return carry

    lax.fori_loop(0, P2 // CHUNK, conv2_chunk, 0)

    # ---------------- Linear(2304 -> 10) as a real GEMM ------------------------
    # logits(10, TB) = sum_c2  Wl[c2](10, 672) @ h2[c2](672, TB)   (invalid 28-stride
    # columns of Wl were zeroed in the wrapper, so edge garbage contributes nothing).
    logits = jnp.zeros((10, TB), f32)
    for c2 in range(4):
        logits = logits + jnp.dot(wl_ref[c2], h2_ref[c2],
                                  preferred_element_type=f32)
    logits = logits + bl_ref[...]                               # (10,1) broadcast over lanes

    # ---------------- Softmax over the class (sublane) axis --------------------
    m = jnp.max(logits, axis=0, keepdims=True)                  # (1, TB)
    e = jnp.exp(logits - m)
    s = jnp.sum(e, axis=0, keepdims=True)
    r = pl.reciprocal(s, approx=True)                           # EUP
    r = r * (2.0 - s * r)                                       # one Newton step -> f32 accuracy
    out_ref[...] = e * r                                        # (10, TB), lane-dense store


def cnn_forward(x_nchw, params):
    """x_nchw: (N, 1, 28, 28) float32, same semantics as the PyTorch module."""
    conv1_w, conv1_b, conv2_w, conv2_b, lin_w, lin_b = params
    N = x_nchw.shape[0]
    n_tiles = pl.cdiv(N, TB)
    n_pad = n_tiles * TB

    # ---- input: flatten spatial (28-stride), pad, batch on lanes --------------
    x_flat = x_nchw.reshape(N, 28 * 28).astype(jnp.float32)
    x_flat = jnp.pad(x_flat, ((0, n_pad - N), (0, S_PAD - 28 * 28)))
    x_t = x_flat.T                                              # (S_PAD, n_pad)

    # ---- conv weights as flat SMEM scalar tables ------------------------------
    w1 = conv1_w[:, 0].reshape(90).astype(jnp.float32)          # idx = c1*9 + dh*3 + dw
    b1 = conv1_b.astype(jnp.float32)                            # (10,)
    w2 = jnp.transpose(conv2_w, (1, 2, 3, 0)).reshape(360).astype(jnp.float32)
    #                                                           # idx = c1*36 + dh*12 + dw*4 + c2
    b2 = conv2_b.astype(jnp.float32)                            # (4,)

    # ---- Linear weight: CHW flatten order -> per-channel 28-stride layout -----
    # PyTorch flat index = c2*576 + i*24 + j ; kernel uses p = i*28 + j  (j>=24 -> 0 weight)
    wl = lin_w.reshape(10, 4, 24, 24).astype(jnp.float32)
    wl = jnp.pad(wl, ((0, 0), (0, 0), (0, 0), (0, 4)))          # (10,4,24,28)
    wl = wl.reshape(10, 4, P2).transpose(1, 0, 2)               # (4,10,672), long axis on lanes
    bl = lin_b.reshape(10, 1).astype(jnp.float32)

    smem = pl.BlockSpec(memory_space=pltpu.MemorySpace.SMEM)
    out = pl.pallas_call(
        cnn_kernel,
        out_shape=jax.ShapeDtypeStruct((10, n_pad), jnp.float32),
        grid=(n_tiles,),
        in_specs=[
            smem,                                               # w1 (90,)
            smem,                                               # b1 (10,)
            smem,                                               # w2 (360,)
            smem,                                               # b2 (4,)
            pl.BlockSpec((S_PAD, TB), lambda b: (0, b)),        # x  (S_PAD, n_pad)
            pl.BlockSpec((4, 10, P2), lambda b: (0, 0, 0)),     # wl (4, 10, 672)
            pl.BlockSpec((10, 1), lambda b: (0, 0)),            # bl (10, 1)
        ],
        out_specs=pl.BlockSpec((10, TB), lambda b: (0, b)),     # lane-dense output
        scratch_shapes=[
            pltpu.VMEM((10, P1, TB), jnp.float32),              # h1
            pltpu.VMEM((4, P2, TB), jnp.float32),               # h2
        ],
        compiler_params=pltpu.CompilerParams(
            dimension_semantics=("parallel",),                  # v7x: shard batch tiles over 2 TCs
            vmem_limit_bytes=32 * 1024 * 1024),
    )(w1, b1, w2, b2, x_t, wl, bl)

    return out.T[:N]                                            # (N, 10)


def cnn_reference(x_nchw, params):
    """Pure-JAX reference matching PyTorch semantics (for verification)."""
    conv1_w, conv1_b, conv2_w, conv2_b, lin_w, lin_b = params
    dn = lax.conv_dimension_numbers(x_nchw.shape, conv1_w.shape,
                                    ("NCHW", "OIHW", "NCHW"))
    h = lax.conv_general_dilated(x_nchw, conv1_w, (1, 1), "VALID",
                                 dimension_numbers=dn)
    h = jnp.maximum(h + conv1_b[None, :, None, None], 0.0)
    h = lax.conv_general_dilated(h, conv2_w, (1, 1), "VALID",
                                 dimension_numbers=dn)
    h = jnp.maximum(h + conv2_b[None, :, None, None], 0.0)
    flat = h.reshape(h.shape[0], -1)                            # (N, 2304) in C,H,W order
    logits = flat @ lin_w.T + lin_b
    return jax.nn.softmax(logits, axis=1)


def init_params(key):
    ks = jax.random.split(key, 6)
    conv1_w = jax.random.normal(ks[0], (10, 1, 3, 3), jnp.float32) * 0.1
    conv1_b = jax.random.normal(ks[1], (10,), jnp.float32) * 0.1
    conv2_w = jax.random.normal(ks[2], (4, 10, 3, 3), jnp.float32) * 0.1
    conv2_b = jax.random.normal(ks[3], (4,), jnp.float32) * 0.1
    lin_w = jax.random.normal(ks[4], (10, 2304), jnp.float32) * 0.02
    lin_b = jax.random.normal(ks[5], (10,), jnp.float32) * 0.02
    return (conv1_w, conv1_b, conv2_w, conv2_b, lin_w, lin_b)


if __name__ == "__main__":
    key = jax.random.PRNGKey(0)
    k_x, k_p = jax.random.split(key)
    params = init_params(k_p)
    # Linear(2304,10) with 4 channels of 24x24 implies 28x28 inputs (MNIST-like).
    x = jax.random.normal(k_x, (2, 1, 28, 28), jnp.float32)

    out = jax.block_until_ready(cnn_forward(x, params))
    ref = jax.block_until_ready(cnn_reference(x, params))

    assert out.shape == (2, 10)
    assert jnp.allclose(out, ref, atol=1e-4, rtol=1e-4), (out, ref)
    assert jnp.allclose(jnp.sum(out, axis=1), 1.0, atol=1e-4)

    print("KERNEL_OK")
</pallas_src>

<mosaic_0001>
module attributes {stable_mosaic.version = 11 : i64} {
  func.func @cnn_kernel(%arg0: i32, %arg1: memref<90xf32, #tpu.memory_space<smem>>, %arg2: memref<10xf32, #tpu.memory_space<smem>>, %arg3: memref<360xf32, #tpu.memory_space<smem>>, %arg4: memref<4xf32, #tpu.memory_space<smem>>, %arg5: memref<800x128xf32, #tpu.memory_space<vmem>>, %arg6: memref<4x10x672xf32, #tpu.memory_space<vmem>>, %arg7: memref<10x1xf32, #tpu.memory_space<vmem>>, %arg8: memref<10x128xf32, #tpu.memory_space<vmem>>, %arg9: memref<10x736x128xf32, #tpu.memory_space<vmem>>, %arg10: memref<4x672x128xf32, #tpu.memory_space<vmem>>) attributes {dimension_semantics = [#tpu.dimension_semantics<parallel>], iteration_bounds = array<i64: 1>, scalar_prefetch = 0 : i64, scratch_operands = 2 : i64, tpu.core_type = #tpu.core_type<tc>, window_params = [{transform_indices = @transform_0, window_bounds = array<i64: 90>}, {transform_indices = @transform_1, window_bounds = array<i64: 10>}, {transform_indices = @transform_2, window_bounds = array<i64: 360>}, {transform_indices = @transform_3, window_bounds = array<i64: 4>}, {transform_indices = @transform_4, window_bounds = array<i64: 800, 128>}, {pipeline_mode = #tpu.pipeline_mode<synchronous>, transform_indices = @transform_5, window_bounds = array<i64: 4, 10, 672>}, {pipeline_mode = #tpu.pipeline_mode<synchronous>, transform_indices = @transform_6, window_bounds = array<i64: 10, 1>}, {transform_indices = @transform_7, window_bounds = array<i64: 10, 128>}]} {
    %c0_i32 = arith.constant 0 : i32
    %c23_i32 = arith.constant 23 : i32
    %0 = arith.addi %c0_i32, %c23_i32 : i32
    %c1_i32 = arith.constant 1 : i32
    scf.for %arg11 = %c0_i32 to %0 step %c1_i32  : i32 {
      %c32_i32 = arith.constant 32 : i32
      %45 = arith.muli %arg11, %c32_i32 : i32
      %46 = tpu.assume_multiple %45, 32 : i32
      %47 = arith.index_cast %46 : i32 to index
      %c0_35 = arith.constant 0 : index
      %48 = vector.load %arg5[%47, %c0_35] : memref<800x128xf32, #tpu.memory_space<vmem>>, vector<96x128xf32>
      %49 = vector.extract_strided_slice %48 {offsets = [0, 0], sizes = [32, 128], strides = [1, 1]} : vector<96x128xf32> to vector<32x128xf32>
      %50 = vector.extract_strided_slice %48 {offsets = [1, 0], sizes = [32, 128], strides = [1, 1]} : vector<96x128xf32> to vector<32x128xf32>
      %51 = vector.extract_strided_slice %48 {offsets = [2, 0], sizes = [32, 128], strides = [1, 1]} : vector<96x128xf32> to vector<32x128xf32>
      %52 = vector.extract_strided_slice %48 {offsets = [28, 0], sizes = [32, 128], strides = [1, 1]} : vector<96x128xf32> to vector<32x128xf32>
      %53 = vector.extract_strided_slice %48 {offsets = [29, 0], sizes = [32, 128], strides = [1, 1]} : vector<96x128xf32> to vector<32x128xf32>
      %54 = vector.extract_strided_slice %48 {offsets = [30, 0], sizes = [32, 128], strides = [1, 1]} : vector<96x128xf32> to vector<32x128xf32>
      %55 = vector.extract_strided_slice %48 {offsets = [56, 0], sizes = [32, 128], strides = [1, 1]} : vector<96x128xf32> to vector<32x128xf32>
      %56 = vector.extract_strided_slice %48 {offsets = [57, 0], sizes = [32, 128], strides = [1, 1]} : vector<96x128xf32> to vector<32x128xf32>
      %57 = vector.extract_strided_slice %48 {offsets = [58, 0], sizes = [32, 128], strides = [1, 1]} : vector<96x128xf32> to vector<32x128xf32>
      %c0_36 = arith.constant 0 : index
      %58 = memref.load %arg1[%c0_36] : memref<90xf32, #tpu.memory_space<smem>>
      %59 = vector.broadcast %58 : f32 to vector<32x128xf32>
      %60 = arith.mulf %49, %59 : vector<32x128xf32>
      %c1_37 = arith.constant 1 : index
      %61 = memref.load %arg1[%c1_37] : memref<90xf32, #tpu.memory_space<smem>>
      %62 = vector.broadcast %61 : f32 to vector<32x128xf32>
      %63 = arith.mulf %50, %62 : vector<32x128xf32>
      %64 = arith.addf %60, %63 : vector<32x128xf32>
      %c2_38 = arith.constant 2 : index
      %65 = memref.load %arg1[%c2_38] : memref<90xf32, #tpu.memory_space<smem>>
      %66 = vector.broadcast %65 : f32 to vector<32x128xf32>
      %67 = arith.mulf %51, %66 : vector<32x128xf32>
      %68 = arith.addf %64, %67 : vector<32x128xf32>
      %c3_39 = arith.constant 3 : index
      %69 = memref.load %arg1[%c3_39] : memref<90xf32, #tpu.memory_space<smem>>
      %70 = vector.broadcast %69 : f32 to vector<32x128xf32>
      %71 = arith.mulf %52, %70 : vector<32x128xf32>
      %72 = arith.addf %68, %71 : vector<32x128xf32>
      %c4 = arith.constant 4 : index
      %73 = memref.load %arg1[%c4] : memref<90xf32, #tpu.memory_space<smem>>
      %74 = vector.broadcast %73 : f32 to vector<32x128xf32>
      %75 = arith.mulf %53, %74 : vector<32x128xf32>
      %76 = arith.addf %72, %75 : vector<32x128xf32>
      %c5 = arith.constant 5 : index
      %77 = memref.load %arg1[%c5] : memref<90xf32, #tpu.memory_space<smem>>
      %78 = vector.broadcast %77 : f32 to vector<32x128xf32>
      %79 = arith.mulf %54, %78 : vector<32x128xf32>
      %80 = arith.addf %76, %79 : vector<32x128xf32>
      %c6 = arith.constant 6 : index
      %81 = memref.load %arg1[%c6] : memref<90xf32, #tpu.memory_space<smem>>
      %82 = vector.broadcast %81 : f32 to vector<32x128xf32>
      %83 = arith.mulf %55, %82 : vector<32x128xf32>
      %84 = arith.addf %80, %83 : vector<32x128xf32>
      %c7 = arith.constant 7 : index
      %85 = memref.load %arg1[%c7] : memref<90xf32, #tpu.memory_space<smem>>
      %86 = vector.broadcast %85 : f32 to vector<32x128xf32>
      %87 = arith.mulf %56, %86 : vector<32x128xf32>
      %88 = arith.addf %84, %87 : vector<32x128xf32>
      %c8 = arith.constant 8 : index
      %89 = memref.load %arg1[%c8] : memref<90xf32, #tpu.memory_space<smem>>
      %90 = vector.broadcast %89 : f32 to vector<32x128xf32>
      %91 = arith.mulf %57, %90 : vector<32x128xf32>
      %92 = arith.addf %88, %91 : vector<32x128xf32>
      %c0_40 = arith.constant 0 : index
      %93 = memref.load %arg2[%c0_40] : memref<10xf32, #tpu.memory_space<smem>>
      %94 = vector.broadcast %93 : f32 to vector<32x128xf32>
      %95 = arith.addf %92, %94 : vector<32x128xf32>
      %cst_41 = arith.constant 0.000000e+00 : f32
      %96 = vector.broadcast %cst_41 : f32 to vector<32x128xf32>
      %97 = arith.maximumf %95, %96 : vector<32x128xf32>
      %c0_42 = arith.constant 0 : index
      %98 = arith.index_cast %46 : i32 to index
      %c0_43 = arith.constant 0 : index
      %99 = vector.load %arg9[%c0_42, %98, %c0_43] : memref<10x736x128xf32, #tpu.memory_space<vmem>>, vector<1x32x128xf32>
      %100 = vector.shape_cast %99 : vector<1x32x128xf32> to vector<32x128xf32>
      %101 = vector.shape_cast %97 : vector<32x128xf32> to vector<1x32x128xf32>
      tpu.vector_store %arg9[%c0_42, %98, %c0_43], %101 {strides = array<i32>} : memref<10x736x128xf32, #tpu.memory_space<vmem>>, vector<1x32x128xf32>,
      %c9 = arith.constant 9 : index
      %102 = memref.load %arg1[%c9] : memref<90xf32, #tpu.memory_space<smem>>
      %103 = vector.broadcast %102 : f32 to vector<32x128xf32>
      %104 = arith.mulf %49, %103 : vector<32x128xf32>
      %c10 = arith.constant 10 : index
      %105 = memref.load %arg1[%c10] : memref<90xf32, #tpu.memory_space<smem>>
      %106 = vector.broadcast %105 : f32 to vector<32x128xf32>
      %107 = arith.mulf %50, %106 : vector<32x128xf32>
      %108 = arith.addf %104, %107 : vector<32x128xf32>
      %c11 = arith.constant 11 : index
      %109 = memref.load %arg1[%c11] : memref<90xf32, #tpu.memory_space<smem>>
      %110 = vector.broadcast %109 : f32 to vector<32x128xf32>
      %111 = arith.mulf %51, %110 : vector<32x128xf32>
      %112 = arith.addf %108, %111 : vector<32x128xf32>
      %c12 = arith.constant 12 : index
      %113 = memref.load %arg1[%c12] : memref<90xf32, #tpu.memory_space<smem>>
      %114 = vector.broadcast %113 : f32 to vector<32x128xf32>
      %115 = arith.mulf %52, %114 : vector<32x128xf32>
      %116 = arith.addf %112, %115 : vector<32x128xf32>
      %c13 = arith.constant 13 : index
      %117 = memref.load %arg1[%c13] : memref<90xf32, #tpu.memory_space<smem>>
      %118 = vector.broadcast %117 : f32 to vector<32x128xf32>
      %119 = arith.mulf %53, %118 : vector<32x128xf32>
      %120 = arith.addf %116, %119 : vector<32x128xf32>
      %c14 = arith.constant 14 : index
      %121 = memref.load %arg1[%c14] : memref<90xf32, #tpu.memory_space<smem>>
      %122 = vector.broadcast %121 : f32 to vector<32x128xf32>
      %123 = arith.mulf %54, %122 : vector<32x128xf32>
      %124 = arith.addf %120, %123 : vector<32x128xf32>
      %c15 = arith.constant 15 : index
      %125 = memref.load %arg1[%c15] : memref<90xf32, #tpu.memory_space<smem>>
      %126 = vector.broadcast %125 : f32 to vector<32x128xf32>
      %127 = arith.mulf %55, %126 : vector<32x128xf32>
      %128 = arith.addf %124, %127 : vector<32x128xf32>
      %c16 = arith.constant 16 : index
      %129 = memref.load %arg1[%c16] : memref<90xf32, #tpu.memory_space<smem>>
      %130 = vector.broadcast %129 : f32 to vector<32x128xf32>
      %131 = arith.mulf %56, %130 : vector<32x128xf32>
      %132 = arith.addf %128, %131 : vector<32x128xf32>
      %c17 = arith.constant 17 : index
      %133 = memref.load %arg1[%c17] : memref<90xf32, #tpu.memory_space<smem>>
      %134 = vector.broadcast %133 : f32 to vector<32x128xf32>
      %135 = arith.mulf %57, %134 : vector<32x128xf32>
      %136 = arith.addf %132, %135 : vector<32x128xf32>
      %c1_44 = arith.constant 1 : index
      %137 = memref.load %arg2[%c1_44] : memref<10xf32, #tpu.memory_space<smem>>
      %138 = vector.broadcast %137 : f32 to vector<32x128xf32>
      %139 = arith.addf %136, %138 : vector<32x128xf32>
      %cst_45 = arith.constant 0.000000e+00 : f32
      %140 = vector.broadcast %cst_45 : f32 to vector<32x128xf32>
      %141 = arith.maximumf %139, %140 : vector<32x128xf32>
      %c1_46 = arith.constant 1 : index
      %142 = arith.index_cast %46 : i32 to index
      %c0_47 = arith.constant 0 : index
      %143 = vector.load %arg9[%c1_46, %142, %c0_47] : memref<10x736x128xf32, #tpu.memory_space<vmem>>, vector<1x32x128xf32>
      %144 = vector.shape_cast %143 : vector<1x32x128xf32> to vector<32x128xf32>
      %145 = vector.shape_cast %141 : vector<32x128xf32> to vector<1x32x128xf32>
      tpu.vector_store %arg9[%c1_46, %142, %c0_47], %145 {strides = array<i32>} : memref<10x736x128xf32, #tpu.memory_space<vmem>>, vector<1x32x128xf32>,
      %c18 = arith.constant 18 : index
      %146 = memref.load %arg1[%c18] : memref<90xf32, #tpu.memory_space<smem>>
      %147 = vector.broadcast %146 : f32 to vector<32x128xf32>
      %148 = arith.mulf %49, %147 : vector<32x128xf32>
      %c19 = arith.constant 19 : index
      %149 = memref.load %arg1[%c19] : memref<90xf32, #tpu.memory_space<smem>>
      %150 = vector.broadcast %149 : f32 to vector<32x128xf32>
      %151 = arith.mulf %50, %150 : vector<32x128xf32>
      %152 = arith.addf %148, %151 : vector<32x128xf32>
      %c20 = arith.constant 20 : index
      %153 = memref.load %arg1[%c20] : memref<90xf32, #tpu.memory_space<smem>>
      %154 = vector.broadcast %153 : f32 to vector<32x128xf32>
      %155 = arith.mulf %51, %154 : vector<32x128xf32>
      %156 = arith.addf %152, %155 : vector<32x128xf32>
      %c21 = arith.constant 21 : index
      %157 = memref.load %arg1[%c21] : memref<90xf32, #tpu.memory_space<smem>>
      %158 = vector.broadcast %157 : f32 to vector<32x128xf32>
      %159 = arith.mulf %52, %158 : vector<32x128xf32>
      %160 = arith.addf %156, %159 : vector<32x128xf32>
      %c22 = arith.constant 22 : index
      %161 = memref.load %arg1[%c22] : memref<90xf32, #tpu.memory_space<smem>>
      %162 = vector.broadcast %161 : f32 to vector<32x128xf32>
      %163 = arith.mulf %53, %162 : vector<32x128xf32>
      %164 = arith.addf %160, %163 : vector<32x128xf32>
      %c23 = arith.constant 23 : index
      %165 = memref.load %arg1[%c23] : memref<90xf32, #tpu.memory_space<smem>>
      %166 = vector.broadcast %165 : f32 to vector<32x128xf32>
      %167 = arith.mulf %54, %166 : vector<32x128xf32>
      %168 = arith.addf %164, %167 : vector<32x128xf32>
      %c24 = arith.constant 24 : index
      %169 = memref.load %arg1[%c24] : memref<90xf32, #tpu.memory_space<smem>>
      %170 = vector.broadcast %169 : f32 to vector<32x128xf32>
      %171 = arith.mulf %55, %170 : vector<32x128xf32>
      %172 = arith.addf %168, %171 : vector<32x128xf32>
      %c25 = arith.constant 25 : index
      %173 = memref.load %arg1[%c25] : memref<90xf32, #tpu.memory_space<smem>>
      %174 = vector.broadcast %173 : f32 to vector<32x128xf32>
      %175 = arith.mulf %56, %174 : vector<32x128xf32>
      %176 = arith.addf %172, %175 : vector<32x128xf32>
      %c26 = arith.constant 26 : index
      %177 = memref.load %arg1[%c26] : memref<90xf32, #tpu.memory_space<smem>>
      %178 = vector.broadcast %177 : f32 to vector<32x128xf32>
      %179 = arith.mulf %57, %178 : vector<32x128xf32>
      %180 = arith.addf %176, %179 : vector<32x128xf32>
      %c2_48 = arith.constant 2 : index
      %181 = memref.load %arg2[%c2_48] : memref<10xf32, #tpu.memory_space<smem>>
      %182 = vector.broadcast %181 : f32 to vector<32x128xf32>
      %183 = arith.addf %180, %182 : vector<32x128xf32>
      %cst_49 = arith.constant 0.000000e+00 : f32
      %184 = vector.broadcast %cst_49 : f32 to vector<32x128xf32>
      %185 = arith.maximumf %183, %184 : vector<32x128xf32>
      %c2_50 = arith.constant 2 : index
      %186 = arith.index_cast %46 : i32 to index
      %c0_51 = arith.constant 0 : index
      %187 = vector.load %arg9[%c2_50, %186, %c0_51] : memref<10x736x128xf32, #tpu.memory_space<vmem>>, vector<1x32x128xf32>
      %188 = vector.shape_cast %187 : vector<1x32x128xf32> to vector<32x128xf32>
      %189 = vector.shape_cast %185 : vector<32x128xf32> to vector<1x32x128xf32>
      tpu.vector_store %arg9[%c2_50, %186, %c0_51], %189 {strides = array<i32>} : memref<10x736x128xf32, #tpu.memory_space<vmem>>, vector<1x32x128xf32>,
      %c27 = arith.constant 27 : index
      %190 = memref.load %arg1[%c27] : memref<90xf32, #tpu.memory_space<smem>>
      %191 = vector.broadcast %190 : f32 to vector<32x128xf32>
      %192 = arith.mulf %49, %191 : vector<32x128xf32>
      %c28 = arith.constant 28 : index
      %193 = memref.load %arg1[%c28] : memref<90xf32, #tpu.memory_space<smem>>
      %194 = vector.broadcast %193 : f32 to vector<32x128xf32>
      %195 = arith.mulf %50, %194 : vector<32x128xf32>
      %196 = arith.addf %192, %195 : vector<32x128xf32>
      %c29 = arith.constant 29 : index
      %197 = memref.load %arg1[%c29] : memref<90xf32, #tpu.memory_space<smem>>
      %198 = vector.broadcast %197 : f32 to vector<32x128xf32>
      %199 = arith.mulf %51, %198 : vector<32x128xf32>
      %200 = arith.addf %196, %199 : vector<32x128xf32>
      %c30 = arith.constant 30 : index
      %201 = memref.load %arg1[%c30] : memref<90xf32, #tpu.memory_space<smem>>
      %202 = vector.broadcast %201 : f32 to vector<32x128xf32>
      %203 = arith.mulf %52, %202 : vector<32x128xf32>
      %204 = arith.addf %200, %203 : vector<32x128xf32>
      %c31 = arith.constant 31 : index
      %205 = memref.load %arg1[%c31] : memref<90xf32, #tpu.memory_space<smem>>
      %206 = vector.broadcast %205 : f32 to vector<32x128xf32>
      %207 = arith.mulf %53, %206 : vector<32x128xf32>
      %208 = arith.addf %204, %207 : vector<32x128xf32>
      %c32 = arith.constant 32 : index
      %209 = memref.load %arg1[%c32] : memref<90xf32, #tpu.memory_space<smem>>
      %210 = vector.broadcast %209 : f32 to vector<32x128xf32>
      %211 = arith.mulf %54, %210 : vector<32x128xf32>
      %212 = arith.addf %208, %211 : vector<32x128xf32>
      %c33 = arith.constant 33 : index
      %213 = memref.load %arg1[%c33] : memref<90xf32, #tpu.memory_space<smem>>
      %214 = vector.broadcast %213 : f32 to vector<32x128xf32>
      %215 = arith.mulf %55, %214 : vector<32x128xf32>
      %216 = arith.addf %212, %215 : vector<32x128xf32>
      %c34 = arith.constant 34 : index
      %217 = memref.load %arg1[%c34] : memref<90xf32, #tpu.memory_space<smem>>
      %218 = vector.broadcast %217 : f32 to vector<32x128xf32>
      %219 = arith.mulf %56, %218 : vector<32x128xf32>
      %220 = arith.addf %216, %219 : vector<32x128xf32>
      %c35 = arith.constant 35 : index
      %221 = memref.load %arg1[%c35] : memref<90xf32, #tpu.memory_space<smem>>
      %222 = vector.broadcast %221 : f32 to vector<32x128xf32>
      %223 = arith.mulf %57, %222 : vector<32x128xf32>
      %224 = arith.addf %220, %223 : vector<32x128xf32>
      %c3_52 = arith.constant 3 : index
      %225 = memref.load %arg2[%c3_52] : memref<10xf32, #tpu.memory_space<smem>>
      %226 = vector.broadcast %225 : f32 to vector<32x128xf32>
      %227 = arith.addf %224, %226 : vector<32x128xf32>
      %cst_53 = arith.constant 0.000000e+00 : f32
      %228 = vector.broadcast %cst_53 : f32 to vector<32x128xf32>
      %229 = arith.maximumf %227, %228 : vector<32x128xf32>
      %c3_54 = arith.constant 3 : index
      %230 = arith.index_cast %46 : i32 to index
      %c0_55 = arith.constant 0 : index
      %231 = vector.load %arg9[%c3_54, %230, %c0_55] : memref<10x736x128xf32, #tpu.memory_space<vmem>>, vector<1x32x128xf32>
      %232 = vector.shape_cast %231 : vector<1x32x128xf32> to vector<32x128xf32>
      %233 = vector.shape_cast %229 : vector<32x128xf32> to vector<1x32x128xf32>
      tpu.vector_store %arg9[%c3_54, %230, %c0_55], %233 {strides = array<i32>} : memref<10x736x128xf32, #tpu.memory_space<vmem>>, vector<1x32x128xf32>,
      %c36 = arith.constant 36 : index
      %234 = memref.load %arg1[%c36] : memref<90xf32, #tpu.memory_space<smem>>
      %235 = vector.broadcast %234 : f32 to vector<32x128xf32>
      %236 = arith.mulf %49, %235 : vector<32x128xf32>
      %c37 = arith.constant 37 : index
      %237 = memref.load %arg1[%c37] : memref<90xf32, #tpu.memory_space<smem>>
      %238 = vector.broadcast %237 : f32 to vector<32x128xf32>
      %239 = arith.mulf %50, %238 : vector<32x128xf32>
      %240 = arith.addf %236, %239 : vector<32x128xf32>
      %c38 = arith.constant 38 : index
      %241 = memref.load %arg1[%c38] : memref<90xf32, #tpu.memory_space<smem>>
      %242 = vector.broadcast %241 : f32 to vector<32x128xf32>
      %243 = arith.mulf %51, %242 : vector<32x128xf32>
      %244 = arith.addf %240, %243 : vector<32x128xf32>
      %c39 = arith.constant 39 : index
      %245 = memref.load %arg1[%c39] : memref<90xf32, #tpu.memory_space<smem>>
      %246 = vector.broadcast %245 : f32 to vector<32x128xf32>
      %247 = arith.mulf %52, %246 : vector<32x128xf32>
      %248 = arith.addf %244, %247 : vector<32x128xf32>
      %c40 = arith.constant 40 : index
      %249 = memref.load %arg1[%c40] : memref<90xf32, #tpu.memory_space<smem>>
      %250 = vector.broadcast %249 : f32 to vector<32x128xf32>
      %251 = arith.mulf %53, %250 : vector<32x128xf32>
      %252 = arith.addf %248, %251 : vector<32x128xf32>
      %c41 = arith.constant 41 : index
      %253 = memref.load %arg1[%c41] : memref<90xf32, #tpu.memory_space<smem>>
      %254 = vector.broadcast %253 : f32 to vector<32x128xf32>
      %255 = arith.mulf %54, %254 : vector<32x128xf32>
      %256 = arith.addf %252, %255 : vector<32x128xf32>
      %c42 = arith.constant 42 : index
      %257 = memref.load %arg1[%c42] : memref<90xf32, #tpu.memory_space<smem>>
      %258 = vector.broadcast %257 : f32 to vector<32x128xf32>
      %259 = arith.mulf %55, %258 : vector<32x128xf32>
      %260 = arith.addf %256, %259 : vector<32x128xf32>
      %c43 = arith.constant 43 : index
      %261 = memref.load %arg1[%c43] : memref<90xf32, #tpu.memory_space<smem>>
      %262 = vector.broadcast %261 : f32 to vector<32x128xf32>
      %263 = arith.mulf %56, %262 : vector<32x128xf32>
      %264 = arith.addf %260, %263 : vector<32x128xf32>
      %c44 = arith.constant 44 : index
      %265 = memref.load %arg1[%c44] : memref<90xf32, #tpu.memory_space<smem>>
      %266 = vector.broadcast %265 : f32 to vector<32x128xf32>
      %267 = arith.mulf %57, %266 : vector<32x128xf32>
      %268 = arith.addf %264, %267 : vector<32x128xf32>
      %c4_56 = arith.constant 4 : index
      %269 = memref.load %arg2[%c4_56] : memref<10xf32, #tpu.memory_space<smem>>
      %270 = vector.broadcast %269 : f32 to vector<32x128xf32>
      %271 = arith.addf %268, %270 : vector<32x128xf32>
      %cst_57 = arith.constant 0.000000e+00 : f32
      %272 = vector.broadcast %cst_57 : f32 to vector<32x128xf32>
      %273 = arith.maximumf %271, %272 : vector<32x128xf32>
      %c4_58 = arith.constant 4 : index
      %274 = arith.index_cast %46 : i32 to index
      %c0_59 = arith.constant 0 : index
      %275 = vector.load %arg9[%c4_58, %274, %c0_59] : memref<10x736x128xf32, #tpu.memory_space<vmem>>, vector<1x32x128xf32>
      %276 = vector.shape_cast %275 : vector<1x32x128xf32> to vector<32x128xf32>
      %277 = vector.shape_cast %273 : vector<32x128xf32> to vector<1x32x128xf32>
      tpu.vector_store %arg9[%c4_58, %274, %c0_59], %277 {strides = array<i32>} : memref<10x736x128xf32, #tpu.memory_space<vmem>>, vector<1x32x128xf32>,
      %c45 = arith.constant 45 : index
      %278 = memref.load %arg1[%c45] : memref<90xf32, #tpu.memory_space<smem>>
      %279 = vector.broadcast %278 : f32 to vector<32x128xf32>
      %280 = arith.mulf %49, %279 : vector<32x128xf32>
      %c46 = arith.constant 46 : index
      %281 = memref.load %arg1[%c46] : memref<90xf32, #tpu.memory_space<smem>>
      %282 = vector.broadcast %281 : f32 to vector<32x128xf32>
      %283 = arith.mulf %50, %282 : vector<32x128xf32>
      %284 = arith.addf %280, %283 : vector<32x128xf32>
      %c47 = arith.constant 47 : index
      %285 = memref.load %arg1[%c47] : memref<90xf32, #tpu.memory_space<smem>>
      %286 = vector.broadcast %285 : f32 to vector<32x128xf32>
      %287 = arith.mulf %51, %286 : vector<32x128xf32>
      %288 = arith.addf %284, %287 : vector<32x128xf32>
      %c48 = arith.constant 48 : index
      %289 = memref.load %arg1[%c48] : memref<90xf32, #tpu.memory_space<smem>>
      %290 = vector.broadcast %289 : f32 to vector<32x128xf32>
      %291 = arith.mulf %52, %290 : vector<32x128xf32>
      %292 = arith.addf %288, %291 : vector<32x128xf32>
      %c49 = arith.constant 49 : index
      %293 = memref.load %arg1[%c49] : memref<90xf32, #tpu.memory_space<smem>>
      %294 = vector.broadcast %293 : f32 to vector<32x128xf32>
      %295 = arith.mulf %53, %294 : vector<32x128xf32>
      %296 = arith.addf %292, %295 : vector<32x128xf32>
      %c50 = arith.constant 50 : index
      %297 = memref.load %arg1[%c50] : memref<90xf32, #tpu.memory_space<smem>>
      %298 = vector.broadcast %297 : f32 to vector<32x128xf32>
      %299 = arith.mulf %54, %298 : vector<32x128xf32>
      %300 = arith.addf %296, %299 : vector<32x128xf32>
      %c51 = arith.constant 51 : index
      %301 = memref.load %arg1[%c51] : memref<90xf32, #tpu.memory_space<smem>>
      %302 = vector.broadcast %301 : f32 to vector<32x128xf32>
      %303 = arith.mulf %55, %302 : vector<32x128xf32>
      %304 = arith.addf %300, %303 : vector<32x128xf32>
      %c52 = arith.constant 52 : index
      %305 = memref.load %arg1[%c52] : memref<90xf32, #tpu.memory_space<smem>>
      %306 = vector.broadcast %305 : f32 to vector<32x128xf32>
      %307 = arith.mulf %56, %306 : vector<32x128xf32>
      %308 = arith.addf %304, %307 : vector<32x128xf32>
      %c53 = arith.constant 53 : index
      %309 = memref.load %arg1[%c53] : memref<90xf32, #tpu.memory_space<smem>>
      %310 = vector.broadcast %309 : f32 to vector<32x128xf32>
      %311 = arith.mulf %57, %310 : vector<32x128xf32>
      %312 = arith.addf %308, %311 : vector<32x128xf32>
      %c5_60 = arith.constant 5 : index
      %313 = memref.load %arg2[%c5_60] : memref<10xf32, #tpu.memory_space<smem>>
      %314 = vector.broadcast %313 : f32 to vector<32x128xf32>
      %315 = arith.addf %312, %314 : vector<32x128xf32>
      %cst_61 = arith.constant 0.000000e+00 : f32
      %316 = vector.broadcast %cst_61 : f32 to vector<32x128xf32>
      %317 = arith.maximumf %315, %316 : vector<32x128xf32>
      %c5_62 = arith.constant 5 : index
      %318 = arith.index_cast %46 : i32 to index
      %c0_63 = arith.constant 0 : index
      %319 = vector.load %arg9[%c5_62, %318, %c0_63] : memref<10x736x128xf32, #tpu.memory_space<vmem>>, vector<1x32x128xf32>
      %320 = vector.shape_cast %319 : vector<1x32x128xf32> to vector<32x128xf32>
      %321 = vector.shape_cast %317 : vector<32x128xf32> to vector<1x32x128xf32>
      tpu.vector_store %arg9[%c5_62, %318, %c0_63], %321 {strides = array<i32>} : memref<10x736x128xf32, #tpu.memory_space<vmem>>, vector<1x32x128xf32>,
      %c54 = arith.constant 54 : index
      %322 = memref.load %arg1[%c54] : memref<90xf32, #tpu.memory_space<smem>>
      %323 = vector.broadcast %322 : f32 to vector<32x128xf32>
      %324 = arith.mulf %49, %323 : vector<32x128xf32>
      %c55 = arith.constant 55 : index
      %325 = memref.load %arg1[%c55] : memref<90xf32, #tpu.memory_space<smem>>
      %326 = vector.broadcast %325 : f32 to vector<32x128xf32>
      %327 = arith.mulf %50, %326 : vector<32x128xf32>
      %328 = arith.addf %324, %327 : vector<32x128xf32>
      %c56 = arith.constant 56 : index
      %329 = memref.load %arg1[%c56] : memref<90xf32, #tpu.memory_space<smem>>
      %330 = vector.broadcast %329 : f32 to vector<32x128xf32>
      %331 = arith.mulf %51, %330 : vector<32x128xf32>
      %332 = arith.addf %328, %331 : vector<32x128xf32>
      %c57 = arith.constant 57 : index
      %333 = memref.load %arg1[%c57] : memref<90xf32, #tpu.memory_space<smem>>
      %334 = vector.broadcast %333 : f32 to vector<32x128xf32>
      %335 = arith.mulf %52, %334 : vector<32x128xf32>
      %336 = arith.addf %332, %335 : vector<32x128xf32>
      %c58 = arith.constant 58 : index
      %337 = memref.load %arg1[%c58] : memref<90xf32, #tpu.memory_space<smem>>
      %338 = vector.broadcast %337 : f32 to vector<32x128xf32>
      %339 = arith.mulf %53, %338 : vector<32x128xf32>
      %340 = arith.addf %336, %339 : vector<32x128xf32>
      %c59 = arith.constant 59 : index
      %341 = memref.load %arg1[%c59] : memref<90xf32, #tpu.memory_space<smem>>
      %342 = vector.broadcast %341 : f32 to vector<32x128xf32>
      %343 = arith.mulf %54, %342 : vector<32x128xf32>
      %344 = arith.addf %340, %343 : vector<32x128xf32>
      %c60 = arith.constant 60 : index
      %345 = memref.load %arg1[%c60] : memref<90xf32, #tpu.memory_space<smem>>
      %346 = vector.broadcast %345 : f32 to vector<32x128xf32>
      %347 = arith.mulf %55, %346 : vector<32x128xf32>
      %348 = arith.addf %344, %347 : vector<32x128xf32>
      %c61 = arith.constant 61 : index
      %349 = memref.load %arg1[%c61] : memref<90xf32, #tpu.memory_space<smem>>
      %350 = vector.broadcast %349 : f32 to vector<32x128xf32>
      %351 = arith.mulf %56, %350 : vector<32x128xf32>
      %352 = arith.addf %348, %351 : vector<32x128xf32>
      %c62 = arith.constant 62 : index
      %353 = memref.load %arg1[%c62] : memref<90xf32, #tpu.memory_space<smem>>
      %354 = vector.broadcast %353 : f32 to vector<32x128xf32>
      %355 = arith.mulf %57, %354 : vector<32x128xf32>
      %356 = arith.addf %352, %355 : vector<32x128xf32>
      %c6_64 = arith.constant 6 : index
      %357 = memref.load %arg2[%c6_64] : memref<10xf32, #tpu.memory_space<smem>>
      %358 = vector.broadcast %357 : f32 to vector<32x128xf32>
      %359 = arith.addf %356, %358 : vector<32x128xf32>
      %cst_65 = arith.constant 0.000000e+00 : f32
      %360 = vector.broadcast %cst_65 : f32 to vector<32x128xf32>
      %361 = arith.maximumf %359, %360 : vector<32x128xf32>
      %c6_66 = arith.constant 6 : index
      %362 = arith.index_cast %46 : i32 to index
      %c0_67 = arith.constant 0 : index
      %363 = vector.load %arg9[%c6_66, %362, %c0_67] : memref<10x736x128xf32, #tpu.memory_space<vmem>>, vector<1x32x128xf32>
      %364 = vector.shape_cast %363 : vector<1x32x128xf32> to vector<32x128xf32>
      %365 = vector.shape_cast %361 : vector<32x128xf32> to vector<1x32x128xf32>
      tpu.vector_store %arg9[%c6_66, %362, %c0_67], %365 {strides = array<i32>} : memref<10x736x128xf32, #tpu.memory_space<vmem>>, vector<1x32x128xf32>,
      %c63 = arith.constant 63 : index
      %366 = memref.load %arg1[%c63] : memref<90xf32, #tpu.memory_space<smem>>
      %367 = vector.broadcast %366 : f32 to vector<32x128xf32>
      %368 = arith.mulf %49, %367 : vector<32x128xf32>
      %c64 = arith.constant 64 : index
      %369 = memref.load %arg1[%c64] : memref<90xf32, #tpu.memory_space<smem>>
      %370 = vector.broadcast %369 : f32 to vector<32x128xf32>
      %371 = arith.mulf %50, %370 : vector<32x128xf32>
      %372 = arith.addf %368, %371 : vector<32x128xf32>
      %c65 = arith.constant 65 : index
      %373 = memref.load %arg1[%c65] : memref<90xf32, #tpu.memory_space<smem>>
      %374 = vector.broadcast %373 : f32 to vector<32x128xf32>
      %375 = arith.mulf %51, %374 : vector<32x128xf32>
      %376 = arith.addf %372, %375 : vector<32x128xf32>
      %c66 = arith.constant 66 : index
      %377 = memref.load %arg1[%c66] : memref<90xf32, #tpu.memory_space<smem>>
      %378 = vector.broadcast %377 : f32 to vector<32x128xf32>
      %379 = arith.mulf %52, %378 : vector<32x128xf32>
      %380 = arith.addf %376, %379 : vector<32x128xf32>
      %c67 = arith.constant 67 : index
      %381 = memref.load %arg1[%c67] : memref<90xf32, #tpu.memory_space<smem>>
      %382 = vector.broadcast %381 : f32 to vector<32x128xf32>
      %383 = arith.mulf %53, %382 : vector<32x128xf32>
      %384 = arith.addf %380, %383 : vector<32x128xf32>
      %c68 = arith.constant 68 : index
      %385 = memref.load %arg1[%c68] : memref<90xf32, #tpu.memory_space<smem>>
      %386 = vector.broadcast %385 : f32 to vector<32x128xf32>
      %387 = arith.mulf %54, %386 : vector<32x128xf32>
      %388 = arith.addf %384, %387 : vector<32x128xf32>
      %c69 = arith.constant 69 : index
      %389 = memref.load %arg1[%c69] : memref<90xf32, #tpu.memory_space<smem>>
      %390 = vector.broadcast %389 : f32 to vector<32x128xf32>
      %391 = arith.mulf %55, %390 : vector<32x128xf32>
      %392 = arith.addf %388, %391 : vector<32x128xf32>
      %c70 = arith.constant 70 : index
      %393 = memref.load %arg1[%c70] : memref<90xf32, #tpu.memory_space<smem>>
      %394 = vector.broadcast %393 : f32 to vector<32x128xf32>
      %395 = arith.mulf %56, %394 : vector<32x128xf32>
      %396 = arith.addf %392, %395 : vector<32x128xf32>
      %c71 = arith.constant 71 : index
      %397 = memref.load %arg1[%c71] : memref<90xf32, #tpu.memory_space<smem>>
      %398 = vector.broadcast %397 : f32 to vector<32x128xf32>
      %399 = arith.mulf %57, %398 : vector<32x128xf32>
      %400 = arith.addf %396, %399 : vector<32x128xf32>
      %c7_68 = arith.constant 7 : index
      %401 = memref.load %arg2[%c7_68] : memref<10xf32, #tpu.memory_space<smem>>
      %402 = vector.broadcast %401 : f32 to vector<32x128xf32>
      %403 = arith.addf %400, %402 : vector<32x128xf32>
      %cst_69 = arith.constant 0.000000e+00 : f32
      %404 = vector.broadcast %cst_69 : f32 to vector<32x128xf32>
      %405 = arith.maximumf %403, %404 : vector<32x128xf32>
      %c7_70 = arith.constant 7 : index
      %406 = arith.index_cast %46 : i32 to index
      %c0_71 = arith.constant 0 : index
      %407 = vector.load %arg9[%c7_70, %406, %c0_71] : memref<10x736x128xf32, #tpu.memory_space<vmem>>, vector<1x32x128xf32>
      %408 = vector.shape_cast %407 : vector<1x32x128xf32> to vector<32x128xf32>
      %409 = vector.shape_cast %405 : vector<32x128xf32> to vector<1x32x128xf32>
      tpu.vector_store %arg9[%c7_70, %406, %c0_71], %409 {strides = array<i32>} : memref<10x736x128xf32, #tpu.memory_space<vmem>>, vector<1x32x128xf32>,
      %c72 = arith.constant 72 : index
      %410 = memref.load %arg1[%c72] : memref<90xf32, #tpu.memory_space<smem>>
      %411 = vector.broadcast %410 : f32 to vector<32x128xf32>
      %412 = arith.mulf %49, %411 : vector<32x128xf32>
      %c73 = arith.constant 73 : index
      %413 = memref.load %arg1[%c73] : memref<90xf32, #tpu.memory_space<smem>>
      %414 = vector.broadcast %413 : f32 to vector<32x128xf32>
      %415 = arith.mulf %50, %414 : vector<32x128xf32>
      %416 = arith.addf %412, %415 : vector<32x128xf32>
      %c74 = arith.constant 74 : index
      %417 = memref.load %arg1[%c74] : memref<90xf32, #tpu.memory_space<smem>>
      %418 = vector.broadcast %417 : f32 to vector<32x128xf32>
      %419 = arith.mulf %51, %418 : vector<32x128xf32>
      %420 = arith.addf %416, %419 : vector<32x128xf32>
      %c75 = arith.constant 75 : index
      %421 = memref.load %arg1[%c75] : memref<90xf32, #tpu.memory_space<smem>>
      %422 = vector.broadcast %421 : f32 to vector<32x128xf32>
      %423 = arith.mulf %52, %422 : vector<32x128xf32>
      %424 = arith.addf %420, %423 : vector<32x128xf32>
      %c76 = arith.constant 76 : index
      %425 = memref.load %arg1[%c76] : memref<90xf32, #tpu.memory_space<smem>>
      %426 = vector.broadcast %425 : f32 to vector<32x128xf32>
      %427 = arith.mulf %53, %426 : vector<32x128xf32>
      %428 = arith.addf %424, %427 : vector<32x128xf32>
      %c77 = arith.constant 77 : index
      %429 = memref.load %arg1[%c77] : memref<90xf32, #tpu.memory_space<smem>>
      %430 = vector.broadcast %429 : f32 to vector<32x128xf32>
      %431 = arith.mulf %54, %430 : vector<32x128xf32>
      %432 = arith.addf %428, %431 : vector<32x128xf32>
      %c78 = arith.constant 78 : index
      %433 = memref.load %arg1[%c78] : memref<90xf32, #tpu.memory_space<smem>>
      %434 = vector.broadcast %433 : f32 to vector<32x128xf32>
      %435 = arith.mulf %55, %434 : vector<32x128xf32>
      %436 = arith.addf %432, %435 : vector<32x128xf32>
      %c79 = arith.constant 79 : index
      %437 = memref.load %arg1[%c79] : memref<90xf32, #tpu.memory_space<smem>>
      %438 = vector.broadcast %437 : f32 to vector<32x128xf32>
      %439 = arith.mulf %56, %438 : vector<32x128xf32>
      %440 = arith.addf %436, %439 : vector<32x128xf32>
      %c80 = arith.constant 80 : index
      %441 = memref.load %arg1[%c80] : memref<90xf32, #tpu.memory_space<smem>>
      %442 = vector.broadcast %441 : f32 to vector<32x128xf32>
      %443 = arith.mulf %57, %442 : vector<32x128xf32>
      %444 = arith.addf %440, %443 : vector<32x128xf32>
      %c8_72 = arith.constant 8 : index
      %445 = memref.load %arg2[%c8_72] : memref<10xf32, #tpu.memory_space<smem>>
      %446 = vector.broadcast %445 : f32 to vector<32x128xf32>
      %447 = arith.addf %444, %446 : vector<32x128xf32>
      %cst_73 = arith.constant 0.000000e+00 : f32
      %448 = vector.broadcast %cst_73 : f32 to vector<32x128xf32>
      %449 = arith.maximumf %447, %448 : vector<32x128xf32>
      %c8_74 = arith.constant 8 : index
      %450 = arith.index_cast %46 : i32 to index
      %c0_75 = arith.constant 0 : index
      %451 = vector.load %arg9[%c8_74, %450, %c0_75] : memref<10x736x128xf32, #tpu.memory_space<vmem>>, vector<1x32x128xf32>
      %452 = vector.shape_cast %451 : vector<1x32x128xf32> to vector<32x128xf32>
      %453 = vector.shape_cast %449 : vector<32x128xf32> to vector<1x32x128xf32>
      tpu.vector_store %arg9[%c8_74, %450, %c0_75], %453 {strides = array<i32>} : memref<10x736x128xf32, #tpu.memory_space<vmem>>, vector<1x32x128xf32>,
      %c81 = arith.constant 81 : index
      %454 = memref.load %arg1[%c81] : memref<90xf32, #tpu.memory_space<smem>>
      %455 = vector.broadcast %454 : f32 to vector<32x128xf32>
      %456 = arith.mulf %49, %455 : vector<32x128xf32>
      %c82 = arith.constant 82 : index
      %457 = memref.load %arg1[%c82] : memref<90xf32, #tpu.memory_space<smem>>
      %458 = vector.broadcast %457 : f32 to vector<32x128xf32>
      %459 = arith.mulf %50, %458 : vector<32x128xf32>
      %460 = arith.addf %456, %459 : vector<32x128xf32>
      %c83 = arith.constant 83 : index
      %461 = memref.load %arg1[%c83] : memref<90xf32, #tpu.memory_space<smem>>
      %462 = vector.broadcast %461 : f32 to vector<32x128xf32>
      %463 = arith.mulf %51, %462 : vector<32x128xf32>
      %464 = arith.addf %460, %463 : vector<32x128xf32>
      %c84 = arith.constant 84 : index
      %465 = memref.load %arg1[%c84] : memref<90xf32, #tpu.memory_space<smem>>
      %466 = vector.broadcast %465 : f32 to vector<32x128xf32>
      %467 = arith.mulf %52, %466 : vector<32x128xf32>
      %468 = arith.addf %464, %467 : vector<32x128xf32>
      %c85 = arith.constant 85 : index
      %469 = memref.load %arg1[%c85] : memref<90xf32, #tpu.memory_space<smem>>
      %470 = vector.broadcast %469 : f32 to vector<32x128xf32>
      %471 = arith.mulf %53, %470 : vector<32x128xf32>
      %472 = arith.addf %468, %471 : vector<32x128xf32>
      %c86 = arith.constant 86 : index
      %473 = memref.load %arg1[%c86] : memref<90xf32, #tpu.memory_space<smem>>
      %474 = vector.broadcast %473 : f32 to vector<32x128xf32>
      %475 = arith.mulf %54, %474 : vector<32x128xf32>
      %476 = arith.addf %472, %475 : vector<32x128xf32>
      %c87 = arith.constant 87 : index
      %477 = memref.load %arg1[%c87] : memref<90xf32, #tpu.memory_space<smem>>
      %478 = vector.broadcast %477 : f32 to vector<32x128xf32>
      %479 = arith.mulf %55, %478 : vector<32x128xf32>
      %480 = arith.addf %476, %479 : vector<32x128xf32>
      %c88 = arith.constant 88 : index
      %481 = memref.load %arg1[%c88] : memref<90xf32, #tpu.memory_space<smem>>
      %482 = vector.broadcast %481 : f32 to vector<32x128xf32>
      %483 = arith.mulf %56, %482 : vector<32x128xf32>
      %484 = arith.addf %480, %483 : vector<32x128xf32>
      %c89 = arith.constant 89 : index
      %485 = memref.load %arg1[%c89] : memref<90xf32, #tpu.memory_space<smem>>
      %486 = vector.broadcast %485 : f32 to vector<32x128xf32>
      %487 = arith.mulf %57, %486 : vector<32x128xf32>
      %488 = arith.addf %484, %487 : vector<32x128xf32>
      %c9_76 = arith.constant 9 : index
      %489 = memref.load %arg2[%c9_76] : memref<10xf32, #tpu.memory_space<smem>>
      %490 = vector.broadcast %489 : f32 to vector<32x128xf32>
      %491 = arith.addf %488, %490 : vector<32x128xf32>
      %cst_77 = arith.constant 0.000000e+00 : f32
      %492 = vector.broadcast %cst_77 : f32 to vector<32x128xf32>
      %493 = arith.maximumf %491, %492 : vector<32x128xf32>
      %c9_78 = arith.constant 9 : index
      %494 = arith.index_cast %46 : i32 to index
      %c0_79 = arith.constant 0 : index
      %495 = vector.load %arg9[%c9_78, %494, %c0_79] : memref<10x736x128xf32, #tpu.memory_space<vmem>>, vector<1x32x128xf32>
      %496 = vector.shape_cast %495 : vector<1x32x128xf32> to vector<32x128xf32>
      %497 = vector.shape_cast %493 : vector<32x128xf32> to vector<1x32x128xf32>
      tpu.vector_store %arg9[%c9_78, %494, %c0_79], %497 {strides = array<i32>} : memref<10x736x128xf32, #tpu.memory_space<vmem>>, vector<1x32x128xf32>,
    }
    %c23_i32_0 = arith.constant 23 : i32
    %c0_i32_1 = arith.constant 0 : i32
    %c21_i32 = arith.constant 21 : i32
    %1 = arith.addi %c0_i32_1, %c21_i32 : i32
    %c1_i32_2 = arith.constant 1 : i32
    scf.for %arg11 = %c0_i32_1 to %1 step %c1_i32_2  : i32 {
      %c32_i32 = arith.constant 32 : i32
      %45 = arith.muli %arg11, %c32_i32 : i32
      %46 = tpu.assume_multiple %45, 32 : i32
      %cst_35 = arith.constant 0.000000e+00 : f32
      %47 = vector.broadcast %cst_35 : f32 to vector<32x128xf32>
      %cst_36 = arith.constant 0.000000e+00 : f32
      %48 = vector.broadcast %cst_36 : f32 to vector<32x128xf32>
      %cst_37 = arith.constant 0.000000e+00 : f32
      %49 = vector.broadcast %cst_37 : f32 to vector<32x128xf32>
      %cst_38 = arith.constant 0.000000e+00 : f32
      %50 = vector.broadcast %cst_38 : f32 to vector<32x128xf32>
      %c0_i32_39 = arith.constant 0 : i32
      %c10_i32 = arith.constant 10 : i32
      %51 = arith.addi %c0_i32_39, %c10_i32 : i32
      %c1_i32_40 = arith.constant 1 : i32
      %52:4 = scf.for %arg12 = %c0_i32_39 to %51 step %c1_i32_40 iter_args(%arg13 = %47, %arg14 = %48, %arg15 = %49, %arg16 = %50) -> (vector<32x128xf32>, vector<32x128xf32>, vector<32x128xf32>, vector<32x128xf32>)  : i32 {
        %89 = arith.index_cast %arg12 : i32 to index
        %90 = arith.index_cast %46 : i32 to index
        %c0_58 = arith.constant 0 : index
        %91 = vector.load %arg9[%89, %90, %c0_58] : memref<10x736x128xf32, #tpu.memory_space<vmem>>, vector<1x96x128xf32>
        %92 = vector.shape_cast %91 : vector<1x96x128xf32> to vector<96x128xf32>
        %93 = vector.extract_strided_slice %92 {offsets = [0, 0], sizes = [32, 128], strides = [1, 1]} : vector<96x128xf32> to vector<32x128xf32>
        %c36_i32 = arith.constant 36 : i32
        %94 = arith.muli %arg12, %c36_i32 : i32
        %c0_i32_59 = arith.constant 0 : i32
        %95 = arith.addi %94, %c0_i32_59 : i32
        %c0_i32_60 = arith.constant 0 : i32
        %96 = arith.addi %95, %c0_i32_60 : i32
        %c0_i32_61 = arith.constant 0 : i32
        %97 = arith.addi %96, %c0_i32_61 : i32
        %98 = arith.index_cast %97 : i32 to index
        %99 = memref.load %arg3[%98] : memref<360xf32, #tpu.memory_space<smem>>
        %100 = vector.broadcast %99 : f32 to vector<32x128xf32>
        %101 = arith.mulf %93, %100 : vector<32x128xf32>
        %102 = arith.addf %arg13, %101 : vector<32x128xf32>
        %c1_i32_62 = arith.constant 1 : i32
        %103 = arith.addi %96, %c1_i32_62 : i32
        %104 = arith.index_cast %103 : i32 to index
        %105 = memref.load %arg3[%104] : memref<360xf32, #tpu.memory_space<smem>>
        %106 = vector.broadcast %105 : f32 to vector<32x128xf32>
        %107 = arith.mulf %93, %106 : vector<32x128xf32>
        %108 = arith.addf %arg14, %107 : vector<32x128xf32>
        %c2_i32 = arith.constant 2 : i32
        %109 = arith.addi %96, %c2_i32 : i32
        %110 = arith.index_cast %109 : i32 to index
        %111 = memref.load %arg3[%110] : memref<360xf32, #tpu.memory_space<smem>>
        %112 = vector.broadcast %111 : f32 to vector<32x128xf32>
        %113 = arith.mulf %93, %112 : vector<32x128xf32>
        %114 = arith.addf %arg15, %113 : vector<32x128xf32>
        %c3_i32 = arith.constant 3 : i32
        %115 = arith.addi %96, %c3_i32 : i32
        %116 = arith.index_cast %115 : i32 to index
        %117 = memref.load %arg3[%116] : memref<360xf32, #tpu.memory_space<smem>>
        %118 = vector.broadcast %117 : f32 to vector<32x128xf32>
        %119 = arith.mulf %93, %118 : vector<32x128xf32>
        %120 = arith.addf %arg16, %119 : vector<32x128xf32>
        %121 = vector.extract_strided_slice %92 {offsets = [1, 0], sizes = [32, 128], strides = [1, 1]} : vector<96x128xf32> to vector<32x128xf32>
        %c36_i32_63 = arith.constant 36 : i32
        %122 = arith.muli %arg12, %c36_i32_63 : i32
        %c0_i32_64 = arith.constant 0 : i32
        %123 = arith.addi %122, %c0_i32_64 : i32
        %c4_i32 = arith.constant 4 : i32
        %124 = arith.addi %123, %c4_i32 : i32
        %c0_i32_65 = arith.constant 0 : i32
        %125 = arith.addi %124, %c0_i32_65 : i32
        %126 = arith.index_cast %125 : i32 to index
        %127 = memref.load %arg3[%126] : memref<360xf32, #tpu.memory_space<smem>>
        %128 = vector.broadcast %127 : f32 to vector<32x128xf32>
        %129 = arith.mulf %121, %128 : vector<32x128xf32>
        %130 = arith.addf %102, %129 : vector<32x128xf32>
        %c1_i32_66 = arith.constant 1 : i32
        %131 = arith.addi %124, %c1_i32_66 : i32
        %132 = arith.index_cast %131 : i32 to index
        %133 = memref.load %arg3[%132] : memref<360xf32, #tpu.memory_space<smem>>
        %134 = vector.broadcast %133 : f32 to vector<32x128xf32>
        %135 = arith.mulf %121, %134 : vector<32x128xf32>
        %136 = arith.addf %108, %135 : vector<32x128xf32>
        %c2_i32_67 = arith.constant 2 : i32
        %137 = arith.addi %124, %c2_i32_67 : i32
        %138 = arith.index_cast %137 : i32 to index
        %139 = memref.load %arg3[%138] : memref<360xf32, #tpu.memory_space<smem>>
        %140 = vector.broadcast %139 : f32 to vector<32x128xf32>
        %141 = arith.mulf %121, %140 : vector<32x128xf32>
        %142 = arith.addf %114, %141 : vector<32x128xf32>
        %c3_i32_68 = arith.constant 3 : i32
        %143 = arith.addi %124, %c3_i32_68 : i32
        %144 = arith.index_cast %143 : i32 to index
        %145 = memref.load %arg3[%144] : memref<360xf32, #tpu.memory_space<smem>>
        %146 = vector.broadcast %145 : f32 to vector<32x128xf32>
        %147 = arith.mulf %121, %146 : vector<32x128xf32>
        %148 = arith.addf %120, %147 : vector<32x128xf32>
        %149 = vector.extract_strided_slice %92 {offsets = [2, 0], sizes = [32, 128], strides = [1, 1]} : vector<96x128xf32> to vector<32x128xf32>
        %c36_i32_69 = arith.constant 36 : i32
        %150 = arith.muli %arg12, %c36_i32_69 : i32
        %c0_i32_70 = arith.constant 0 : i32
        %151 = arith.addi %150, %c0_i32_70 : i32
        %c8_i32 = arith.constant 8 : i32
        %152 = arith.addi %151, %c8_i32 : i32
        %c0_i32_71 = arith.constant 0 : i32
        %153 = arith.addi %152, %c0_i32_71 : i32
        %154 = arith.index_cast %153 : i32 to index
        %155 = memref.load %arg3[%154] : memref<360xf32, #tpu.memory_space<smem>>
        %156 = vector.broadcast %155 : f32 to vector<32x128xf32>
        %157 = arith.mulf %149, %156 : vector<32x128xf32>
        %158 = arith.addf %130, %157 : vector<32x128xf32>
        %c1_i32_72 = arith.constant 1 : i32
        %159 = arith.addi %152, %c1_i32_72 : i32
        %160 = arith.index_cast %159 : i32 to index
        %161 = memref.load %arg3[%160] : memref<360xf32, #tpu.memory_space<smem>>
        %162 = vector.broadcast %161 : f32 to vector<32x128xf32>
        %163 = arith.mulf %149, %162 : vector<32x128xf32>
        %164 = arith.addf %136, %163 : vector<32x128xf32>
        %c2_i32_73 = arith.constant 2 : i32
        %165 = arith.addi %152, %c2_i32_73 : i32
        %166 = arith.index_cast %165 : i32 to index
        %167 = memref.load %arg3[%166] : memref<360xf32, #tpu.memory_space<smem>>
        %168 = vector.broadcast %167 : f32 to vector<32x128xf32>
        %169 = arith.mulf %149, %168 : vector<32x128xf32>
        %170 = arith.addf %142, %169 : vector<32x128xf32>
        %c3_i32_74 = arith.constant 3 : i32
        %171 = arith.addi %152, %c3_i32_74 : i32
        %172 = arith.index_cast %171 : i32 to index
        %173 = memref.load %arg3[%172] : memref<360xf32, #tpu.memory_space<smem>>
        %174 = vector.broadcast %173 : f32 to vector<32x128xf32>
        %175 = arith.mulf %149, %174 : vector<32x128xf32>
        %176 = arith.addf %148, %175 : vector<32x128xf32>
        %177 = vector.extract_strided_slice %92 {offsets = [28, 0], sizes = [32, 128], strides = [1, 1]} : vector<96x128xf32> to vector<32x128xf32>
        %c36_i32_75 = arith.constant 36 : i32
        %178 = arith.muli %arg12, %c36_i32_75 : i32
        %c12_i32 = arith.constant 12 : i32
        %179 = arith.addi %178, %c12_i32 : i32
        %c0_i32_76 = arith.constant 0 : i32
        %180 = arith.addi %179, %c0_i32_76 : i32
        %c0_i32_77 = arith.constant 0 : i32
        %181 = arith.addi %180, %c0_i32_77 : i32
        %182 = arith.index_cast %181 : i32 to index
        %183 = memref.load %arg3[%182] : memref<360xf32, #tpu.memory_space<smem>>
        %184 = vector.broadcast %183 : f32 to vector<32x128xf32>
        %185 = arith.mulf %177, %184 : vector<32x128xf32>
        %186 = arith.addf %158, %185 : vector<32x128xf32>
        %c1_i32_78 = arith.constant 1 : i32
        %187 = arith.addi %180, %c1_i32_78 : i32
        %188 = arith.index_cast %187 : i32 to index
        %189 = memref.load %arg3[%188] : memref<360xf32, #tpu.memory_space<smem>>
        %190 = vector.broadcast %189 : f32 to vector<32x128xf32>
        %191 = arith.mulf %177, %190 : vector<32x128xf32>
        %192 = arith.addf %164, %191 : vector<32x128xf32>
        %c2_i32_79 = arith.constant 2 : i32
        %193 = arith.addi %180, %c2_i32_79 : i32
        %194 = arith.index_cast %193 : i32 to index
        %195 = memref.load %arg3[%194] : memref<360xf32, #tpu.memory_space<smem>>
        %196 = vector.broadcast %195 : f32 to vector<32x128xf32>
        %197 = arith.mulf %177, %196 : vector<32x128xf32>
        %198 = arith.addf %170, %197 : vector<32x128xf32>
        %c3_i32_80 = arith.constant 3 : i32
        %199 = arith.addi %180, %c3_i32_80 : i32
        %200 = arith.index_cast %199 : i32 to index
        %201 = memref.load %arg3[%200] : memref<360xf32, #tpu.memory_space<smem>>
        %202 = vector.broadcast %201 : f32 to vector<32x128xf32>
        %203 = arith.mulf %177, %202 : vector<32x128xf32>
        %204 = arith.addf %176, %203 : vector<32x128xf32>
        %205 = vector.extract_strided_slice %92 {offsets = [29, 0], sizes = [32, 128], strides = [1, 1]} : vector<96x128xf32> to vector<32x128xf32>
        %c36_i32_81 = arith.constant 36 : i32
        %206 = arith.muli %arg12, %c36_i32_81 : i32
        %c12_i32_82 = arith.constant 12 : i32
        %207 = arith.addi %206, %c12_i32_82 : i32
        %c4_i32_83 = arith.constant 4 : i32
        %208 = arith.addi %207, %c4_i32_83 : i32
        %c0_i32_84 = arith.constant 0 : i32
        %209 = arith.addi %208, %c0_i32_84 : i32
        %210 = arith.index_cast %209 : i32 to index
        %211 = memref.load %arg3[%210] : memref<360xf32, #tpu.memory_space<smem>>
        %212 = vector.broadcast %211 : f32 to vector<32x128xf32>
        %213 = arith.mulf %205, %212 : vector<32x128xf32>
        %214 = arith.addf %186, %213 : vector<32x128xf32>
        %c1_i32_85 = arith.constant 1 : i32
        %215 = arith.addi %208, %c1_i32_85 : i32
        %216 = arith.index_cast %215 : i32 to index
        %217 = memref.load %arg3[%216] : memref<360xf32, #tpu.memory_space<smem>>
        %218 = vector.broadcast %217 : f32 to vector<32x128xf32>
        %219 = arith.mulf %205, %218 : vector<32x128xf32>
        %220 = arith.addf %192, %219 : vector<32x128xf32>
        %c2_i32_86 = arith.constant 2 : i32
        %221 = arith.addi %208, %c2_i32_86 : i32
        %222 = arith.index_cast %221 : i32 to index
        %223 = memref.load %arg3[%222] : memref<360xf32, #tpu.memory_space<smem>>
        %224 = vector.broadcast %223 : f32 to vector<32x128xf32>
        %225 = arith.mulf %205, %224 : vector<32x128xf32>
        %226 = arith.addf %198, %225 : vector<32x128xf32>
        %c3_i32_87 = arith.constant 3 : i32
        %227 = arith.addi %208, %c3_i32_87 : i32
        %228 = arith.index_cast %227 : i32 to index
        %229 = memref.load %arg3[%228] : memref<360xf32, #tpu.memory_space<smem>>
        %230 = vector.broadcast %229 : f32 to vector<32x128xf32>
        %231 = arith.mulf %205, %230 : vector<32x128xf32>
        %232 = arith.addf %204, %231 : vector<32x128xf32>
        %233 = vector.extract_strided_slice %92 {offsets = [30, 0], sizes = [32, 128], strides = [1, 1]} : vector<96x128xf32> to vector<32x128xf32>
        %c36_i32_88 = arith.constant 36 : i32
        %234 = arith.muli %arg12, %c36_i32_88 : i32
        %c12_i32_89 = arith.constant 12 : i32
        %235 = arith.addi %234, %c12_i32_89 : i32
        %c8_i32_90 = arith.constant 8 : i32
        %236 = arith.addi %235, %c8_i32_90 : i32
        %c0_i32_91 = arith.constant 0 : i32
        %237 = arith.addi %236, %c0_i32_91 : i32
        %238 = arith.index_cast %237 : i32 to index
        %239 = memref.load %arg3[%238] : memref<360xf32, #tpu.memory_space<smem>>
        %240 = vector.broadcast %239 : f32 to vector<32x128xf32>
        %241 = arith.mulf %233, %240 : vector<32x128xf32>
        %242 = arith.addf %214, %241 : vector<32x128xf32>
        %c1_i32_92 = arith.constant 1 : i32
        %243 = arith.addi %236, %c1_i32_92 : i32
        %244 = arith.index_cast %243 : i32 to index
        %245 = memref.load %arg3[%244] : memref<360xf32, #tpu.memory_space<smem>>
        %246 = vector.broadcast %245 : f32 to vector<32x128xf32>
        %247 = arith.mulf %233, %246 : vector<32x128xf32>
        %248 = arith.addf %220, %247 : vector<32x128xf32>
        %c2_i32_93 = arith.constant 2 : i32
        %249 = arith.addi %236, %c2_i32_93 : i32
        %250 = arith.index_cast %249 : i32 to index
        %251 = memref.load %arg3[%250] : memref<360xf32, #tpu.memory_space<smem>>
        %252 = vector.broadcast %251 : f32 to vector<32x128xf32>
        %253 = arith.mulf %233, %252 : vector<32x128xf32>
        %254 = arith.addf %226, %253 : vector<32x128xf32>
        %c3_i32_94 = arith.constant 3 : i32
        %255 = arith.addi %236, %c3_i32_94 : i32
        %256 = arith.index_cast %255 : i32 to index
        %257 = memref.load %arg3[%256] : memref<360xf32, #tpu.memory_space<smem>>
        %258 = vector.broadcast %257 : f32 to vector<32x128xf32>
        %259 = arith.mulf %233, %258 : vector<32x128xf32>
        %260 = arith.addf %232, %259 : vector<32x128xf32>
        %261 = vector.extract_strided_slice %92 {offsets = [56, 0], sizes = [32, 128], strides = [1, 1]} : vector<96x128xf32> to vector<32x128xf32>
        %c36_i32_95 = arith.constant 36 : i32
        %262 = arith.muli %arg12, %c36_i32_95 : i32
        %c24_i32 = arith.constant 24 : i32
        %263 = arith.addi %262, %c24_i32 : i32
        %c0_i32_96 = arith.constant 0 : i32
        %264 = arith.addi %263, %c0_i32_96 : i32
        %c0_i32_97 = arith.constant 0 : i32
        %265 = arith.addi %264, %c0_i32_97 : i32
        %266 = arith.index_cast %265 : i32 to index
        %267 = memref.load %arg3[%266] : memref<360xf32, #tpu.memory_space<smem>>
        %268 = vector.broadcast %267 : f32 to vector<32x128xf32>
        %269 = arith.mulf %261, %268 : vector<32x128xf32>
        %270 = arith.addf %242, %269 : vector<32x128xf32>
        %c1_i32_98 = arith.constant 1 : i32
        %271 = arith.addi %264, %c1_i32_98 : i32
        %272 = arith.index_cast %271 : i32 to index
        %273 = memref.load %arg3[%272] : memref<360xf32, #tpu.memory_space<smem>>
        %274 = vector.broadcast %273 : f32 to vector<32x128xf32>
        %275 = arith.mulf %261, %274 : vector<32x128xf32>
        %276 = arith.addf %248, %275 : vector<32x128xf32>
        %c2_i32_99 = arith.constant 2 : i32
        %277 = arith.addi %264, %c2_i32_99 : i32
        %278 = arith.index_cast %277 : i32 to index
        %279 = memref.load %arg3[%278] : memref<360xf32, #tpu.memory_space<smem>>
        %280 = vector.broadcast %279 : f32 to vector<32x128xf32>
        %281 = arith.mulf %261, %280 : vector<32x128xf32>
        %282 = arith.addf %254, %281 : vector<32x128xf32>
        %c3_i32_100 = arith.constant 3 : i32
        %283 = arith.addi %264, %c3_i32_100 : i32
        %284 = arith.index_cast %283 : i32 to index
        %285 = memref.load %arg3[%284] : memref<360xf32, #tpu.memory_space<smem>>
        %286 = vector.broadcast %285 : f32 to vector<32x128xf32>
        %287 = arith.mulf %261, %286 : vector<32x128xf32>
        %288 = arith.addf %260, %287 : vector<32x128xf32>
        %289 = vector.extract_strided_slice %92 {offsets = [57, 0], sizes = [32, 128], strides = [1, 1]} : vector<96x128xf32> to vector<32x128xf32>
        %c36_i32_101 = arith.constant 36 : i32
        %290 = arith.muli %arg12, %c36_i32_101 : i32
        %c24_i32_102 = arith.constant 24 : i32
        %291 = arith.addi %290, %c24_i32_102 : i32
        %c4_i32_103 = arith.constant 4 : i32
        %292 = arith.addi %291, %c4_i32_103 : i32
        %c0_i32_104 = arith.constant 0 : i32
        %293 = arith.addi %292, %c0_i32_104 : i32
        %294 = arith.index_cast %293 : i32 to index
        %295 = memref.load %arg3[%294] : memref<360xf32, #tpu.memory_space<smem>>
        %296 = vector.broadcast %295 : f32 to vector<32x128xf32>
        %297 = arith.mulf %289, %296 : vector<32x128xf32>
        %298 = arith.addf %270, %297 : vector<32x128xf32>
        %c1_i32_105 = arith.constant 1 : i32
        %299 = arith.addi %292, %c1_i32_105 : i32
        %300 = arith.index_cast %299 : i32 to index
        %301 = memref.load %arg3[%300] : memref<360xf32, #tpu.memory_space<smem>>
        %302 = vector.broadcast %301 : f32 to vector<32x128xf32>
        %303 = arith.mulf %289, %302 : vector<32x128xf32>
        %304 = arith.addf %276, %303 : vector<32x128xf32>
        %c2_i32_106 = arith.constant 2 : i32
        %305 = arith.addi %292, %c2_i32_106 : i32
        %306 = arith.index_cast %305 : i32 to index
        %307 = memref.load %arg3[%306] : memref<360xf32, #tpu.memory_space<smem>>
        %308 = vector.broadcast %307 : f32 to vector<32x128xf32>
        %309 = arith.mulf %289, %308 : vector<32x128xf32>
        %310 = arith.addf %282, %309 : vector<32x128xf32>
        %c3_i32_107 = arith.constant 3 : i32
        %311 = arith.addi %292, %c3_i32_107 : i32
        %312 = arith.index_cast %311 : i32 to index
        %313 = memref.load %arg3[%312] : memref<360xf32, #tpu.memory_space<smem>>
        %314 = vector.broadcast %313 : f32 to vector<32x128xf32>
        %315 = arith.mulf %289, %314 : vector<32x128xf32>
        %316 = arith.addf %288, %315 : vector<32x128xf32>
        %317 = vector.extract_strided_slice %92 {offsets = [58, 0], sizes = [32, 128], strides = [1, 1]} : vector<96x128xf32> to vector<32x128xf32>
        %c36_i32_108 = arith.constant 36 : i32
        %318 = arith.muli %arg12, %c36_i32_108 : i32
        %c24_i32_109 = arith.constant 24 : i32
        %319 = arith.addi %318, %c24_i32_109 : i32
        %c8_i32_110 = arith.constant 8 : i32
        %320 = arith.addi %319, %c8_i32_110 : i32
        %c0_i32_111 = arith.constant 0 : i32
        %321 = arith.addi %320, %c0_i32_111 : i32
        %322 = arith.index_cast %321 : i32 to index
        %323 = memref.load %arg3[%322] : memref<360xf32, #tpu.memory_space<smem>>
        %324 = vector.broadcast %323 : f32 to vector<32x128xf32>
        %325 = arith.mulf %317, %324 : vector<32x128xf32>
        %326 = arith.addf %298, %325 : vector<32x128xf32>
        %c1_i32_112 = arith.constant 1 : i32
        %327 = arith.addi %320, %c1_i32_112 : i32
        %328 = arith.index_cast %327 : i32 to index
        %329 = memref.load %arg3[%328] : memref<360xf32, #tpu.memory_space<smem>>
        %330 = vector.broadcast %329 : f32 to vector<32x128xf32>
        %331 = arith.mulf %317, %330 : vector<32x128xf32>
        %332 = arith.addf %304, %331 : vector<32x128xf32>
        %c2_i32_113 = arith.constant 2 : i32
        %333 = arith.addi %320, %c2_i32_113 : i32
        %334 = arith.index_cast %333 : i32 to index
        %335 = memref.load %arg3[%334] : memref<360xf32, #tpu.memory_space<smem>>
        %336 = vector.broadcast %335 : f32 to vector<32x128xf32>
        %337 = arith.mulf %317, %336 : vector<32x128xf32>
        %338 = arith.addf %310, %337 : vector<32x128xf32>
        %c3_i32_114 = arith.constant 3 : i32
        %339 = arith.addi %320, %c3_i32_114 : i32
        %340 = arith.index_cast %339 : i32 to index
        %341 = memref.load %arg3[%340] : memref<360xf32, #tpu.memory_space<smem>>
        %342 = vector.broadcast %341 : f32 to vector<32x128xf32>
        %343 = arith.mulf %317, %342 : vector<32x128xf32>
        %344 = arith.addf %316, %343 : vector<32x128xf32>
        scf.yield %326, %332, %338, %344 : vector<32x128xf32>, vector<32x128xf32>, vector<32x128xf32>, vector<32x128xf32>
      }
      %c10_i32_41 = arith.constant 10 : i32
      %c0_42 = arith.constant 0 : index
      %53 = memref.load %arg4[%c0_42] : memref<4xf32, #tpu.memory_space<smem>>
      %54 = vector.broadcast %53 : f32 to vector<32x128xf32>
      %55 = arith.addf %52#0, %54 : vector<32x128xf32>
      %cst_43 = arith.constant 0.000000e+00 : f32
      %56 = vector.broadcast %cst_43 : f32 to vector<32x128xf32>
      %57 = arith.maximumf %55, %56 : vector<32x128xf32>
      %c0_44 = arith.constant 0 : index
      %58 = arith.index_cast %46 : i32 to index
      %c0_45 = arith.constant 0 : index
      %59 = vector.load %arg10[%c0_44, %58, %c0_45] : memref<4x672x128xf32, #tpu.memory_space<vmem>>, vector<1x32x128xf32>
      %60 = vector.shape_cast %59 : vector<1x32x128xf32> to vector<32x128xf32>
      %61 = vector.shape_cast %57 : vector<32x128xf32> to vector<1x32x128xf32>
      tpu.vector_store %arg10[%c0_44, %58, %c0_45], %61 {strides = array<i32>} : memref<4x672x128xf32, #tpu.memory_space<vmem>>, vector<1x32x128xf32>,
      %c1_46 = arith.constant 1 : index
      %62 = memref.load %arg4[%c1_46] : memref<4xf32, #tpu.memory_space<smem>>
      %63 = vector.broadcast %62 : f32 to vector<32x128xf32>
      %64 = arith.addf %52#1, %63 : vector<32x128xf32>
      %cst_47 = arith.constant 0.000000e+00 : f32
      %65 = vector.broadcast %cst_47 : f32 to vector<32x128xf32>
      %66 = arith.maximumf %64, %65 : vector<32x128xf32>
      %c1_48 = arith.constant 1 : index
      %67 = arith.index_cast %46 : i32 to index
      %c0_49 = arith.constant 0 : index
      %68 = vector.load %arg10[%c1_48, %67, %c0_49] : memref<4x672x128xf32, #tpu.memory_space<vmem>>, vector<1x32x128xf32>
      %69 = vector.shape_cast %68 : vector<1x32x128xf32> to vector<32x128xf32>
      %70 = vector.shape_cast %66 : vector<32x128xf32> to vector<1x32x128xf32>
      tpu.vector_store %arg10[%c1_48, %67, %c0_49], %70 {strides = array<i32>} : memref<4x672x128xf32, #tpu.memory_space<vmem>>, vector<1x32x128xf32>,
      %c2_50 = arith.constant 2 : index
      %71 = memref.load %arg4[%c2_50] : memref<4xf32, #tpu.memory_space<smem>>
      %72 = vector.broadcast %71 : f32 to vector<32x128xf32>
      %73 = arith.addf %52#2, %72 : vector<32x128xf32>
      %cst_51 = arith.constant 0.000000e+00 : f32
      %74 = vector.broadcast %cst_51 : f32 to vector<32x128xf32>
      %75 = arith.maximumf %73, %74 : vector<32x128xf32>
      %c2_52 = arith.constant 2 : index
      %76 = arith.index_cast %46 : i32 to index
      %c0_53 = arith.constant 0 : index
      %77 = vector.load %arg10[%c2_52, %76, %c0_53] : memref<4x672x128xf32, #tpu.memory_space<vmem>>, vector<1x32x128xf32>
      %78 = vector.shape_cast %77 : vector<1x32x128xf32> to vector<32x128xf32>
      %79 = vector.shape_cast %75 : vector<32x128xf32> to vector<1x32x128xf32>
      tpu.vector_store %arg10[%c2_52, %76, %c0_53], %79 {strides = array<i32>} : memref<4x672x128xf32, #tpu.memory_space<vmem>>, vector<1x32x128xf32>,
      %c3_54 = arith.constant 3 : index
      %80 = memref.load %arg4[%c3_54] : memref<4xf32, #tpu.memory_space<smem>>
      %81 = vector.broadcast %80 : f32 to vector<32x128xf32>
      %82 = arith.addf %52#3, %81 : vector<32x128xf32>
      %cst_55 = arith.constant 0.000000e+00 : f32
      %83 = vector.broadcast %cst_55 : f32 to vector<32x128xf32>
      %84 = arith.maximumf %82, %83 : vector<32x128xf32>
      %c3_56 = arith.constant 3 : index
      %85 = arith.index_cast %46 : i32 to index
      %c0_57 = arith.constant 0 : index
      %86 = vector.load %arg10[%c3_56, %85, %c0_57] : memref<4x672x128xf32, #tpu.memory_space<vmem>>, vector<1x32x128xf32>
      %87 = vector.shape_cast %86 : vector<1x32x128xf32> to vector<32x128xf32>
      %88 = vector.shape_cast %84 : vector<32x128xf32> to vector<1x32x128xf32>
      tpu.vector_store %arg10[%c3_56, %85, %c0_57], %88 {strides = array<i32>} : memref<4x672x128xf32, #tpu.memory_space<vmem>>, vector<1x32x128xf32>,
    }
    %c21_i32_3 = arith.constant 21 : i32
    %cst = arith.constant 0.000000e+00 : f32
    %2 = vector.broadcast %cst : f32 to vector<10x128xf32>
    %c0 = arith.constant 0 : index
    %c0_4 = arith.constant 0 : index
    %c0_5 = arith.constant 0 : index
    %3 = vector.load %arg6[%c0, %c0_4, %c0_5] : memref<4x10x672xf32, #tpu.memory_space<vmem>>, vector<1x10x672xf32>
    %4 = vector.shape_cast %3 : vector<1x10x672xf32> to vector<10x672xf32>
    %c0_6 = arith.constant 0 : index
    %c0_7 = arith.constant 0 : index
    %c0_8 = arith.constant 0 : index
    %5 = vector.load %arg10[%c0_6, %c0_7, %c0_8] : memref<4x672x128xf32, #tpu.memory_space<vmem>>, vector<1x672x128xf32>
    %6 = vector.shape_cast %5 : vector<1x672x128xf32> to vector<672x128xf32>
    %cst_9 = arith.constant dense<0.000000e+00> : vector<10x128xf32>
    %7 = tpu.matmul %4, %6, %cst_9 {dimension_numbers = #tpu.dot_dimension_numbers<[1], [0], [0], [1], [0, 0, 1, 1], [], []>} : vector<10x672xf32>, vector<672x128xf32>, vector<10x128xf32> -> vector<10x128xf32>
    %8 = arith.addf %2, %7 : vector<10x128xf32>
    %c1 = arith.constant 1 : index
    %c0_10 = arith.constant 0 : index
    %c0_11 = arith.constant 0 : index
    %9 = vector.load %arg6[%c1, %c0_10, %c0_11] : memref<4x10x672xf32, #tpu.memory_space<vmem>>, vector<1x10x672xf32>
    %10 = vector.shape_cast %9 : vector<1x10x672xf32> to vector<10x672xf32>
    %c1_12 = arith.constant 1 : index
    %c0_13 = arith.constant 0 : index
    %c0_14 = arith.constant 0 : index
    %11 = vector.load %arg10[%c1_12, %c0_13, %c0_14] : memref<4x672x128xf32, #tpu.memory_space<vmem>>, vector<1x672x128xf32>
    %12 = vector.shape_cast %11 : vector<1x672x128xf32> to vector<672x128xf32>
    %cst_15 = arith.constant dense<0.000000e+00> : vector<10x128xf32>
    %13 = tpu.matmul %10, %12, %cst_15 {dimension_numbers = #tpu.dot_dimension_numbers<[1], [0], [0], [1], [0, 0, 1, 1], [], []>} : vector<10x672xf32>, vector<672x128xf32>, vector<10x128xf32> -> vector<10x128xf32>
    %14 = arith.addf %8, %13 : vector<10x128xf32>
    %c2 = arith.constant 2 : index
    %c0_16 = arith.constant 0 : index
    %c0_17 = arith.constant 0 : index
    %15 = vector.load %arg6[%c2, %c0_16, %c0_17] : memref<4x10x672xf32, #tpu.memory_space<vmem>>, vector<1x10x672xf32>
    %16 = vector.shape_cast %15 : vector<1x10x672xf32> to vector<10x672xf32>
    %c2_18 = arith.constant 2 : index
    %c0_19 = arith.constant 0 : index
    %c0_20 = arith.constant 0 : index
    %17 = vector.load %arg10[%c2_18, %c0_19, %c0_20] : memref<4x672x128xf32, #tpu.memory_space<vmem>>, vector<1x672x128xf32>
    %18 = vector.shape_cast %17 : vector<1x672x128xf32> to vector<672x128xf32>
    %cst_21 = arith.constant dense<0.000000e+00> : vector<10x128xf32>
    %19 = tpu.matmul %16, %18, %cst_21 {dimension_numbers = #tpu.dot_dimension_numbers<[1], [0], [0], [1], [0, 0, 1, 1], [], []>} : vector<10x672xf32>, vector<672x128xf32>, vector<10x128xf32> -> vector<10x128xf32>
    %20 = arith.addf %14, %19 : vector<10x128xf32>
    %c3 = arith.constant 3 : index
    %c0_22 = arith.constant 0 : index
    %c0_23 = arith.constant 0 : index
    %21 = vector.load %arg6[%c3, %c0_22, %c0_23] : memref<4x10x672xf32, #tpu.memory_space<vmem>>, vector<1x10x672xf32>
    %22 = vector.shape_cast %21 : vector<1x10x672xf32> to vector<10x672xf32>
    %c3_24 = arith.constant 3 : index
    %c0_25 = arith.constant 0 : index
    %c0_26 = arith.constant 0 : index
    %23 = vector.load %arg10[%c3_24, %c0_25, %c0_26] : memref<4x672x128xf32, #tpu.memory_space<vmem>>, vector<1x672x128xf32>
    %24 = vector.shape_cast %23 : vector<1x672x128xf32> to vector<672x128xf32>
    %cst_27 = arith.constant dense<0.000000e+00> : vector<10x128xf32>
    %25 = tpu.matmul %22, %24, %cst_27 {dimension_numbers = #tpu.dot_dimension_numbers<[1], [0], [0], [1], [0, 0, 1, 1], [], []>} : vector<10x672xf32>, vector<672x128xf32>, vector<10x128xf32> -> vector<10x128xf32>
    %26 = arith.addf %20, %25 : vector<10x128xf32>
    %c0_28 = arith.constant 0 : index
    %c0_29 = arith.constant 0 : index
    %27 = vector.load %arg7[%c0_28, %c0_29] : memref<10x1xf32, #tpu.memory_space<vmem>>, vector<10x1xf32>
    %28 = vector.broadcast %27 : vector<10x1xf32> to vector<10x128xf32>
    %29 = arith.addf %26, %28 : vector<10x128xf32>
    %cst_30 = arith.constant dense<0xFF800000> : vector<128xf32>
    %30 = vector.multi_reduction <maximumf>, %29, %cst_30 [0] : vector<10x128xf32> to vector<128xf32>
    %31 = vector.shape_cast %30 : vector<128xf32> to vector<1x128xf32>
    %32 = vector.broadcast %31 : vector<1x128xf32> to vector<10x128xf32>
    %33 = arith.subf %29, %32 : vector<10x128xf32>
    %34 = math.exp %33 : vector<10x128xf32>
    %cst_31 = arith.constant dense<0.000000e+00> : vector<128xf32>
    %35 = vector.multi_reduction <add>, %34, %cst_31 [0] : vector<10x128xf32> to vector<128xf32>
    %36 = vector.shape_cast %35 : vector<128xf32> to vector<1x128xf32>
    %37 = tpu.reciprocal %36 {approx = true} : vector<1x128xf32> -> vector<1x128xf32>
    %38 = arith.mulf %36, %37 : vector<1x128xf32>
    %cst_32 = arith.constant 2.000000e+00 : f32
    %39 = vector.broadcast %cst_32 : f32 to vector<1x128xf32>
    %40 = arith.subf %39, %38 : vector<1x128xf32>
    %41 = arith.mulf %37, %40 : vector<1x128xf32>
    %42 = vector.broadcast %41 : vector<1x128xf32> to vector<10x128xf32>
    %43 = arith.mulf %34, %42 : vector<10x128xf32>
    %c0_33 = arith.constant 0 : index
    %c0_34 = arith.constant 0 : index
    %44 = vector.load %arg8[%c0_33, %c0_34] : memref<10x128xf32, #tpu.memory_space<vmem>>, vector<10x128xf32>
    tpu.vector_store %arg8[%c0_33, %c0_34], %43 {strides = array<i32>} : memref<10x128xf32, #tpu.memory_space<vmem>>, vector<10x128xf32>,
    return
  }
  func.func @transform_0(%arg0: i32) -> i32 {
    %c0_i32 = arith.constant 0 : i32
    %c0_i32_0 = arith.constant 0 : i32
    return %c0_i32 : i32
  }
  func.func @transform_1(%arg0: i32) -> i32 {
    %c0_i32 = arith.constant 0 : i32
    %c0_i32_0 = arith.constant 0 : i32
    return %c0_i32 : i32
  }
  func.func @transform_2(%arg0: i32) -> i32 {
    %c0_i32 = arith.constant 0 : i32
    %c0_i32_0 = arith.constant 0 : i32
    return %c0_i32 : i32
  }
  func.func @transform_3(%arg0: i32) -> i32 {
    %c0_i32 = arith.constant 0 : i32
    %c0_i32_0 = arith.constant 0 : i32
    return %c0_i32 : i32
  }
  func.func @transform_4(%arg0: i32) -> (i32, i32) {
    %c0_i32 = arith.constant 0 : i32
    %c0_i32_0 = arith.constant 0 : i32
    return %c0_i32, %arg0 : i32, i32
  }
  func.func @transform_5(%arg0: i32) -> (i32, i32, i32) {
    %c0_i32 = arith.constant 0 : i32
    %c0_i32_0 = arith.constant 0 : i32
    %c0_i32_1 = arith.constant 0 : i32
    %c0_i32_2 = arith.constant 0 : i32
    return %c0_i32, %c0_i32_0, %c0_i32_1 : i32, i32, i32
  }
  func.func @transform_6(%arg0: i32) -> (i32, i32) {
    %c0_i32 = arith.constant 0 : i32
    %c0_i32_0 = arith.constant 0 : i32
    %c0_i32_1 = arith.constant 0 : i32
    return %c0_i32, %c0_i32_0 : i32, i32
  }
  func.func @transform_7(%arg0: i32) -> (i32, i32) {
    %c0_i32 = arith.constant 0 : i32
    %c0_i32_0 = arith.constant 0 : i32
    return %c0_i32, %arg0 : i32, i32
  }
}

</mosaic_0001>

<llo_original>
// kernel: tpu_custom_call.1
$region0: #{tpu_custom_call.1}
  #allocation0 [shape = 'u32[]', space=smem, size = 0x4, offset = 0x4, fixed_abs, tag = 'smem constant byte address 0x4 - core index']
  #allocation1 [shape = 'u32[72,128]{1,0:T(1,128)}', space=vmem, size = 0x9000, scoped, tag = 'internal scratch']
  #allocation2 [shape = 'f32[10,736,128]{2,1,0:T(8,128)}', space=vmem, size = 0x398000, scoped, tag = 'scratch operand']
  #allocation3 [shape = 'f32[4,672,128]{2,1,0:T(8,128)}', space=vmem, size = 0x150000, scoped, tag = 'scratch operand']
  %s0 = inlined_call_operand.vmem [shape: f32[90], index: 0, kind: input, shape index: {}]
  %s1 = inlined_call_operand.vmem [shape: f32[10], index: 1, kind: input, shape index: {}]
  %s2 = inlined_call_operand.vmem [shape: f32[360], index: 2, kind: input, shape index: {}]
  %s3 = inlined_call_operand.vmem [shape: f32[4], index: 3, kind: input, shape index: {}]
  %s4 = inlined_call_operand.hbm [shape: f32[800,128], index: 4, kind: input, shape index: {}]
  %s5 = inlined_call_operand.vmem [shape: f32[4,10,672], index: 5, kind: input, shape index: {}]
  %s6 = inlined_call_operand.vmem [shape: f32[10,1], index: 6, kind: input, shape index: {}]
  %s7 = inlined_call_operand.hbm [shape: f32[10,128], index: 7, kind: output, shape index: {}]
  %s8 = sld [smem:[#allocation0]]
  $region79: #{tpu_custom_call.1} parent=0
    _
  %s10 = ssub.s32 1, %s8
  %s11 = scalar_select 0, %s10, %s8
  $region1: #{tpu_custom_call.1} parent=0
    #allocation4 [shape = 'u8[512]{0}', space=smem, size = 0x200, scoped, tag = 'input window, operand 0, single buffered']
    #allocation5 [shape = 's32[1]{0}', space=sflag, size = 0x4, scoped, tag = 'scoped memory for tpu_custom_call.1']
    #allocation6 [shape = 's32[1]{0}', space=sflag, size = 0x4, scoped, tag = 'scoped memory for tpu_custom_call.1']
    #allocation7 [shape = 's32[1]{0}', space=sflag, size = 0x4, scoped, tag = 'scoped memory for tpu_custom_call.1']
    #allocation8 [shape = 'u8[512]{0}', space=smem, size = 0x200, scoped, tag = 'input window, operand 1, single buffered']
    #allocation9 [shape = 's32[1]{0}', space=sflag, size = 0x4, scoped, tag = 'scoped memory for tpu_custom_call.1']
    #allocation10 [shape = 'u8[1536]{0}', space=smem, size = 0x600, scoped, tag = 'input window, operand 2, single buffered']
    #allocation11 [shape = 'u8[512]{0}', space=smem, size = 0x200, scoped, tag = 'input window, operand 3, single buffered']
    #allocation12 [shape = 's32[1]{0}', space=sflag, size = 0x4, scoped, tag = 'scoped memory for tpu_custom_call.1']
    #allocation13 [shape = 'u8[409600]{0}', space=vmem, size = 0x64000, scoped, tag = 'input window, operand 4, single buffered']
    #allocation14 [shape = 'u8[8192]{0}', space=vmem, size = 0x2000, scoped, tag = 'output window, operand 0, single buffered']
    %12 = vsyncpa [#allocation7], 0
    %13 = vsyncpa [#allocation9], 0
    %14 = vsyncpa [#allocation12], 0
    %15 = vsyncpa [#allocation5], 0
    %16 = vsyncpa [#allocation6], 0
    // Predicated region
    $region2: #{tpu_custom_call.1} parent=1 // pred_check
      _
    $region3: #{tpu_custom_call.1} parent=1 // pred_check_branch
      %18 = sbr.rel (0) target = $region5
    $region4: #{tpu_custom_call.1} parent=1 // pred_region
      %20 = vsyncadd [#allocation7], 0
      %s22 = sshll.u32 %s0, 4
      %s23 = int_to_ptr.vmem [resolvable:$true] %s22
      %25 = dma.vmem_to_smem %s23, 16, [#allocation4], [#allocation7]
    $region5: #{tpu_custom_call.1} parent=1 // pred_fallthru
      _
    // Predicated region
    $region6: #{tpu_custom_call.1} parent=1 // pred_check
      _
    $region7: #{tpu_custom_call.1} parent=1 // pred_check_branch
      %27 = sbr.rel (0) target = $region9
    $region8: #{tpu_custom_call.1} parent=1 // pred_region
      %29 = vsyncadd [#allocation9], 0
      %s31 = sshll.u32 %s1, 4
      %s32 = int_to_ptr.vmem [resolvable:$true] %s31
      %34 = dma.vmem_to_smem %s32, 16, [#allocation8], [#allocation9]
    $region9: #{tpu_custom_call.1} parent=1 // pred_fallthru
      _
    // Predicated region
    $region10: #{tpu_custom_call.1} parent=1 // pred_check
      _
    $region11: #{tpu_custom_call.1} parent=1 // pred_check_branch
      %36 = sbr.rel (0) target = $region13
    $region12: #{tpu_custom_call.1} parent=1 // pred_region
      %38 = vsyncadd [#allocation9], 0
      %s40 = sshll.u32 %s2, 4
      %s41 = int_to_ptr.vmem [resolvable:$true] %s40
      %43 = dma.vmem_to_smem %s41, 48, [#allocation10], [#allocation9]
    $region13: #{tpu_custom_call.1} parent=1 // pred_fallthru
      _
    // Predicated region
    $region14: #{tpu_custom_call.1} parent=1 // pred_check
      _
    $region15: #{tpu_custom_call.1} parent=1 // pred_check_branch
      %45 = sbr.rel (0) target = $region17
    $region16: #{tpu_custom_call.1} parent=1 // pred_region
      %47 = vsyncadd [#allocation12], 0
      %s49 = sshll.u32 %s3, 4
      %s50 = int_to_ptr.vmem [resolvable:$true] %s49
      %52 = dma.vmem_to_smem %s50, 16, [#allocation11], [#allocation12]
    $region17: #{tpu_custom_call.1} parent=1 // pred_fallthru
      _
    // Predicated region
    $region18: #{tpu_custom_call.1} parent=1 // pred_check
      _
    $region19: #{tpu_custom_call.1} parent=1 // pred_check_branch
      %54 = sbr.rel (0) target = $region21
    $region20: #{tpu_custom_call.1} parent=1 // pred_region
      %56 = vsyncadd [#allocation5], 0
      %s57 = sshll.u32 %s4, 4
      %s58 = int_to_ptr.hbm [resolvable:$true] %s57
      %s59 = sshll.u32 [#allocation13], 4
      %s60 = int_to_ptr.vmem [resolvable:$true] %s59
      %65 = dma.hbm_to_vmem [thread:$0]  %s58, 12800, %s60, [#allocation5], 128, 128, 8
    $region21: #{tpu_custom_call.1} parent=1 // pred_fallthru
      _
    // Predicated region
    $region22: #{tpu_custom_call.1} parent=1 // pred_check
      _
    $region23: #{tpu_custom_call.1} parent=1 // pred_check_branch
      %67 = sbr.rel (0) target = $region25
    $region24: #{tpu_custom_call.1} parent=1 // pred_region
      _
    $region25: #{tpu_custom_call.1} parent=1 // pred_fallthru
      _
    // Predicated region
    $region26: #{tpu_custom_call.1} parent=1 // pred_check
      _
    $region27: #{tpu_custom_call.1} parent=1 // pred_check_branch
      %69 = sbr.rel (0) target = $region29
    $region28: #{tpu_custom_call.1} parent=1 // pred_region
      _
    $region29: #{tpu_custom_call.1} parent=1 // pred_fallthru
      _
    // Predicated region
    $region30: #{tpu_custom_call.1} parent=1 // pred_check
      _
    $region31: #{tpu_custom_call.1} parent=1 // pred_check_branch
      %71 = sbr.rel (0) target = $region33
    $region32: #{tpu_custom_call.1} parent=1 // pred_region
      %73 = dma.done [#allocation7], 16
    $region33: #{tpu_custom_call.1} parent=1 // pred_fallthru
      _
    // Predicated region
    $region34: #{tpu_custom_call.1} parent=1 // pred_check
      _
    $region35: #{tpu_custom_call.1} parent=1 // pred_check_branch
      %75 = sbr.rel (0) target = $region37
    $region36: #{tpu_custom_call.1} parent=1 // pred_region
      %77 = dma.done [#allocation9], 16
    $region37: #{tpu_custom_call.1} parent=1 // pred_fallthru
      _
    // Predicated region
    $region38: #{tpu_custom_call.1} parent=1 // pred_check
      _
    $region39: #{tpu_custom_call.1} parent=1 // pred_check_branch
      %79 = sbr.rel (0) target = $region41
    $region40: #{tpu_custom_call.1} parent=1 // pred_region
      %81 = dma.done [#allocation9], 48
    $region41: #{tpu_custom_call.1} parent=1 // pred_fallthru
      _
    // Predicated region
    $region42: #{tpu_custom_call.1} parent=1 // pred_check
      _
    $region43: #{tpu_custom_call.1} parent=1 // pred_check_branch
      %83 = sbr.rel (0) target = $region45
    $region44: #{tpu_custom_call.1} parent=1 // pred_region
      %85 = dma.done [#allocation12], 16
    $region45: #{tpu_custom_call.1} parent=1 // pred_fallthru
      _
    // Predicated region
    $region46: #{tpu_custom_call.1} parent=1 // pred_check
      _
    $region47: #{tpu_custom_call.1} parent=1 // pred_check_branch
      %87 = sbr.rel (0) target = $region49
    $region48: #{tpu_custom_call.1} parent=1 // pred_region
      %89 = dma.done [#allocation5], 12800
    $region49: #{tpu_custom_call.1} parent=1 // pred_fallthru
      _
    %90 = sfence
    loop: start=0, step=1, limit=23
    $region50: #{tpu_custom_call.1} parent=1 // loop_pre_header
      _
    $region51: #{tpu_custom_call.1} parent=1 // loop_header
      %s92 = sphi 0, %s96
      %p93 = scmp.ge.s32.totalorder %s92, 23
    $region52: #{tpu_custom_call.1} parent=1 // loop_header_branch
      %95 = sbr.rel (%p93) target = $region56
    $region53: #{tpu_custom_call.1} parent=1 // loop_body
      %s97 = smul.u32 %s92, 32
      %s98 = scalar_lea.vmem [#allocation13], %s97
      %v99 = vld [vmem:[%s98] sm:$0xff]
      %v100 = vld [vmem:[%s98 + $0x8] sm:$0xff]
      %v101 = vld [vmem:[%s98 + $0x10] sm:$0xff]
      %v102 = vld [vmem:[%s98 + $0x18] sm:$0xff]
      %v103 = vld [vmem:[%s98 + $0x20] sm:$0xff]
      %v104 = vld [vmem:[%s98 + $0x28] sm:$0xff]
      %v105 = vld [vmem:[%s98 + $0x30] sm:$0xff]
      %v106 = vld [vmem:[%s98 + $0x38] sm:$0xff]
      %v107 = vld [vmem:[%s98 + $0x40] sm:$0xff]
      %v108 = vld [vmem:[%s98 + $0x48] sm:$0xff]
      %v109 = vld [vmem:[%s98 + $0x50] sm:$0xff]
      %v110 = vld [vmem:[%s98 + $0x58] sm:$0xff]
      %s111 = sld [smem:[#allocation4]]
      %v112 = vstv %s111
      %v113 = vmul.f32 %v99, %v112
      %v114 = vmul.f32 %v100, %v112
      %v115 = vmul.f32 %v101, %v112
      %v116 = vmul.f32 %v102, %v112
      %s117 = sld [smem:[#allocation4 + $0x1]]
      %v118 = vstv %s117
      %v119 = vmul.f32 %v99, %v118
      %v120 = vmul.f32 %v100, %v118
      %v121 = vmul.f32 %v101, %v118
      %v122 = vmul.f32 %v102, %v118
      %v123 = vmul.f32 %v103, %v118
      %vm129 = vcmask 1046528
      %v130 = vrot.slane %v119, 1
      %v131 = vrot.slane %v120, 1
      %v132 = vsel %vm129, %v130, %v131
      %v133 = vrot.slane %v121, 1
      %v134 = vsel %vm129, %v131, %v133
      %v135 = vrot.slane %v122, 1
      %v136 = vsel %vm129, %v133, %v135
      %v137 = vrot.slane %v123, 1
      %v138 = vsel %vm129, %v135, %v137
      %v143 = vadd.f32 %v113, %v132
      %v144 = vadd.f32 %v114, %v134
      %v145 = vadd.f32 %v115, %v136
      %v146 = vadd.f32 %v116, %v138
      %s147 = sld [smem:[#allocation4 + $0x2]]
      %v148 = vstv %s147
      %v149 = vmul.f32 %v99, %v148
      %v150 = vmul.f32 %v100, %v148
      %v151 = vmul.f32 %v101, %v148
      %v152 = vmul.f32 %v102, %v148
      %v153 = vmul.f32 %v103, %v148
      %vm159 = vcmask 1045504
      %v160 = vrot.slane %v149, 2
      %v161 = vrot.slane %v150, 2
      %v162 = vsel %vm159, %v160, %v161
      %v163 = vrot.slane %v151, 2
      %v164 = vsel %vm159, %v161, %v163
      %v165 = vrot.slane %v152, 2
      %v166 = vsel %vm159, %v163, %v165
      %v167 = vrot.slane %v153, 2
      %v168 = vsel %vm159, %v165, %v167
      %v173 = vadd.f32 %v143, %v162
      %v174 = vadd.f32 %v144, %v164
      %v175 = vadd.f32 %v145, %v166
      %v176 = vadd.f32 %v146, %v168
      %s177 = sld [smem:[#allocation4 + $0x3]]
      %v178 = vstv %s177
      %v179 = vmul.f32 %v102, %v178
      %v180 = vmul.f32 %v103, %v178
      %v181 = vmul.f32 %v104, %v178
      %v182 = vmul.f32 %v105, %v178
      %v183 = vmul.f32 %v106, %v178
      %vm189 = vcmask 1043456
      %v190 = vrot.slane %v179, 4
      %v191 = vrot.slane %v180, 4
      %v192 = vsel %vm189, %v190, %v191
      %v193 = vrot.slane %v181, 4
      %v194 = vsel %vm189, %v191, %v193
      %v195 = vrot.slane %v182, 4
      %v196 = vsel %vm189, %v193, %v195
      %v197 = vrot.slane %v183, 4
      %v198 = vsel %vm189, %v195, %v197
      %v203 = vadd.f32 %v173, %v192
      %v204 = vadd.f32 %v174, %v194
      %v205 = vadd.f32 %v175, %v196
      %v206 = vadd.f32 %v176, %v198
      %s207 = sld [smem:[#allocation4 + $0x4]]
      %v208 = vstv %s207
      %v209 = vmul.f32 %v102, %v208
      %v210 = vmul.f32 %v103, %v208
      %v211 = vmul.f32 %v104, %v208
      %v212 = vmul.f32 %v105, %v208
      %v213 = vmul.f32 %v106, %v208
      %vm219 = vcmask 1042432
      %v220 = vrot.slane %v209, 5
      %v221 = vrot.slane %v210, 5
      %v222 = vsel %vm219, %v220, %v221
      %v223 = vrot.slane %v211, 5
      %v224 = vsel %vm219, %v221, %v223
      %v225 = vrot.slane %v212, 5
      %v226 = vsel %vm219, %v223, %v225
      %v227 = vrot.slane %v213, 5
      %v228 = vsel %vm219, %v225, %v227
      %v233 = vadd.f32 %v203, %v222
      %v234 = vadd.f32 %v204, %v224
      %v235 = vadd.f32 %v205, %v226
      %v236 = vadd.f32 %v206, %v228
      %s237 = sld [smem:[#allocation4 + $0x5]]
      %v238 = vstv %s237
      %v239 = vmul.f32 %v102, %v238
      %v240 = vmul.f32 %v103, %v238
      %v241 = vmul.f32 %v104, %v238
      %v242 = vmul.f32 %v105, %v238
      %v243 = vmul.f32 %v106, %v238
      %vm249 = vcmask 1041408
      %v250 = vrot.slane %v239, 6
      %v251 = vrot.slane %v240, 6
      %v252 = vsel %vm249, %v250, %v251
      %v253 = vrot.slane %v241, 6
      %v254 = vsel %vm249, %v251, %v253
      %v255 = vrot.slane %v242, 6
      %v256 = vsel %vm249, %v253, %v255
      %v257 = vrot.slane %v243, 6
      %v258 = vsel %vm249, %v255, %v257
      %v263 = vadd.f32 %v233, %v252
      %v264 = vadd.f32 %v234, %v254
      %v265 = vadd.f32 %v235, %v256
      %v266 = vadd.f32 %v236, %v258
      %s267 = sld [smem:[#allocation4 + $0x6]]
      %v268 = vstv %s267
      %v269 = vmul.f32 %v106, %v268
      %v270 = vmul.f32 %v107, %v268
      %v271 = vmul.f32 %v108, %v268
      %v272 = vmul.f32 %v109, %v268
      %v273 = vadd.f32 %v263, %v269
      %v274 = vadd.f32 %v264, %v270
      %v275 = vadd.f32 %v265, %v271
      %v276 = vadd.f32 %v266, %v272
      %s277 = sld [smem:[#allocation4 + $0x7]]
      %v278 = vstv %s277
      %v279 = vmul.f32 %v106, %v278
      %v280 = vmul.f32 %v107, %v278
      %v281 = vmul.f32 %v108, %v278
      %v282 = vmul.f32 %v109, %v278
      %v283 = vmul.f32 %v110, %v278
      %v289 = vrot.slane %v279, 1
      %v290 = vrot.slane %v280, 1
      %v291 = vsel %vm129, %v289, %v290
      %v292 = vrot.slane %v281, 1
      %v293 = vsel %vm129, %v290, %v292
      %v294 = vrot.slane %v282, 1
      %v295 = vsel %vm129, %v292, %v294
      %v296 = vrot.slane %v283, 1
      %v297 = vsel %vm129, %v294, %v296
      %v302 = vadd.f32 %v273, %v291
      %v303 = vadd.f32 %v274, %v293
      %v304 = vadd.f32 %v275, %v295
      %v305 = vadd.f32 %v276, %v297
      %s306 = sld [smem:[#allocation4 + $0x8]]
      %v307 = vstv %s306
      %v308 = vmul.f32 %v106, %v307
      %v309 = vmul.f32 %v107, %v307
      %v310 = vmul.f32 %v108, %v307
      %v311 = vmul.f32 %v109, %v307
      %v312 = vmul.f32 %v110, %v307
      %v318 = vrot.slane %v308, 2
      %v319 = vrot.slane %v309, 2
      %v320 = vsel %vm159, %v318, %v319
      %v321 = vrot.slane %v310, 2
      %v322 = vsel %vm159, %v319, %v321
      %v323 = vrot.slane %v311, 2
      %v324 = vsel %vm159, %v321, %v323
      %v325 = vrot.slane %v312, 2
      %v326 = vsel %vm159, %v323, %v325
      %v331 = vadd.f32 %v302, %v320
      %v332 = vadd.f32 %v303, %v322
      %v333 = vadd.f32 %v304, %v324
      %v334 = vadd.f32 %v305, %v326
      %s335 = sld [smem:[#allocation8]]
      %v336 = vstv %s335
      %v337 = vadd.f32 %v331, %v336
      %v338 = vadd.f32 %v332, %v336
      %v339 = vadd.f32 %v333, %v336
      %v340 = vadd.f32 %v334, %v336
      %v341 = vmax.f32 %v337, 0.0
      %v342 = vmax.f32 %v338, 0.0
      %v343 = vmax.f32 %v339, 0.0
      %v344 = vmax.f32 %v340, 0.0
      %s345 = scalar_lea.vmem [#allocation2], %s97
      %346 = vst [vmem:[%s345] sm:$0xff] %v341
      %347 = vst [vmem:[%s345 + $0x8] sm:$0xff] %v342
      %348 = vst [vmem:[%s345 + $0x10] sm:$0xff] %v343
      %349 = vst [vmem:[%s345 + $0x18] sm:$0xff] %v344
      %s350 = sld [smem:[#allocation4 + $0x9]]
      %v351 = vstv %s350
      %v352 = vmul.f32 %v99, %v351
      %v353 = vmul.f32 %v100, %v351
      %v354 = vmul.f32 %v101, %v351
      %v355 = vmul.f32 %v102, %v351
      %s356 = sld [smem:[#allocation4 + $0xa]]
      %v357 = vstv %s356
      %v358 = vmul.f32 %v99, %v357
      %v359 = vmul.f32 %v100, %v357
      %v360 = vmul.f32 %v101, %v357
      %v361 = vmul.f32 %v102, %v357
      %v362 = vmul.f32 %v103, %v357
      %v368 = vrot.slane %v358, 1
      %v369 = vrot.slane %v359, 1
      %v370 = vsel %vm129, %v368, %v369
      %v371 = vrot.slane %v360, 1
      %v372 = vsel %vm129, %v369, %v371
      %v373 = vrot.slane %v361, 1
      %v374 = vsel %vm129, %v371, %v373
      %v375 = vrot.slane %v362, 1
      %v376 = vsel %vm129, %v373, %v375
      %v381 = vadd.f32 %v352, %v370
      %v382 = vadd.f32 %v353, %v372
      %v383 = vadd.f32 %v354, %v374
      %v384 = vadd.f32 %v355, %v376
      %s385 = sld [smem:[#allocation4 + $0xb]]
      %v386 = vstv %s385
      %v387 = vmul.f32 %v99, %v386
      %v388 = vmul.f32 %v100, %v386
      %v389 = vmul.f32 %v101, %v386
      %v390 = vmul.f32 %v102, %v386
      %v391 = vmul.f32 %v103, %v386
      %v397 = vrot.slane %v387, 2
      %v398 = vrot.slane %v388, 2
      %v399 = vsel %vm159, %v397, %v398
      %v400 = vrot.slane %v389, 2
      %v401 = vsel %vm159, %v398, %v400
      %v402 = vrot.slane %v390, 2
      %v403 = vsel %vm159, %v400, %v402
      %v404 = vrot.slane %v391, 2
      %v405 = vsel %vm159, %v402, %v404
      %v410 = vadd.f32 %v381, %v399
      %v411 = vadd.f32 %v382, %v401
      %v412 = vadd.f32 %v383, %v403
      %v413 = vadd.f32 %v384, %v405
      %s414 = sld [smem:[#allocation4 + $0xc]]
      %v415 = vstv %s414
      %v416 = vmul.f32 %v102, %v415
      %v417 = vmul.f32 %v103, %v415
      %v418 = vmul.f32 %v104, %v415
      %v419 = vmul.f32 %v105, %v415
      %v420 = vmul.f32 %v106, %v415
      %v426 = vrot.slane %v416, 4
      %v427 = vrot.slane %v417, 4
      %v428 = vsel %vm189, %v426, %v427
      %v429 = vrot.slane %v418, 4
      %v430 = vsel %vm189, %v427, %v429
      %v431 = vrot.slane %v419, 4
      %v432 = vsel %vm189, %v429, %v431
      %v433 = vrot.slane %v420, 4
      %v434 = vsel %vm189, %v431, %v433
      %v439 = vadd.f32 %v410, %v428
      %v440 = vadd.f32 %v411, %v430
      %v441 = vadd.f32 %v412, %v432
      %v442 = vadd.f32 %v413, %v434
      %s443 = sld [smem:[#allocation4 + $0xd]]
      %v444 = vstv %s443
      %v445 = vmul.f32 %v102, %v444
      %v446 = vmul.f32 %v103, %v444
      %v447 = vmul.f32 %v104, %v444
      %v448 = vmul.f32 %v105, %v444
      %v449 = vmul.f32 %v106, %v444
      %v455 = vrot.slane %v445, 5
      %v456 = vrot.slane %v446, 5
      %v457 = vsel %vm219, %v455, %v456
      %v458 = vrot.slane %v447, 5
      %v459 = vsel %vm219, %v456, %v458
      %v460 = vrot.slane %v448, 5
      %v461 = vsel %vm219, %v458, %v460
      %v462 = vrot.slane %v449, 5
      %v463 = vsel %vm219, %v460, %v462
      %v468 = vadd.f32 %v439, %v457
      %v469 = vadd.f32 %v440, %v459
      %v470 = vadd.f32 %v441, %v461
      %v471 = vadd.f32 %v442, %v463
      %s472 = sld [smem:[#allocation4 + $0xe]]
      %v473 = vstv %s472
      %v474 = vmul.f32 %v102, %v473
      %v475 = vmul.f32 %v103, %v473
      %v476 = vmul.f32 %v104, %v473
      %v477 = vmul.f32 %v105, %v473
      %v478 = vmul.f32 %v106, %v473
      %v484 = vrot.slane %v474, 6
      %v485 = vrot.slane %v475, 6
      %v486 = vsel %vm249, %v484, %v485
      %v487 = vrot.slane %v476, 6
      %v488 = vsel %vm249, %v485, %v487
      %v489 = vrot.slane %v477, 6
      %v490 = vsel %vm249, %v487, %v489
      %v491 = vrot.slane %v478, 6
      %v492 = vsel %vm249, %v489, %v491
      %v497 = vadd.f32 %v468, %v486
      %v498 = vadd.f32 %v469, %v488
      %v499 = vadd.f32 %v470, %v490
      %v500 = vadd.f32 %v471, %v492
      %s501 = sld [smem:[#allocation4 + $0xf]]
      %v502 = vstv %s501
      %v503 = vmul.f32 %v106, %v502
      %v504 = vmul.f32 %v107, %v502
      %v505 = vmul.f32 %v108, %v502
      %v506 = vmul.f32 %v109, %v502
      %v507 = vadd.f32 %v497, %v503
      %v508 = vadd.f32 %v498, %v504
      %v509 = vadd.f32 %v499, %v505
      %v510 = vadd.f32 %v500, %v506
      %s511 = sld [smem:[#allocation4 + $0x10]]
      %v512 = vstv %s511
      %v513 = vmul.f32 %v106, %v512
      %v514 = vmul.f32 %v107, %v512
      %v515 = vmul.f32 %v108, %v512
      %v516 = vmul.f32 %v109, %v512
      %v517 = vmul.f32 %v110, %v512
      %v523 = vrot.slane %v513, 1
      %v524 = vrot.slane %v514, 1
      %v525 = vsel %vm129, %v523, %v524
      %v526 = vrot.slane %v515, 1
      %v527 = vsel %vm129, %v524, %v526
      %v528 = vrot.slane %v516, 1
      %v529 = vsel %vm129, %v526, %v528
      %v530 = vrot.slane %v517, 1
      %v531 = vsel %vm129, %v528, %v530
      %v536 = vadd.f32 %v507, %v525
      %v537 = vadd.f32 %v508, %v527
      %v538 = vadd.f32 %v509, %v529
      %v539 = vadd.f32 %v510, %v531
      %s540 = sld [smem:[#allocation4 + $0x11]]
      %v541 = vstv %s540
      %v542 = vmul.f32 %v106, %v541
      %v543 = vmul.f32 %v107, %v541
      %v544 = vmul.f32 %v108, %v541
      %v545 = vmul.f32 %v109, %v541
      %v546 = vmul.f32 %v110, %v541
      %v552 = vrot.slane %v542, 2
      %v553 = vrot.slane %v543, 2
      %v554 = vsel %vm159, %v552, %v553
      %v555 = vrot.slane %v544, 2
      %v556 = vsel %vm159, %v553, %v555
      %v557 = vrot.slane %v545, 2
      %v558 = vsel %vm159, %v555, %v557
      %v559 = vrot.slane %v546, 2
      %v560 = vsel %vm159, %v557, %v559
      %v565 = vadd.f32 %v536, %v554
      %v566 = vadd.f32 %v537, %v556
      %v567 = vadd.f32 %v538, %v558
      %v568 = vadd.f32 %v539, %v560
      %s569 = sld [smem:[#allocation8 + $0x1]]
      %v570 = vstv %s569
      %v571 = vadd.f32 %v565, %v570
      %v572 = vadd.f32 %v566, %v570
      %v573 = vadd.f32 %v567, %v570
      %v574 = vadd.f32 %v568, %v570
      %v575 = vmax.f32 %v571, 0.0
      %v576 = vmax.f32 %v572, 0.0
      %v577 = vmax.f32 %v573, 0.0
      %v578 = vmax.f32 %v574, 0.0
      %s579 = sadd.s32 %s97, 736
      %s580 = scalar_lea.vmem [#allocation2], %s579
      %581 = vst [vmem:[%s580] sm:$0xff] %v575
      %582 = vst [vmem:[%s580 + $0x8] sm:$0xff] %v576
      %583 = vst [vmem:[%s580 + $0x10] sm:$0xff] %v577
      %584 = vst [vmem:[%s580 + $0x18] sm:$0xff] %v578
      %s585 = sld [smem:[#allocation4 + $0x12]]
      %v586 = vstv %s585
      %v587 = vmul.f32 %v99, %v586
      %v588 = vmul.f32 %v100, %v586
      %v589 = vmul.f32 %v101, %v586
      %v590 = vmul.f32 %v102, %v586
      %s591 = sld [smem:[#allocation4 + $0x13]]
      %v592 = vstv %s591
      %v593 = vmul.f32 %v99, %v592
      %v594 = vmul.f32 %v100, %v592
      %v595 = vmul.f32 %v101, %v592
      %v596 = vmul.f32 %v102, %v592
      %v597 = vmul.f32 %v103, %v592
      %v603 = vrot.slane %v593, 1
      %v604 = vrot.slane %v594, 1
      %v605 = vsel %vm129, %v603, %v604
      %v606 = vrot.slane %v595, 1
      %v607 = vsel %vm129, %v604, %v606
      %v608 = vrot.slane %v596, 1
      %v609 = vsel %vm129, %v606, %v608
      %v610 = vrot.slane %v597, 1
      %v611 = vsel %vm129, %v608, %v610
      %v616 = vadd.f32 %v587, %v605
      %v617 = vadd.f32 %v588, %v607
      %v618 = vadd.f32 %v589, %v609
      %v619 = vadd.f32 %v590, %v611
      %s620 = sld [smem:[#allocation4 + $0x14]]
      %v621 = vstv %s620
      %v622 = vmul.f32 %v99, %v621
      %v623 = vmul.f32 %v100, %v621
      %v624 = vmul.f32 %v101, %v621
      %v625 = vmul.f32 %v102, %v621
      %v626 = vmul.f32 %v103, %v621
      %v632 = vrot.slane %v622, 2
      %v633 = vrot.slane %v623, 2
      %v634 = vsel %vm159, %v632, %v633
      %v635 = vrot.slane %v624, 2
      %v636 = vsel %vm159, %v633, %v635
      %v637 = vrot.slane %v625, 2
      %v638 = vsel %vm159, %v635, %v637
      %v639 = vrot.slane %v626, 2
      %v640 = vsel %vm159, %v637, %v639
      %v645 = vadd.f32 %v616, %v634
      %v646 = vadd.f32 %v617, %v636
      %v647 = vadd.f32 %v618, %v638
      %v648 = vadd.f32 %v619, %v640
      %s649 = sld [smem:[#allocation4 + $0x15]]
      %v650 = vstv %s649
      %v651 = vmul.f32 %v102, %v650
      %v652 = vmul.f32 %v103, %v650
      %v653 = vmul.f32 %v104, %v650
      %v654 = vmul.f32 %v105, %v650
      %v655 = vmul.f32 %v106, %v650
      %v661 = vrot.slane %v651, 4
      %v662 = vrot.slane %v652, 4
      %v663 = vsel %vm189, %v661, %v662
      %v664 = vrot.slane %v653, 4
      %v665 = vsel %vm189, %v662, %v664
      %v666 = vrot.slane %v654, 4
      %v667 = vsel %vm189, %v664, %v666
      %v668 = vrot.slane %v655, 4
      %v669 = vsel %vm189, %v666, %v668
      %v674 = vadd.f32 %v645, %v663
      %v675 = vadd.f32 %v646, %v665
      %v676 = vadd.f32 %v647, %v667
      %v677 = vadd.f32 %v648, %v669
      %s678 = sld [smem:[#allocation4 + $0x16]]
      %v679 = vstv %s678
      %v680 = vmul.f32 %v102, %v679
      %v681 = vmul.f32 %v103, %v679
      %v682 = vmul.f32 %v104, %v679
      %v683 = vmul.f32 %v105, %v679
      %v684 = vmul.f32 %v106, %v679
      %v690 = vrot.slane %v680, 5
      %v691 = vrot.slane %v681, 5
      %v692 = vsel %vm219, %v690, %v691
      %v693 = vrot.slane %v682, 5
      %v694 = vsel %vm219, %v691, %v693
      %v695 = vrot.slane %v683, 5
      %v696 = vsel %vm219, %v693, %v695
      %v697 = vrot.slane %v684, 5
      %v698 = vsel %vm219, %v695, %v697
      %v703 = vadd.f32 %v674, %v692
      %v704 = vadd.f32 %v675, %v694
      %v705 = vadd.f32 %v676, %v696
      %v706 = vadd.f32 %v677, %v698
      %s707 = sld [smem:[#allocation4 + $0x17]]
      %v708 = vstv %s707
      %v709 = vmul.f32 %v102, %v708
      %v710 = vmul.f32 %v103, %v708
      %v711 = vmul.f32 %v104, %v708
      %v712 = vmul.f32 %v105, %v708
      %v713 = vmul.f32 %v106, %v708
      %v719 = vrot.slane %v709, 6
      %v720 = vrot.slane %v710, 6
      %v721 = vsel %vm249, %v719, %v720
      %v722 = vrot.slane %v711, 6
      %v723 = vsel %vm249, %v720, %v722
      %v724 = vrot.slane %v712, 6
      %v725 = vsel %vm249, %v722, %v724
      %v726 = vrot.slane %v713, 6
      %v727 = vsel %vm249, %v724, %v726
      %v732 = vadd.f32 %v703, %v721
      %v733 = vadd.f32 %v704, %v723
      %v734 = vadd.f32 %v705, %v725
      %v735 = vadd.f32 %v706, %v727
      %s736 = sld [smem:[#allocation4 + $0x18]]
      %v737 = vstv %s736
      %v738 = vmul.f32 %v106, %v737
      %v739 = vmul.f32 %v107, %v737
      %v740 = vmul.f32 %v108, %v737
      %v741 = vmul.f32 %v109, %v737
      %v742 = vadd.f32 %v732, %v738
      %v743 = vadd.f32 %v733, %v739
      %v744 = vadd.f32 %v734, %v740
      %v745 = vadd.f32 %v735, %v741
      %s746 = sld [smem:[#allocation4 + $0x19]]
      %v747 = vstv %s746
      %v748 = vmul.f32 %v106, %v747
      %v749 = vmul.f32 %v107, %v747
      %v750 = vmul.f32 %v108, %v747
      %v751 = vmul.f32 %v109, %v747
      %v752 = vmul.f32 %v110, %v747
      %v758 = vrot.slane %v748, 1
      %v759 = vrot.slane %v749, 1
      %v760 = vsel %vm129, %v758, %v759
      %v761 = vrot.slane %v750, 1
      %v762 = vsel %vm129, %v759, %v761
      %v763 = vrot.slane %v751, 1
      %v764 = vsel %vm129, %v761, %v763
      %v765 = vrot.slane %v752, 1
      %v766 = vsel %vm129, %v763, %v765
      %v771 = vadd.f32 %v742, %v760
      %v772 = vadd.f32 %v743, %v762
      %v773 = vadd.f32 %v744, %v764
      %v774 = vadd.f32 %v745, %v766
      %s775 = sld [smem:[#allocation4 + $0x1a]]
      %v776 = vstv %s775
      %v777 = vmul.f32 %v106, %v776
      %v778 = vmul.f32 %v107, %v776
      %v779 = vmul.f32 %v108, %v776
      %v780 = vmul.f32 %v109, %v776
      %v781 = vmul.f32 %v110, %v776
      %v787 = vrot.slane %v777, 2
      %v788 = vrot.slane %v778, 2
      %v789 = vsel %vm159, %v787, %v788
      %v790 = vrot.slane %v779, 2
      %v791 = vsel %vm159, %v788, %v790
      %v792 = vrot.slane %v780, 2
      %v793 = vsel %vm159, %v790, %v792
      %v794 = vrot.slane %v781, 2
      %v795 = vsel %vm159, %v792, %v794
      %v800 = vadd.f32 %v771, %v789
      %v801 = vadd.f32 %v772, %v791
      %v802 = vadd.f32 %v773, %v793
      %v803 = vadd.f32 %v774, %v795
      %s804 = sld [smem:[#allocation8 + $0x2]]
      %v805 = vstv %s804
      %v806 = vadd.f32 %v800, %v805
      %v807 = vadd.f32 %v801, %v805
      %v808 = vadd.f32 %v802, %v805
      %v809 = vadd.f32 %v803, %v805
      %v810 = vmax.f32 %v806, 0.0
      %v811 = vmax.f32 %v807, 0.0
      %v812 = vmax.f32 %v808, 0.0
      %v813 = vmax.f32 %v809, 0.0
      %s814 = sadd.s32 %s97, 1472
      %s815 = scalar_lea.vmem [#allocation2], %s814
      %816 = vst [vmem:[%s815] sm:$0xff] %v810
      %817 = vst [vmem:[%s815 + $0x8] sm:$0xff] %v811
      %818 = vst [vmem:[%s815 + $0x10] sm:$0xff] %v812
      %819 = vst [vmem:[%s815 + $0x18] sm:$0xff] %v813
      %s820 = sld [smem:[#allocation4 + $0x1b]]
      %v821 = vstv %s820
      %v822 = vmul.f32 %v99, %v821
      %v823 = vmul.f32 %v100, %v821
      %v824 = vmul.f32 %v101, %v821
      %v825 = vmul.f32 %v102, %v821
      %s826 = sld [smem:[#allocation4 + $0x1c]]
      %v827 = vstv %s826
      %v828 = vmul.f32 %v99, %v827
      %v829 = vmul.f32 %v100, %v827
      %v830 = vmul.f32 %v101, %v827
      %v831 = vmul.f32 %v102, %v827
      %v832 = vmul.f32 %v103, %v827
      %v838 = vrot.slane %v828, 1
      %v839 = vrot.slane %v829, 1
      %v840 = vsel %vm129, %v838, %v839
      %v841 = vrot.slane %v830, 1
      %v842 = vsel %vm129, %v839, %v841
      %v843 = vrot.slane %v831, 1
      %v844 = vsel %vm129, %v841, %v843
      %v845 = vrot.slane %v832, 1
      %v846 = vsel %vm129, %v843, %v845
      %v851 = vadd.f32 %v822, %v840
      %v852 = vadd.f32 %v823, %v842
      %v853 = vadd.f32 %v824, %v844
      %v854 = vadd.f32 %v825, %v846
      %s855 = sld [smem:[#allocation4 + $0x1d]]
      %v856 = vstv %s855
      %v857 = vmul.f32 %v99, %v856
      %v858 = vmul.f32 %v100, %v856
      %v859 = vmul.f32 %v101, %v856
      %v860 = vmul.f32 %v102, %v856
      %v861 = vmul.f32 %v103, %v856
      %v867 = vrot.slane %v857, 2
      %v868 = vrot.slane %v858, 2
      %v869 = vsel %vm159, %v867, %v868
      %v870 = vrot.slane %v859, 2
      %v871 = vsel %vm159, %v868, %v870
      %v872 = vrot.slane %v860, 2
      %v873 = vsel %vm159, %v870, %v872
      %v874 = vrot.slane %v861, 2
      %v875 = vsel %vm159, %v872, %v874
      %v880 = vadd.f32 %v851, %v869
      %v881 = vadd.f32 %v852, %v871
      %v882 = vadd.f32 %v853, %v873
      %v883 = vadd.f32 %v854, %v875
      %s884 = sld [smem:[#allocation4 + $0x1e]]
      %v885 = vstv %s884
      %v886 = vmul.f32 %v102, %v885
      %v887 = vmul.f32 %v103, %v885
      %v888 = vmul.f32 %v104, %v885
      %v889 = vmul.f32 %v105, %v885
      %v890 = vmul.f32 %v106, %v885
      %v896 = vrot.slane %v886, 4
      %v897 = vrot.slane %v887, 4
      %v898 = vsel %vm189, %v896, %v897
      %v899 = vrot.slane %v888, 4
      %v900 = vsel %vm189, %v897, %v899
      %v901 = vrot.slane %v889, 4
      %v902 = vsel %vm189, %v899, %v901
      %v903 = vrot.slane %v890, 4
      %v904 = vsel %vm189, %v901, %v903
      %v909 = vadd.f32 %v880, %v898
      %v910 = vadd.f32 %v881, %v900
      %v911 = vadd.f32 %v882, %v902
      %v912 = vadd.f32 %v883, %v904
      %s913 = sld [smem:[#allocation4 + $0x1f]]
      %v914 = vstv %s913
      %v915 = vmul.f32 %v102, %v914
      %v916 = vmul.f32 %v103, %v914
      %v917 = vmul.f32 %v104, %v914
      %v918 = vmul.f32 %v105, %v914
      %v919 = vmul.f32 %v106, %v914
      %v925 = vrot.slane %v915, 5
      %v926 = vrot.slane %v916, 5
      %v927 = vsel %vm219, %v925, %v926
      %v928 = vrot.slane %v917, 5
      %v929 = vsel %vm219, %v926, %v928
      %v930 = vrot.slane %v918, 5
      %v931 = vsel %vm219, %v928, %v930
      %v932 = vrot.slane %v919, 5
      %v933 = vsel %vm219, %v930, %v932
      %v938 = vadd.f32 %v909, %v927
      %v939 = vadd.f32 %v910, %v929
      %v940 = vadd.f32 %v911, %v931
      %v941 = vadd.f32 %v912, %v933
      %s942 = sld [smem:[#allocation4 + $0x20]]
      %v943 = vstv %s942
      %v944 = vmul.f32 %v102, %v943
      %v945 = vmul.f32 %v103, %v943
      %v946 = vmul.f32 %v104, %v943
      %v947 = vmul.f32 %v105, %v943
      %v948 = vmul.f32 %v106, %v943
      %v954 = vrot.slane %v944, 6
      %v955 = vrot.slane %v945, 6
      %v956 = vsel %vm249, %v954, %v955
      %v957 = vrot.slane %v946, 6
      %v958 = vsel %vm249, %v955, %v957
      %v959 = vrot.slane %v947, 6
      %v960 = vsel %vm249, %v957, %v959
      %v961 = vrot.slane %v948, 6
      %v962 = vsel %vm249, %v959, %v961
      %v967 = vadd.f32 %v938, %v956
      %v968 = vadd.f32 %v939, %v958
      %v969 = vadd.f32 %v940, %v960
      %v970 = vadd.f32 %v941, %v962
      %s971 = sld [smem:[#allocation4 + $0x21]]
      %v972 = vstv %s971
      %v973 = vmul.f32 %v106, %v972
      %v974 = vmul.f32 %v107, %v972
      %v975 = vmul.f32 %v108, %v972
      %v976 = vmul.f32 %v109, %v972
      %v977 = vadd.f32 %v967, %v973
      %v978 = vadd.f32 %v968, %v974
      %v979 = vadd.f32 %v969, %v975
      %v980 = vadd.f32 %v970, %v976
      %s981 = sld [smem:[#allocation4 + $0x22]]
      %v982 = vstv %s981
      %v983 = vmul.f32 %v106, %v982
      %v984 = vmul.f32 %v107, %v982
      %v985 = vmul.f32 %v108, %v982
      %v986 = vmul.f32 %v109, %v982
      %v987 = vmul.f32 %v110, %v982
      %v993 = vrot.slane %v983, 1
      %v994 = vrot.slane %v984, 1
      %v995 = vsel %vm129, %v993, %v994
      %v996 = vrot.slane %v985, 1
      %v997 = vsel %vm129, %v994, %v996
      %v998 = vrot.slane %v986, 1
      %v999 = vsel %vm129, %v996, %v998
      %v1000 = vrot.slane %v987, 1
      %v1001 = vsel %vm129, %v998, %v1000
      %v1006 = vadd.f32 %v977, %v995
      %v1007 = vadd.f32 %v978, %v997
      %v1008 = vadd.f32 %v979, %v999
      %v1009 = vadd.f32 %v980, %v1001
      %s1010 = sld [smem:[#allocation4 + $0x23]]
      %v1011 = vstv %s1010
      %v1012 = vmul.f32 %v106, %v1011
      %v1013 = vmul.f32 %v107, %v1011
      %v1014 = vmul.f32 %v108, %v1011
      %v1015 = vmul.f32 %v109, %v1011
      %v1016 = vmul.f32 %v110, %v1011
      %v1022 = vrot.slane %v1012, 2
      %v1023 = vrot.slane %v1013, 2
      %v1024 = vsel %vm159, %v1022, %v1023
      %v1025 = vrot.slane %v1014, 2
      %v1026 = vsel %vm159, %v1023, %v1025
      %v1027 = vrot.slane %v1015, 2
      %v1028 = vsel %vm159, %v1025, %v1027
      %v1029 = vrot.slane %v1016, 2
      %v1030 = vsel %vm159, %v1027, %v1029
      %v1035 = vadd.f32 %v1006, %v1024
      %v1036 = vadd.f32 %v1007, %v1026
      %v1037 = vadd.f32 %v1008, %v1028
      %v1038 = vadd.f32 %v1009, %v1030
      %s1039 = sld [smem:[#allocation8 + $0x3]]
      %v1040 = vstv %s1039
      %v1041 = vadd.f32 %v1035, %v1040
      %v1042 = vadd.f32 %v1036, %v1040
      %v1043 = vadd.f32 %v1037, %v1040
      %v1044 = vadd.f32 %v1038, %v1040
      %v1045 = vmax.f32 %v1041, 0.0
      %v1046 = vmax.f32 %v1042, 0.0
      %v1047 = vmax.f32 %v1043, 0.0
      %v1048 = vmax.f32 %v1044, 0.0
      %s1049 = sadd.s32 %s97, 2208
      %s1050 = scalar_lea.vmem [#allocation2], %s1049
      %1051 = vst [vmem:[%s1050] sm:$0xff] %v1045
      %1052 = vst [vmem:[%s1050 + $0x8] sm:$0xff] %v1046
      %1053 = vst [vmem:[%s1050 + $0x10] sm:$0xff] %v1047
      %1054 = vst [vmem:[%s1050 + $0x18] sm:$0xff] %v1048
      %s1055 = sld [smem:[#allocation4 + $0x24]]
      %v1056 = vstv %s1055
      %v1057 = vmul.f32 %v99, %v1056
      %v1058 = vmul.f32 %v100, %v1056
      %v1059 = vmul.f32 %v101, %v1056
      %v1060 = vmul.f32 %v102, %v1056
      %s1061 = sld [smem:[#allocation4 + $0x25]]
      %v1062 = vstv %s1061
      %v1063 = vmul.f32 %v99, %v1062
      %v1064 = vmul.f32 %v100, %v1062
      %v1065 = vmul.f32 %v101, %v1062
      %v1066 = vmul.f32 %v102, %v1062
      %v1067 = vmul.f32 %v103, %v1062
      %v1073 = vrot.slane %v1063, 1
      %v1074 = vrot.slane %v1064, 1
      %v1075 = vsel %vm129, %v1073, %v1074
      %v1076 = vrot.slane %v1065, 1
      %v1077 = vsel %vm129, %v1074, %v1076
      %v1078 = vrot.slane %v1066, 1
      %v1079 = vsel %vm129, %v1076, %v1078
      %v1080 = vrot.slane %v1067, 1
      %v1081 = vsel %vm129, %v1078, %v1080
      %v1086 = vadd.f32 %v1057, %v1075
      %v1087 = vadd.f32 %v1058, %v1077
      %v1088 = vadd.f32 %v1059, %v1079
      %v1089 = vadd.f32 %v1060, %v1081
      %s1090 = sld [smem:[#allocation4 + $0x26]]
      %v1091 = vstv %s1090
      %v1092 = vmul.f32 %v99, %v1091
      %v1093 = vmul.f32 %v100, %v1091
      %v1094 = vmul.f32 %v101, %v1091
      %v1095 = vmul.f32 %v102, %v1091
      %v1096 = vmul.f32 %v103, %v1091
      %v1102 = vrot.slane %v1092, 2
      %v1103 = vrot.slane %v1093, 2
      %v1104 = vsel %vm159, %v1102, %v1103
      %v1105 = vrot.slane %v1094, 2
      %v1106 = vsel %vm159, %v1103, %v1105
      %v1107 = vrot.slane %v1095, 2
      %v1108 = vsel %vm159, %v1105, %v1107
      %v1109 = vrot.slane %v1096, 2
      %v1110 = vsel %vm159, %v1107, %v1109
      %v1115 = vadd.f32 %v1086, %v1104
      %v1116 = vadd.f32 %v1087, %v1106
      %v1117 = vadd.f32 %v1088, %v1108
      %v1118 = vadd.f32 %v1089, %v1110
      %s1119 = sld [smem:[#allocation4 + $0x27]]
      %v1120 = vstv %s1119
      %v1121 = vmul.f32 %v102, %v1120
      %v1122 = vmul.f32 %v103, %v1120
      %v1123 = vmul.f32 %v104, %v1120
      %v1124 = vmul.f32 %v105, %v1120
      %v1125 = vmul.f32 %v106, %v1120
      %v1131 = vrot.slane %v1121, 4
      %v1132 = vrot.slane %v1122, 4
      %v1133 = vsel %vm189, %v1131, %v1132
      %v1134 = vrot.slane %v1123, 4
      %v1135 = vsel %vm189, %v1132, %v1134
      %v1136 = vrot.slane %v1124, 4
      %v1137 = vsel %vm189, %v1134, %v1136
      %v1138 = vrot.slane %v1125, 4
      %v1139 = vsel %vm189, %v1136, %v1138
      %v1144 = vadd.f32 %v1115, %v1133
      %v1145 = vadd.f32 %v1116, %v1135
      %v1146 = vadd.f32 %v1117, %v1137
      %v1147 = vadd.f32 %v1118, %v1139
      %s1148 = sld [smem:[#allocation4 + $0x28]]
      %v1149 = vstv %s1148
      %v1150 = vmul.f32 %v102, %v1149
      %v1151 = vmul.f32 %v103, %v1149
      %v1152 = vmul.f32 %v104, %v1149
      %v1153 = vmul.f32 %v105, %v1149
      %v1154 = vmul.f32 %v106, %v1149
      %v1160 = vrot.slane %v1150, 5
      %v1161 = vrot.slane %v1151, 5
      %v1162 = vsel %vm219, %v1160, %v1161
      %v1163 = vrot.slane %v1152, 5
      %v1164 = vsel %vm219, %v1161, %v1163
      %v1165 = vrot.slane %v1153, 5
      %v1166 = vsel %vm219, %v1163, %v1165
      %v1167 = vrot.slane %v1154, 5
      %v1168 = vsel %vm219, %v1165, %v1167
      %v1173 = vadd.f32 %v1144, %v1162
      %v1174 = vadd.f32 %v1145, %v1164
      %v1175 = vadd.f32 %v1146, %v1166
      %v1176 = vadd.f32 %v1147, %v1168
      %s1177 = sld [smem:[#allocation4 + $0x29]]
      %v1178 = vstv %s1177
      %v1179 = vmul.f32 %v102, %v1178
      %v1180 = vmul.f32 %v103, %v1178
      %v1181 = vmul.f32 %v104, %v1178
      %v1182 = vmul.f32 %v105, %v1178
      %v1183 = vmul.f32 %v106, %v1178
      %v1189 = vrot.slane %v1179, 6
      %v1190 = vrot.slane %v1180, 6
      %v1191 = vsel %vm249, %v1189, %v1190
      %v1192 = vrot.slane %v1181, 6
      %v1193 = vsel %vm249, %v1190, %v1192
      %v1194 = vrot.slane %v1182, 6
      %v1195 = vsel %vm249, %v1192, %v1194
      %v1196 = vrot.slane %v1183, 6
      %v1197 = vsel %vm249, %v1194, %v1196
      %v1202 = vadd.f32 %v1173, %v1191
      %v1203 = vadd.f32 %v1174, %v1193
      %v1204 = vadd.f32 %v1175, %v1195
      %v1205 = vadd.f32 %v1176, %v1197
      %s1206 = sld [smem:[#allocation4 + $0x2a]]
      %v1207 = vstv %s1206
      %v1208 = vmul.f32 %v106, %v1207
      %v1209 = vmul.f32 %v107, %v1207
      %v1210 = vmul.f32 %v108, %v1207
      %v1211 = vmul.f32 %v109, %v1207
      %v1212 = vadd.f32 %v1202, %v1208
      %v1213 = vadd.f32 %v1203, %v1209
      %v1214 = vadd.f32 %v1204, %v1210
      %v1215 = vadd.f32 %v1205, %v1211
      %s1216 = sld [smem:[#allocation4 + $0x2b]]
      %v1217 = vstv %s1216
      %v1218 = vmul.f32 %v106, %v1217
      %v1219 = vmul.f32 %v107, %v1217
      %v1220 = vmul.f32 %v108, %v1217
      %v1221 = vmul.f32 %v109, %v1217
      %v1222 = vmul.f32 %v110, %v1217
      %v1228 = vrot.slane %v1218, 1
      %v1229 = vrot.slane %v1219, 1
      %v1230 = vsel %vm129, %v1228, %v1229
      %v1231 = vrot.slane %v1220, 1
      %v1232 = vsel %vm129, %v1229, %v1231
      %v1233 = vrot.slane %v1221, 1
      %v1234 = vsel %vm129, %v1231, %v1233
      %v1235 = vrot.slane %v1222, 1
      %v1236 = vsel %vm129, %v1233, %v1235
      %v1241 = vadd.f32 %v1212, %v1230
      %v1242 = vadd.f32 %v1213, %v1232
      %v1243 = vadd.f32 %v1214, %v1234
      %v1244 = vadd.f32 %v1215, %v1236
      %s1245 = sld [smem:[#allocation4 + $0x2c]]
      %v1246 = vstv %s1245
      %v1247 = vmul.f32 %v106, %v1246
      %v1248 = vmul.f32 %v107, %v1246
      %v1249 = vmul.f32 %v108, %v1246
      %v1250 = vmul.f32 %v109, %v1246
      %v1251 = vmul.f32 %v110, %v1246
      %v1257 = vrot.slane %v1247, 2
      %v1258 = vrot.slane %v1248, 2
      %v1259 = vsel %vm159, %v1257, %v1258
      %v1260 = vrot.slane %v1249, 2
      %v1261 = vsel %vm159, %v1258, %v1260
      %v1262 = vrot.slane %v1250, 2
      %v1263 = vsel %vm159, %v1260, %v1262
      %v1264 = vrot.slane %v1251, 2
      %v1265 = vsel %vm159, %v1262, %v1264
      %v1270 = vadd.f32 %v1241, %v1259
      %v1271 = vadd.f32 %v1242, %v1261
      %v1272 = vadd.f32 %v1243, %v1263
      %v1273 = vadd.f32 %v1244, %v1265
      %s1274 = sld [smem:[#allocation8 + $0x4]]
      %v1275 = vstv %s1274
      %v1276 = vadd.f32 %v1270, %v1275
      %v1277 = vadd.f32 %v1271, %v1275
      %v1278 = vadd.f32 %v1272, %v1275
      %v1279 = vadd.f32 %v1273, %v1275
      %v1280 = vmax.f32 %v1276, 0.0
      %v1281 = vmax.f32 %v1277, 0.0
      %v1282 = vmax.f32 %v1278, 0.0
      %v1283 = vmax.f32 %v1279, 0.0
      %s1284 = sadd.s32 %s97, 2944
      %s1285 = scalar_lea.vmem [#allocation2], %s1284
      %1286 = vst [vmem:[%s1285] sm:$0xff] %v1280
      %1287 = vst [vmem:[%s1285 + $0x8] sm:$0xff] %v1281
      %1288 = vst [vmem:[%s1285 + $0x10] sm:$0xff] %v1282
      %1289 = vst [vmem:[%s1285 + $0x18] sm:$0xff] %v1283
      %s1290 = sld [smem:[#allocation4 + $0x2d]]
      %v1291 = vstv %s1290
      %v1292 = vmul.f32 %v99, %v1291
      %v1293 = vmul.f32 %v100, %v1291
      %v1294 = vmul.f32 %v101, %v1291
      %v1295 = vmul.f32 %v102, %v1291
      %s1296 = sld [smem:[#allocation4 + $0x2e]]
      %v1297 = vstv %s1296
      %v1298 = vmul.f32 %v99, %v1297
      %v1299 = vmul.f32 %v100, %v1297
      %v1300 = vmul.f32 %v101, %v1297
      %v1301 = vmul.f32 %v102, %v1297
      %v1302 = vmul.f32 %v103, %v1297
      %v1308 = vrot.slane %v1298, 1
      %v1309 = vrot.slane %v1299, 1
      %v1310 = vsel %vm129, %v1308, %v1309
      %v1311 = vrot.slane %v1300, 1
      %v1312 = vsel %vm129, %v1309, %v1311
      %v1313 = vrot.slane %v1301, 1
      %v1314 = vsel %vm129, %v1311, %v1313
      %v1315 = vrot.slane %v1302, 1
      %v1316 = vsel %vm129, %v1313, %v1315
      %v1321 = vadd.f32 %v1292, %v1310
      %v1322 = vadd.f32 %v1293, %v1312
      %v1323 = vadd.f32 %v1294, %v1314
      %v1324 = vadd.f32 %v1295, %v1316
      %s1325 = sld [smem:[#allocation4 + $0x2f]]
      %v1326 = vstv %s1325
      %v1327 = vmul.f32 %v99, %v1326
      %v1328 = vmul.f32 %v100, %v1326
      %v1329 = vmul.f32 %v101, %v1326
      %v1330 = vmul.f32 %v102, %v1326
      %v1331 = vmul.f32 %v103, %v1326
      %v1337 = vrot.slane %v1327, 2
      %v1338 = vrot.slane %v1328, 2
      %v1339 = vsel %vm159, %v1337, %v1338
      %v1340 = vrot.slane %v1329, 2
      %v1341 = vsel %vm159, %v1338, %v1340
      %v1342 = vrot.slane %v1330, 2
      %v1343 = vsel %vm159, %v1340, %v1342
      %v1344 = vrot.slane %v1331, 2
      %v1345 = vsel %vm159, %v1342, %v1344
      %v1350 = vadd.f32 %v1321, %v1339
      %v1351 = vadd.f32 %v1322, %v1341
      %v1352 = vadd.f32 %v1323, %v1343
      %v1353 = vadd.f32 %v1324, %v1345
      %s1354 = sld [smem:[#allocation4 + $0x30]]
      %v1355 = vstv %s1354
      %v1356 = vmul.f32 %v102, %v1355
      %v1357 = vmul.f32 %v103, %v1355
      %v1358 = vmul.f32 %v104, %v1355
      %v1359 = vmul.f32 %v105, %v1355
      %v1360 = vmul.f32 %v106, %v1355
      %v1366 = vrot.slane %v1356, 4
      %v1367 = vrot.slane %v1357, 4
      %v1368 = vsel %vm189, %v1366, %v1367
      %v1369 = vrot.slane %v1358, 4
      %v1370 = vsel %vm189, %v1367, %v1369
      %v1371 = vrot.slane %v1359, 4
      %v1372 = vsel %vm189, %v1369, %v1371
      %v1373 = vrot.slane %v1360, 4
      %v1374 = vsel %vm189, %v1371, %v1373
      %v1379 = vadd.f32 %v1350, %v1368
      %v1380 = vadd.f32 %v1351, %v1370
      %v1381 = vadd.f32 %v1352, %v1372
      %v1382 = vadd.f32 %v1353, %v1374
      %s1383 = sld [smem:[#allocation4 + $0x31]]
      %v1384 = vstv %s1383
      %v1385 = vmul.f32 %v102, %v1384
      %v1386 = vmul.f32 %v103, %v1384
      %v1387 = vmul.f32 %v104, %v1384
      %v1388 = vmul.f32 %v105, %v1384
      %v1389 = vmul.f32 %v106, %v1384
      %v1395 = vrot.slane %v1385, 5
      %v1396 = vrot.slane %v1386, 5
      %v1397 = vsel %vm219, %v1395, %v1396
      %v1398 = vrot.slane %v1387, 5
      %v1399 = vsel %vm219, %v1396, %v1398
      %v1400 = vrot.slane %v1388, 5
      %v1401 = vsel %vm219, %v1398, %v1400
      %v1402 = vrot.slane %v1389, 5
      %v1403 = vsel %vm219, %v1400, %v1402
      %v1408 = vadd.f32 %v1379, %v1397
      %v1409 = vadd.f32 %v1380, %v1399
      %v1410 = vadd.f32 %v1381, %v1401
      %v1411 = vadd.f32 %v1382, %v1403
      %s1412 = sld [smem:[#allocation4 + $0x32]]
      %v1413 = vstv %s1412
      %v1414 = vmul.f32 %v102, %v1413
      %v1415 = vmul.f32 %v103, %v1413
      %v1416 = vmul.f32 %v104, %v1413
      %v1417 = vmul.f32 %v105, %v1413
      %v1418 = vmul.f32 %v106, %v1413
      %v1424 = vrot.slane %v1414, 6
      %v1425 = vrot.slane %v1415, 6
      %v1426 = vsel %vm249, %v1424, %v1425
      %v1427 = vrot.slane %v1416, 6
      %v1428 = vsel %vm249, %v1425, %v1427
      %v1429 = vrot.slane %v1417, 6
      %v1430 = vsel %vm249, %v1427, %v1429
      %v1431 = vrot.slane %v1418, 6
      %v1432 = vsel %vm249, %v1429, %v1431
      %v1437 = vadd.f32 %v1408, %v1426
      %v1438 = vadd.f32 %v1409, %v1428
      %v1439 = vadd.f32 %v1410, %v1430
      %v1440 = vadd.f32 %v1411, %v1432
      %s1441 = sld [smem:[#allocation4 + $0x33]]
      %v1442 = vstv %s1441
      %v1443 = vmul.f32 %v106, %v1442
      %v1444 = vmul.f32 %v107, %v1442
      %v1445 = vmul.f32 %v108, %v1442
      %v1446 = vmul.f32 %v109, %v1442
      %v1447 = vadd.f32 %v1437, %v1443
      %v1448 = vadd.f32 %v1438, %v1444
      %v1449 = vadd.f32 %v1439, %v1445
      %v1450 = vadd.f32 %v1440, %v1446
      %s1451 = sld [smem:[#allocation4 + $0x34]]
      %v1452 = vstv %s1451
      %v1453 = vmul.f32 %v106, %v1452
      %v1454 = vmul.f32 %v107, %v1452
      %v1455 = vmul.f32 %v108, %v1452
      %v1456 = vmul.f32 %v109, %v1452
      %v1457 = vmul.f32 %v110, %v1452
      %v1463 = vrot.slane %v1453, 1
      %v1464 = vrot.slane %v1454, 1
      %v1465 = vsel %vm129, %v1463, %v1464
      %v1466 = vrot.slane %v1455, 1
      %v1467 = vsel %vm129, %v1464, %v1466
      %v1468 = vrot.slane %v1456, 1
      %v1469 = vsel %vm129, %v1466, %v1468
      %v1470 = vrot.slane %v1457, 1
      %v1471 = vsel %vm129, %v1468, %v1470
      %v1476 = vadd.f32 %v1447, %v1465
      %v1477 = vadd.f32 %v1448, %v1467
      %v1478 = vadd.f32 %v1449, %v1469
      %v1479 = vadd.f32 %v1450, %v1471
      %s1480 = sld [smem:[#allocation4 + $0x35]]
      %v1481 = vstv %s1480
      %v1482 = vmul.f32 %v106, %v1481
      %v1483 = vmul.f32 %v107, %v1481
      %v1484 = vmul.f32 %v108, %v1481
      %v1485 = vmul.f32 %v109, %v1481
      %v1486 = vmul.f32 %v110, %v1481
      %v1492 = vrot.slane %v1482, 2
      %v1493 = vrot.slane %v1483, 2
      %v1494 = vsel %vm159, %v1492, %v1493
      %v1495 = vrot.slane %v1484, 2
      %v1496 = vsel %vm159, %v1493, %v1495
      %v1497 = vrot.slane %v1485, 2
      %v1498 = vsel %vm159, %v1495, %v1497
      %v1499 = vrot.slane %v1486, 2
      %v1500 = vsel %vm159, %v1497, %v1499
      %v1505 = vadd.f32 %v1476, %v1494
      %v1506 = vadd.f32 %v1477, %v1496
      %v1507 = vadd.f32 %v1478, %v1498
      %v1508 = vadd.f32 %v1479, %v1500
      %s1509 = sld [smem:[#allocation8 + $0x5]]
      %v1510 = vstv %s1509
      %v1511 = vadd.f32 %v1505, %v1510
      %v1512 = vadd.f32 %v1506, %v1510
      %v1513 = vadd.f32 %v1507, %v1510
      %v1514 = vadd.f32 %v1508, %v1510
      %v1515 = vmax.f32 %v1511, 0.0
      %v1516 = vmax.f32 %v1512, 0.0
      %v1517 = vmax.f32 %v1513, 0.0
      %v1518 = vmax.f32 %v1514, 0.0
      %s1519 = sadd.s32 %s97, 3680
      %s1520 = scalar_lea.vmem [#allocation2], %s1519
      %1521 = vst [vmem:[%s1520] sm:$0xff] %v1515
      %1522 = vst [vmem:[%s1520 + $0x8] sm:$0xff] %v1516
      %1523 = vst [vmem:[%s1520 + $0x10] sm:$0xff] %v1517
      %1524 = vst [vmem:[%s1520 + $0x18] sm:$0xff] %v1518
      %s1525 = sld [smem:[#allocation4 + $0x36]]
      %v1526 = vstv %s1525
      %v1527 = vmul.f32 %v99, %v1526
      %v1528 = vmul.f32 %v100, %v1526
      %v1529 = vmul.f32 %v101, %v1526
      %v1530 = vmul.f32 %v102, %v1526
      %s1531 = sld [smem:[#allocation4 + $0x37]]
      %v1532 = vstv %s1531
      %v1533 = vmul.f32 %v99, %v1532
      %v1534 = vmul.f32 %v100, %v1532
      %v1535 = vmul.f32 %v101, %v1532
      %v1536 = vmul.f32 %v102, %v1532
      %v1537 = vmul.f32 %v103, %v1532
      %v1543 = vrot.slane %v1533, 1
      %v1544 = vrot.slane %v1534, 1
      %v1545 = vsel %vm129, %v1543, %v1544
      %v1546 = vrot.slane %v1535, 1
      %v1547 = vsel %vm129, %v1544, %v1546
      %v1548 = vrot.slane %v1536, 1
      %v1549 = vsel %vm129, %v1546, %v1548
      %v1550 = vrot.slane %v1537, 1
      %v1551 = vsel %vm129, %v1548, %v1550
      %v1556 = vadd.f32 %v1527, %v1545
      %v1557 = vadd.f32 %v1528, %v1547
      %v1558 = vadd.f32 %v1529, %v1549
      %v1559 = vadd.f32 %v1530, %v1551
      %s1560 = sld [smem:[#allocation4 + $0x38]]
      %v1561 = vstv %s1560
      %v1562 = vmul.f32 %v99, %v1561
      %v1563 = vmul.f32 %v100, %v1561
      %v1564 = vmul.f32 %v101, %v1561
      %v1565 = vmul.f32 %v102, %v1561
      %v1566 = vmul.f32 %v103, %v1561
      %v1572 = vrot.slane %v1562, 2
      %v1573 = vrot.slane %v1563, 2
      %v1574 = vsel %vm159, %v1572, %v1573
      %v1575 = vrot.slane %v1564, 2
      %v1576 = vsel %vm159, %v1573, %v1575
      %v1577 = vrot.slane %v1565, 2
      %v1578 = vsel %vm159, %v1575, %v1577
      %v1579 = vrot.slane %v1566, 2
      %v1580 = vsel %vm159, %v1577, %v1579
      %v1585 = vadd.f32 %v1556, %v1574
      %v1586 = vadd.f32 %v1557, %v1576
      %v1587 = vadd.f32 %v1558, %v1578
      %v1588 = vadd.f32 %v1559, %v1580
      %s1589 = sld [smem:[#allocation4 + $0x39]]
      %v1590 = vstv %s1589
      %v1591 = vmul.f32 %v102, %v1590
      %v1592 = vmul.f32 %v103, %v1590
      %v1593 = vmul.f32 %v104, %v1590
      %v1594 = vmul.f32 %v105, %v1590
      %v1595 = vmul.f32 %v106, %v1590
      %v1601 = vrot.slane %v1591, 4
      %v1602 = vrot.slane %v1592, 4
      %v1603 = vsel %vm189, %v1601, %v1602
      %v1604 = vrot.slane %v1593, 4
      %v1605 = vsel %vm189, %v1602, %v1604
      %v1606 = vrot.slane %v1594, 4
      %v1607 = vsel %vm189, %v1604, %v1606
      %v1608 = vrot.slane %v1595, 4
      %v1609 = vsel %vm189, %v1606, %v1608
      %v1614 = vadd.f32 %v1585, %v1603
      %v1615 = vadd.f32 %v1586, %v1605
      %v1616 = vadd.f32 %v1587, %v1607
      %v1617 = vadd.f32 %v1588, %v1609
      %s1618 = sld [smem:[#allocation4 + $0x3a]]
      %v1619 = vstv %s1618
      %v1620 = vmul.f32 %v102, %v1619
      %v1621 = vmul.f32 %v103, %v1619
      %v1622 = vmul.f32 %v104, %v1619
      %v1623 = vmul.f32 %v105, %v1619
      %v1624 = vmul.f32 %v106, %v1619
      %v1630 = vrot.slane %v1620, 5
      %v1631 = vrot.slane %v1621, 5
      %v1632 = vsel %vm219, %v1630, %v1631
      %v1633 = vrot.slane %v1622, 5
      %v1634 = vsel %vm219, %v1631, %v1633
      %v1635 = vrot.slane %v1623, 5
      %v1636 = vsel %vm219, %v1633, %v1635
      %v1637 = vrot.slane %v1624, 5
      %v1638 = vsel %vm219, %v1635, %v1637
      %v1643 = vadd.f32 %v1614, %v1632
      %v1644 = vadd.f32 %v1615, %v1634
      %v1645 = vadd.f32 %v1616, %v1636
      %v1646 = vadd.f32 %v1617, %v1638
      %s1647 = sld [smem:[#allocation4 + $0x3b]]
      %v1648 = vstv %s1647
      %v1649 = vmul.f32 %v102, %v1648
      %v1650 = vmul.f32 %v103, %v1648
      %v1651 = vmul.f32 %v104, %v1648
      %v1652 = vmul.f32 %v105, %v1648
      %v1653 = vmul.f32 %v106, %v1648
      %v1659 = vrot.slane %v1649, 6
      %v1660 = vrot.slane %v1650, 6
      %v1661 = vsel %vm249, %v1659, %v1660
      %v1662 = vrot.slane %v1651, 6
      %v1663 = vsel %vm249, %v1660, %v1662
      %v1664 = vrot.slane %v1652, 6
      %v1665 = vsel %vm249, %v1662, %v1664
      %v1666 = vrot.slane %v1653, 6
      %v1667 = vsel %vm249, %v1664, %v1666
      %v1672 = vadd.f32 %v1643, %v1661
      %v1673 = vadd.f32 %v1644, %v1663
      %v1674 = vadd.f32 %v1645, %v1665
      %v1675 = vadd.f32 %v1646, %v1667
      %s1676 = sld [smem:[#allocation4 + $0x3c]]
      %v1677 = vstv %s1676
      %v1678 = vmul.f32 %v106, %v1677
      %v1679 = vmul.f32 %v107, %v1677
      %v1680 = vmul.f32 %v108, %v1677
      %v1681 = vmul.f32 %v109, %v1677
      %v1682 = vadd.f32 %v1672, %v1678
      %v1683 = vadd.f32 %v1673, %v1679
      %v1684 = vadd.f32 %v1674, %v1680
      %v1685 = vadd.f32 %v1675, %v1681
      %s1686 = sld [smem:[#allocation4 + $0x3d]]
      %v1687 = vstv %s1686
      %v1688 = vmul.f32 %v106, %v1687
      %v1689 = vmul.f32 %v107, %v1687
      %v1690 = vmul.f32 %v108, %v1687
      %v1691 = vmul.f32 %v109, %v1687
      %v1692 = vmul.f32 %v110, %v1687
      %v1698 = vrot.slane %v1688, 1
      %v1699 = vrot.slane %v1689, 1
      %v1700 = vsel %vm129, %v1698, %v1699
      %v1701 = vrot.slane %v1690, 1
      %v1702 = vsel %vm129, %v1699, %v1701
      %v1703 = vrot.slane %v1691, 1
      %v1704 = vsel %vm129, %v1701, %v1703
      %v1705 = vrot.slane %v1692, 1
      %v1706 = vsel %vm129, %v1703, %v1705
      %v1711 = vadd.f32 %v1682, %v1700
      %v1712 = vadd.f32 %v1683, %v1702
      %v1713 = vadd.f32 %v1684, %v1704
      %v1714 = vadd.f32 %v1685, %v1706
      %s1715 = sld [smem:[#allocation4 + $0x3e]]
      %v1716 = vstv %s1715
      %v1717 = vmul.f32 %v106, %v1716
      %v1718 = vmul.f32 %v107, %v1716
      %v1719 = vmul.f32 %v108, %v1716
      %v1720 = vmul.f32 %v109, %v1716
      %v1721 = vmul.f32 %v110, %v1716
      %v1727 = vrot.slane %v1717, 2
      %v1728 = vrot.slane %v1718, 2
      %v1729 = vsel %vm159, %v1727, %v1728
      %v1730 = vrot.slane %v1719, 2
      %v1731 = vsel %vm159, %v1728, %v1730
      %v1732 = vrot.slane %v1720, 2
      %v1733 = vsel %vm159, %v1730, %v1732
      %v1734 = vrot.slane %v1721, 2
      %v1735 = vsel %vm159, %v1732, %v1734
      %v1740 = vadd.f32 %v1711, %v1729
      %v1741 = vadd.f32 %v1712, %v1731
      %v1742 = vadd.f32 %v1713, %v1733
      %v1743 = vadd.f32 %v1714, %v1735
      %s1744 = sld [smem:[#allocation8 + $0x6]]
      %v1745 = vstv %s1744
      %v1746 = vadd.f32 %v1740, %v1745
      %v1747 = vadd.f32 %v1741, %v1745
      %v1748 = vadd.f32 %v1742, %v1745
      %v1749 = vadd.f32 %v1743, %v1745
      %v1750 = vmax.f32 %v1746, 0.0
      %v1751 = vmax.f32 %v1747, 0.0
      %v1752 = vmax.f32 %v1748, 0.0
      %v1753 = vmax.f32 %v1749, 0.0
      %s1754 = sadd.s32 %s97, 4416
      %s1755 = scalar_lea.vmem [#allocation2], %s1754
      %1756 = vst [vmem:[%s1755] sm:$0xff] %v1750
      %1757 = vst [vmem:[%s1755 + $0x8] sm:$0xff] %v1751
      %1758 = vst [vmem:[%s1755 + $0x10] sm:$0xff] %v1752
      %1759 = vst [vmem:[%s1755 + $0x18] sm:$0xff] %v1753
      %s1760 = sld [smem:[#allocation4 + $0x3f]]
      %v1761 = vstv %s1760
      %v1762 = vmul.f32 %v99, %v1761
      %v1763 = vmul.f32 %v100, %v1761
      %v1764 = vmul.f32 %v101, %v1761
      %v1765 = vmul.f32 %v102, %v1761
      %s1766 = sld [smem:[#allocation4 + $0x40]]
      %v1767 = vstv %s1766
      %v1768 = vmul.f32 %v99, %v1767
      %v1769 = vmul.f32 %v100, %v1767
      %v1770 = vmul.f32 %v101, %v1767
      %v1771 = vmul.f32 %v102, %v1767
      %v1772 = vmul.f32 %v103, %v1767
      %v1778 = vrot.slane %v1768, 1
      %v1779 = vrot.slane %v1769, 1
      %v1780 = vsel %vm129, %v1778, %v1779
      %v1781 = vrot.slane %v1770, 1
      %v1782 = vsel %vm129, %v1779, %v1781
      %v1783 = vrot.slane %v1771, 1
      %v1784 = vsel %vm129, %v1781, %v1783
      %v1785 = vrot.slane %v1772, 1
      %v1786 = vsel %vm129, %v1783, %v1785
      %v1791 = vadd.f32 %v1762, %v1780
      %v1792 = vadd.f32 %v1763, %v1782
      %v1793 = vadd.f32 %v1764, %v1784
      %v1794 = vadd.f32 %v1765, %v1786
      %s1795 = sld [smem:[#allocation4 + $0x41]]
      %v1796 = vstv %s1795
      %v1797 = vmul.f32 %v99, %v1796
      %v1798 = vmul.f32 %v100, %v1796
      %v1799 = vmul.f32 %v101, %v1796
      %v1800 = vmul.f32 %v102, %v1796
      %v1801 = vmul.f32 %v103, %v1796
      %v1807 = vrot.slane %v1797, 2
      %v1808 = vrot.slane %v1798, 2
      %v1809 = vsel %vm159, %v1807, %v1808
      %v1810 = vrot.slane %v1799, 2
      %v1811 = vsel %vm159, %v1808, %v1810
      %v1812 = vrot.slane %v1800, 2
      %v1813 = vsel %vm159, %v1810, %v1812
      %v1814 = vrot.slane %v1801, 2
      %v1815 = vsel %vm159, %v1812, %v1814
      %v1820 = vadd.f32 %v1791, %v1809
      %v1821 = vadd.f32 %v1792, %v1811
      %v1822 = vadd.f32 %v1793, %v1813
      %v1823 = vadd.f32 %v1794, %v1815
      %s1824 = sld [smem:[#allocation4 + $0x42]]
      %v1825 = vstv %s1824
      %v1826 = vmul.f32 %v102, %v1825
      %v1827 = vmul.f32 %v103, %v1825
      %v1828 = vmul.f32 %v104, %v1825
      %v1829 = vmul.f32 %v105, %v1825
      %v1830 = vmul.f32 %v106, %v1825
      %v1836 = vrot.slane %v1826, 4
      %v1837 = vrot.slane %v1827, 4
      %v1838 = vsel %vm189, %v1836, %v1837
      %v1839 = vrot.slane %v1828, 4
      %v1840 = vsel %vm189, %v1837, %v1839
      %v1841 = vrot.slane %v1829, 4
      %v1842 = vsel %vm189, %v1839, %v1841
      %v1843 = vrot.slane %v1830, 4
      %v1844 = vsel %vm189, %v1841, %v1843
      %v1849 = vadd.f32 %v1820, %v1838
      %v1850 = vadd.f32 %v1821, %v1840
      %v1851 = vadd.f32 %v1822, %v1842
      %v1852 = vadd.f32 %v1823, %v1844
      %s1853 = sld [smem:[#allocation4 + $0x43]]
      %v1854 = vstv %s1853
      %v1855 = vmul.f32 %v102, %v1854
      %v1856 = vmul.f32 %v103, %v1854
      %v1857 = vmul.f32 %v104, %v1854
      %v1858 = vmul.f32 %v105, %v1854
      %v1859 = vmul.f32 %v106, %v1854
      %v1865 = vrot.slane %v1855, 5
      %v1866 = vrot.slane %v1856, 5
      %v1867 = vsel %vm219, %v1865, %v1866
      %v1868 = vrot.slane %v1857, 5
      %v1869 = vsel %vm219, %v1866, %v1868
      %v1870 = vrot.slane %v1858, 5
      %v1871 = vsel %vm219, %v1868, %v1870
      %v1872 = vrot.slane %v1859, 5
      %v1873 = vsel %vm219, %v1870, %v1872
      %v1878 = vadd.f32 %v1849, %v1867
      %v1879 = vadd.f32 %v1850, %v1869
      %v1880 = vadd.f32 %v1851, %v1871
      %v1881 = vadd.f32 %v1852, %v1873
      %s1882 = sld [smem:[#allocation4 + $0x44]]
      %v1883 = vstv %s1882
      %v1884 = vmul.f32 %v102, %v1883
      %v1885 = vmul.f32 %v103, %v1883
      %v1886 = vmul.f32 %v104, %v1883
      %v1887 = vmul.f32 %v105, %v1883
      %v1888 = vmul.f32 %v106, %v1883
      %v1894 = vrot.slane %v1884, 6
      %v1895 = vrot.slane %v1885, 6
      %v1896 = vsel %vm249, %v1894, %v1895
      %v1897 = vrot.slane %v1886, 6
      %v1898 = vsel %vm249, %v1895, %v1897
      %v1899 = vrot.slane %v1887, 6
      %v1900 = vsel %vm249, %v1897, %v1899
      %v1901 = vrot.slane %v1888, 6
      %v1902 = vsel %vm249, %v1899, %v1901
      %v1907 = vadd.f32 %v1878, %v1896
      %v1908 = vadd.f32 %v1879, %v1898
      %v1909 = vadd.f32 %v1880, %v1900
      %v1910 = vadd.f32 %v1881, %v1902
      %s1911 = sld [smem:[#allocation4 + $0x45]]
      %v1912 = vstv %s1911
      %v1913 = vmul.f32 %v106, %v1912
      %v1914 = vmul.f32 %v107, %v1912
      %v1915 = vmul.f32 %v108, %v1912
      %v1916 = vmul.f32 %v109, %v1912
      %v1917 = vadd.f32 %v1907, %v1913
      %v1918 = vadd.f32 %v1908, %v1914
      %v1919 = vadd.f32 %v1909, %v1915
      %v1920 = vadd.f32 %v1910, %v1916
      %s1921 = sld [smem:[#allocation4 + $0x46]]
      %v1922 = vstv %s1921
      %v1923 = vmul.f32 %v106, %v1922
      %v1924 = vmul.f32 %v107, %v1922
      %v1925 = vmul.f32 %v108, %v1922
      %v1926 = vmul.f32 %v109, %v1922
      %v1927 = vmul.f32 %v110, %v1922
      %v1933 = vrot.slane %v1923, 1
      %v1934 = vrot.slane %v1924, 1
      %v1935 = vsel %vm129, %v1933, %v1934
      %v1936 = vrot.slane %v1925, 1
      %v1937 = vsel %vm129, %v1934, %v1936
      %v1938 = vrot.slane %v1926, 1
      %v1939 = vsel %vm129, %v1936, %v1938
      %v1940 = vrot.slane %v1927, 1
      %v1941 = vsel %vm129, %v1938, %v1940
      %v1946 = vadd.f32 %v1917, %v1935
      %v1947 = vadd.f32 %v1918, %v1937
      %v1948 = vadd.f32 %v1919, %v1939
      %v1949 = vadd.f32 %v1920, %v1941
      %s1950 = sld [smem:[#allocation4 + $0x47]]
      %v1951 = vstv %s1950
      %v1952 = vmul.f32 %v106, %v1951
      %v1953 = vmul.f32 %v107, %v1951
      %v1954 = vmul.f32 %v108, %v1951
      %v1955 = vmul.f32 %v109, %v1951
      %v1956 = vmul.f32 %v110, %v1951
      %v1962 = vrot.slane %v1952, 2
      %v1963 = vrot.slane %v1953, 2
      %v1964 = vsel %vm159, %v1962, %v1963
      %v1965 = vrot.slane %v1954, 2
      %v1966 = vsel %vm159, %v1963, %v1965
      %v1967 = vrot.slane %v1955, 2
      %v1968 = vsel %vm159, %v1965, %v1967
      %v1969 = vrot.slane %v1956, 2
      %v1970 = vsel %vm159, %v1967, %v1969
      %v1975 = vadd.f32 %v1946, %v1964
      %v1976 = vadd.f32 %v1947, %v1966
      %v1977 = vadd.f32 %v1948, %v1968
      %v1978 = vadd.f32 %v1949, %v1970
      %s1979 = sld [smem:[#allocation8 + $0x7]]
      %v1980 = vstv %s1979
      %v1981 = vadd.f32 %v1975, %v1980
      %v1982 = vadd.f32 %v1976, %v1980
      %v1983 = vadd.f32 %v1977, %v1980
      %v1984 = vadd.f32 %v1978, %v1980
      %v1985 = vmax.f32 %v1981, 0.0
      %v1986 = vmax.f32 %v1982, 0.0
      %v1987 = vmax.f32 %v1983, 0.0
      %v1988 = vmax.f32 %v1984, 0.0
      %s1989 = sadd.s32 %s97, 5152
      %s1990 = scalar_lea.vmem [#allocation2], %s1989
      %1991 = vst [vmem:[%s1990] sm:$0xff] %v1985
      %1992 = vst [vmem:[%s1990 + $0x8] sm:$0xff] %v1986
      %1993 = vst [vmem:[%s1990 + $0x10] sm:$0xff] %v1987
      %1994 = vst [vmem:[%s1990 + $0x18] sm:$0xff] %v1988
      %s1995 = sld [smem:[#allocation4 + $0x48]]
      %v1996 = vstv %s1995
      %v1997 = vmul.f32 %v99, %v1996
      %v1998 = vmul.f32 %v100, %v1996
      %v1999 = vmul.f32 %v101, %v1996
      %v2000 = vmul.f32 %v102, %v1996
      %s2001 = sld [smem:[#allocation4 + $0x49]]
      %v2002 = vstv %s2001
      %v2003 = vmul.f32 %v99, %v2002
      %v2004 = vmul.f32 %v100, %v2002
      %v2005 = vmul.f32 %v101, %v2002
      %v2006 = vmul.f32 %v102, %v2002
      %v2007 = vmul.f32 %v103, %v2002
      %v2013 = vrot.slane %v2003, 1
      %v2014 = vrot.slane %v2004, 1
      %v2015 = vsel %vm129, %v2013, %v2014
      %v2016 = vrot.slane %v2005, 1
      %v2017 = vsel %vm129, %v2014, %v2016
      %v2018 = vrot.slane %v2006, 1
      %v2019 = vsel %vm129, %v2016, %v2018
      %v2020 = vrot.slane %v2007, 1
      %v2021 = vsel %vm129, %v2018, %v2020
      %v2026 = vadd.f32 %v1997, %v2015
      %v2027 = vadd.f32 %v1998, %v2017
      %v2028 = vadd.f32 %v1999, %v2019
      %v2029 = vadd.f32 %v2000, %v2021
      %s2030 = sld [smem:[#allocation4 + $0x4a]]
      %v2031 = vstv %s2030
      %v2032 = vmul.f32 %v99, %v2031
      %v2033 = vmul.f32 %v100, %v2031
      %v2034 = vmul.f32 %v101, %v2031
      %v2035 = vmul.f32 %v102, %v2031
      %v2036 = vmul.f32 %v103, %v2031
      %v2042 = vrot.slane %v2032, 2
      %v2043 = vrot.slane %v2033, 2
      %v2044 = vsel %vm159, %v2042, %v2043
      %v2045 = vrot.slane %v2034, 2
      %v2046 = vsel %vm159, %v2043, %v2045
      %v2047 = vrot.slane %v2035, 2
      %v2048 = vsel %vm159, %v2045, %v2047
      %v2049 = vrot.slane %v2036, 2
      %v2050 = vsel %vm159, %v2047, %v2049
      %v2055 = vadd.f32 %v2026, %v2044
      %v2056 = vadd.f32 %v2027, %v2046
      %v2057 = vadd.f32 %v2028, %v2048
      %v2058 = vadd.f32 %v2029, %v2050
      %s2059 = sld [smem:[#allocation4 + $0x4b]]
      %v2060 = vstv %s2059
      %v2061 = vmul.f32 %v102, %v2060
      %v2062 = vmul.f32 %v103, %v2060
      %v2063 = vmul.f32 %v104, %v2060
      %v2064 = vmul.f32 %v105, %v2060
      %v2065 = vmul.f32 %v106, %v2060
      %v2071 = vrot.slane %v2061, 4
      %v2072 = vrot.slane %v2062, 4
      %v2073 = vsel %vm189, %v2071, %v2072
      %v2074 = vrot.slane %v2063, 4
      %v2075 = vsel %vm189, %v2072, %v2074
      %v2076 = vrot.slane %v2064, 4
      %v2077 = vsel %vm189, %v2074, %v2076
      %v2078 = vrot.slane %v2065, 4
      %v2079 = vsel %vm189, %v2076, %v2078
      %v2084 = vadd.f32 %v2055, %v2073
      %v2085 = vadd.f32 %v2056, %v2075
      %v2086 = vadd.f32 %v2057, %v2077
      %v2087 = vadd.f32 %v2058, %v2079
      %s2088 = sld [smem:[#allocation4 + $0x4c]]
      %v2089 = vstv %s2088
      %v2090 = vmul.f32 %v102, %v2089
      %v2091 = vmul.f32 %v103, %v2089
      %v2092 = vmul.f32 %v104, %v2089
      %v2093 = vmul.f32 %v105, %v2089
      %v2094 = vmul.f32 %v106, %v2089
      %v2100 = vrot.slane %v2090, 5
      %v2101 = vrot.slane %v2091, 5
      %v2102 = vsel %vm219, %v2100, %v2101
      %v2103 = vrot.slane %v2092, 5
      %v2104 = vsel %vm219, %v2101, %v2103
      %v2105 = vrot.slane %v2093, 5
      %v2106 = vsel %vm219, %v2103, %v2105
      %v2107 = vrot.slane %v2094, 5
      %v2108 = vsel %vm219, %v2105, %v2107
      %v2113 = vadd.f32 %v2084, %v2102
      %v2114 = vadd.f32 %v2085, %v2104
      %v2115 = vadd.f32 %v2086, %v2106
      %v2116 = vadd.f32 %v2087, %v2108
      %s2117 = sld [smem:[#allocation4 + $0x4d]]
      %v2118 = vstv %s2117
      %v2119 = vmul.f32 %v102, %v2118
      %v2120 = vmul.f32 %v103, %v2118
      %v2121 = vmul.f32 %v104, %v2118
      %v2122 = vmul.f32 %v105, %v2118
      %v2123 = vmul.f32 %v106, %v2118
      %v2129 = vrot.slane %v2119, 6
      %v2130 = vrot.slane %v2120, 6
      %v2131 = vsel %vm249, %v2129, %v2130
      %v2132 = vrot.slane %v2121, 6
      %v2133 = vsel %vm249, %v2130, %v2132
      %v2134 = vrot.slane %v2122, 6
      %v2135 = vsel %vm249, %v2132, %v2134
      %v2136 = vrot.slane %v2123, 6
      %v2137 = vsel %vm249, %v2134, %v2136
      %v2142 = vadd.f32 %v2113, %v2131
      %v2143 = vadd.f32 %v2114, %v2133
      %v2144 = vadd.f32 %v2115, %v2135
      %v2145 = vadd.f32 %v2116, %v2137
      %s2146 = sld [smem:[#allocation4 + $0x4e]]
      %v2147 = vstv %s2146
      %v2148 = vmul.f32 %v106, %v2147
      %v2149 = vmul.f32 %v107, %v2147
      %v2150 = vmul.f32 %v108, %v2147
      %v2151 = vmul.f32 %v109, %v2147
      %v2152 = vadd.f32 %v2142, %v2148
      %v2153 = vadd.f32 %v2143, %v2149
      %v2154 = vadd.f32 %v2144, %v2150
      %v2155 = vadd.f32 %v2145, %v2151
      %s2156 = sld [smem:[#allocation4 + $0x4f]]
      %v2157 = vstv %s2156
      %v2158 = vmul.f32 %v106, %v2157
      %v2159 = vmul.f32 %v107, %v2157
      %v2160 = vmul.f32 %v108, %v2157
      %v2161 = vmul.f32 %v109, %v2157
      %v2162 = vmul.f32 %v110, %v2157
      %v2168 = vrot.slane %v2158, 1
      %v2169 = vrot.slane %v2159, 1
      %v2170 = vsel %vm129, %v2168, %v2169
      %v2171 = vrot.slane %v2160, 1
      %v2172 = vsel %vm129, %v2169, %v2171
      %v2173 = vrot.slane %v2161, 1
      %v2174 = vsel %vm129, %v2171, %v2173
      %v2175 = vrot.slane %v2162, 1
      %v2176 = vsel %vm129, %v2173, %v2175
      %v2181 = vadd.f32 %v2152, %v2170
      %v2182 = vadd.f32 %v2153, %v2172
      %v2183 = vadd.f32 %v2154, %v2174
      %v2184 = vadd.f32 %v2155, %v2176
      %s2185 = sld [smem:[#allocation4 + $0x50]]
      %v2186 = vstv %s2185
      %v2187 = vmul.f32 %v106, %v2186
      %v2188 = vmul.f32 %v107, %v2186
      %v2189 = vmul.f32 %v108, %v2186
      %v2190 = vmul.f32 %v109, %v2186
      %v2191 = vmul.f32 %v110, %v2186
      %v2197 = vrot.slane %v2187, 2
      %v2198 = vrot.slane %v2188, 2
      %v2199 = vsel %vm159, %v2197, %v2198
      %v2200 = vrot.slane %v2189, 2
      %v2201 = vsel %vm159, %v2198, %v2200
      %v2202 = vrot.slane %v2190, 2
      %v2203 = vsel %vm159, %v2200, %v2202
      %v2204 = vrot.slane %v2191, 2
      %v2205 = vsel %vm159, %v2202, %v2204
      %v2210 = vadd.f32 %v2181, %v2199
      %v2211 = vadd.f32 %v2182, %v2201
      %v2212 = vadd.f32 %v2183, %v2203
      %v2213 = vadd.f32 %v2184, %v2205
      %s2214 = sld [smem:[#allocation8 + $0x8]]
      %v2215 = vstv %s2214
      %v2216 = vadd.f32 %v2210, %v2215
      %v2217 = vadd.f32 %v2211, %v2215
      %v2218 = vadd.f32 %v2212, %v2215
      %v2219 = vadd.f32 %v2213, %v2215
      %v2220 = vmax.f32 %v2216, 0.0
      %v2221 = vmax.f32 %v2217, 0.0
      %v2222 = vmax.f32 %v2218, 0.0
      %v2223 = vmax.f32 %v2219, 0.0
      %s2224 = sadd.s32 %s97, 5888
      %s2225 = scalar_lea.vmem [#allocation2], %s2224
      %2226 = vst [vmem:[%s2225] sm:$0xff] %v2220
      %2227 = vst [vmem:[%s2225 + $0x8] sm:$0xff] %v2221
      %2228 = vst [vmem:[%s2225 + $0x10] sm:$0xff] %v2222
      %2229 = vst [vmem:[%s2225 + $0x18] sm:$0xff] %v2223
      %s2230 = sld [smem:[#allocation4 + $0x51]]
      %v2231 = vstv %s2230
      %v2232 = vmul.f32 %v99, %v2231
      %v2233 = vmul.f32 %v100, %v2231
      %v2234 = vmul.f32 %v101, %v2231
      %v2235 = vmul.f32 %v102, %v2231
      %s2236 = sld [smem:[#allocation4 + $0x52]]
      %v2237 = vstv %s2236
      %v2238 = vmul.f32 %v99, %v2237
      %v2239 = vmul.f32 %v100, %v2237
      %v2240 = vmul.f32 %v101, %v2237
      %v2241 = vmul.f32 %v102, %v2237
      %v2242 = vmul.f32 %v103, %v2237
      %v2248 = vrot.slane %v2238, 1
      %v2249 = vrot.slane %v2239, 1
      %v2250 = vsel %vm129, %v2248, %v2249
      %v2251 = vrot.slane %v2240, 1
      %v2252 = vsel %vm129, %v2249, %v2251
      %v2253 = vrot.slane %v2241, 1
      %v2254 = vsel %vm129, %v2251, %v2253
      %v2255 = vrot.slane %v2242, 1
      %v2256 = vsel %vm129, %v2253, %v2255
      %v2261 = vadd.f32 %v2232, %v2250
      %v2262 = vadd.f32 %v2233, %v2252
      %v2263 = vadd.f32 %v2234, %v2254
      %v2264 = vadd.f32 %v2235, %v2256
      %s2265 = sld [smem:[#allocation4 + $0x53]]
      %v2266 = vstv %s2265
      %v2267 = vmul.f32 %v99, %v2266
      %v2268 = vmul.f32 %v100, %v2266
      %v2269 = vmul.f32 %v101, %v2266
      %v2270 = vmul.f32 %v102, %v2266
      %v2271 = vmul.f32 %v103, %v2266
      %v2277 = vrot.slane %v2267, 2
      %v2278 = vrot.slane %v2268, 2
      %v2279 = vsel %vm159, %v2277, %v2278
      %v2280 = vrot.slane %v2269, 2
      %v2281 = vsel %vm159, %v2278, %v2280
      %v2282 = vrot.slane %v2270, 2
      %v2283 = vsel %vm159, %v2280, %v2282
      %v2284 = vrot.slane %v2271, 2
      %v2285 = vsel %vm159, %v2282, %v2284
      %v2290 = vadd.f32 %v2261, %v2279
      %v2291 = vadd.f32 %v2262, %v2281
      %v2292 = vadd.f32 %v2263, %v2283
      %v2293 = vadd.f32 %v2264, %v2285
      %s2294 = sld [smem:[#allocation4 + $0x54]]
      %v2295 = vstv %s2294
      %v2296 = vmul.f32 %v102, %v2295
      %v2297 = vmul.f32 %v103, %v2295
      %v2298 = vmul.f32 %v104, %v2295
      %v2299 = vmul.f32 %v105, %v2295
      %v2300 = vmul.f32 %v106, %v2295
      %v2306 = vrot.slane %v2296, 4
      %v2307 = vrot.slane %v2297, 4
      %v2308 = vsel %vm189, %v2306, %v2307
      %v2309 = vrot.slane %v2298, 4
      %v2310 = vsel %vm189, %v2307, %v2309
      %v2311 = vrot.slane %v2299, 4
      %v2312 = vsel %vm189, %v2309, %v2311
      %v2313 = vrot.slane %v2300, 4
      %v2314 = vsel %vm189, %v2311, %v2313
      %v2319 = vadd.f32 %v2290, %v2308
      %v2320 = vadd.f32 %v2291, %v2310
      %v2321 = vadd.f32 %v2292, %v2312
      %v2322 = vadd.f32 %v2293, %v2314
      %s2323 = sld [smem:[#allocation4 + $0x55]]
      %v2324 = vstv %s2323
      %v2325 = vmul.f32 %v102, %v2324
      %v2326 = vmul.f32 %v103, %v2324
      %v2327 = vmul.f32 %v104, %v2324
      %v2328 = vmul.f32 %v105, %v2324
      %v2329 = vmul.f32 %v106, %v2324
      %v2335 = vrot.slane %v2325, 5
      %v2336 = vrot.slane %v2326, 5
      %v2337 = vsel %vm219, %v2335, %v2336
      %v2338 = vrot.slane %v2327, 5
      %v2339 = vsel %vm219, %v2336, %v2338
      %v2340 = vrot.slane %v2328, 5
      %v2341 = vsel %vm219, %v2338, %v2340
      %v2342 = vrot.slane %v2329, 5
      %v2343 = vsel %vm219, %v2340, %v2342
      %v2348 = vadd.f32 %v2319, %v2337
      %v2349 = vadd.f32 %v2320, %v2339
      %v2350 = vadd.f32 %v2321, %v2341
      %v2351 = vadd.f32 %v2322, %v2343
      %s2352 = sld [smem:[#allocation4 + $0x56]]
      %v2353 = vstv %s2352
      %v2354 = vmul.f32 %v102, %v2353
      %v2355 = vmul.f32 %v103, %v2353
      %v2356 = vmul.f32 %v104, %v2353
      %v2357 = vmul.f32 %v105, %v2353
      %v2358 = vmul.f32 %v106, %v2353
      %v2364 = vrot.slane %v2354, 6
      %v2365 = vrot.slane %v2355, 6
      %v2366 = vsel %vm249, %v2364, %v2365
      %v2367 = vrot.slane %v2356, 6
      %v2368 = vsel %vm249, %v2365, %v2367
      %v2369 = vrot.slane %v2357, 6
      %v2370 = vsel %vm249, %v2367, %v2369
      %v2371 = vrot.slane %v2358, 6
      %v2372 = vsel %vm249, %v2369, %v2371
      %v2377 = vadd.f32 %v2348, %v2366
      %v2378 = vadd.f32 %v2349, %v2368
      %v2379 = vadd.f32 %v2350, %v2370
      %v2380 = vadd.f32 %v2351, %v2372
      %s2381 = sld [smem:[#allocation4 + $0x57]]
      %v2382 = vstv %s2381
      %v2383 = vmul.f32 %v106, %v2382
      %v2384 = vmul.f32 %v107, %v2382
      %v2385 = vmul.f32 %v108, %v2382
      %v2386 = vmul.f32 %v109, %v2382
      %v2387 = vadd.f32 %v2377, %v2383
      %v2388 = vadd.f32 %v2378, %v2384
      %v2389 = vadd.f32 %v2379, %v2385
      %v2390 = vadd.f32 %v2380, %v2386
      %s2391 = sld [smem:[#allocation4 + $0x58]]
      %v2392 = vstv %s2391
      %v2393 = vmul.f32 %v106, %v2392
      %v2394 = vmul.f32 %v107, %v2392
      %v2395 = vmul.f32 %v108, %v2392
      %v2396 = vmul.f32 %v109, %v2392
      %v2397 = vmul.f32 %v110, %v2392
      %v2403 = vrot.slane %v2393, 1
      %v2404 = vrot.slane %v2394, 1
      %v2405 = vsel %vm129, %v2403, %v2404
      %v2406 = vrot.slane %v2395, 1
      %v2407 = vsel %vm129, %v2404, %v2406
      %v2408 = vrot.slane %v2396, 1
      %v2409 = vsel %vm129, %v2406, %v2408
      %v2410 = vrot.slane %v2397, 1
      %v2411 = vsel %vm129, %v2408, %v2410
      %v2416 = vadd.f32 %v2387, %v2405
      %v2417 = vadd.f32 %v2388, %v2407
      %v2418 = vadd.f32 %v2389, %v2409
      %v2419 = vadd.f32 %v2390, %v2411
      %s2420 = sld [smem:[#allocation4 + $0x59]]
      %v2421 = vstv %s2420
      %v2422 = vmul.f32 %v106, %v2421
      %v2423 = vmul.f32 %v107, %v2421
      %v2424 = vmul.f32 %v108, %v2421
      %v2425 = vmul.f32 %v109, %v2421
      %v2426 = vmul.f32 %v110, %v2421
      %v2432 = vrot.slane %v2422, 2
      %v2433 = vrot.slane %v2423, 2
      %v2434 = vsel %vm159, %v2432, %v2433
      %v2435 = vrot.slane %v2424, 2
      %v2436 = vsel %vm159, %v2433, %v2435
      %v2437 = vrot.slane %v2425, 2
      %v2438 = vsel %vm159, %v2435, %v2437
      %v2439 = vrot.slane %v2426, 2
      %v2440 = vsel %vm159, %v2437, %v2439
      %v2445 = vadd.f32 %v2416, %v2434
      %v2446 = vadd.f32 %v2417, %v2436
      %v2447 = vadd.f32 %v2418, %v2438
      %v2448 = vadd.f32 %v2419, %v2440
      %s2449 = sld [smem:[#allocation8 + $0x9]]
      %v2450 = vstv %s2449
      %v2451 = vadd.f32 %v2445, %v2450
      %v2452 = vadd.f32 %v2446, %v2450
      %v2453 = vadd.f32 %v2447, %v2450
      %v2454 = vadd.f32 %v2448, %v2450
      %v2455 = vmax.f32 %v2451, 0.0
      %v2456 = vmax.f32 %v2452, 0.0
      %v2457 = vmax.f32 %v2453, 0.0
      %v2458 = vmax.f32 %v2454, 0.0
      %s2459 = sadd.s32 %s97, 6624
      %s2460 = scalar_lea.vmem [#allocation2], %s2459
      %2461 = vst [vmem:[%s2460] sm:$0xff] %v2455
      %2462 = vst [vmem:[%s2460 + $0x8] sm:$0xff] %v2456
      %2463 = vst [vmem:[%s2460 + $0x10] sm:$0xff] %v2457
      %2464 = vst [vmem:[%s2460 + $0x18] sm:$0xff] %v2458
    $region54: #{tpu_custom_call.1} parent=1 // loop_footer
      %s96 = sadd.s32 1, %s92
    $region55: #{tpu_custom_call.1} parent=1 // loop_footer_branch
      %91 = sbr.rel target = $region51
    $region56: #{tpu_custom_call.1} parent=1 // loop_exit
      _
    loop: start=0, step=1, limit=21
    $region57: #{tpu_custom_call.1} parent=1 // loop_pre_header
      _
    $region58: #{tpu_custom_call.1} parent=1 // loop_header
      %s2466 = sphi 0, %s2470
      %p2467 = scmp.ge.s32.totalorder %s2466, 21
    $region59: #{tpu_custom_call.1} parent=1 // loop_header_branch
      %2469 = sbr.rel (%p2467) target = $region63
    $region60: #{tpu_custom_call.1} parent=1 // loop_body
      %s2471 = smul.u32 %s2466, 32
      loop: start=0, step=1, limit=10
      $region64: #{tpu_custom_call.1} parent=60 // loop_pre_header
        _
      $region65: #{tpu_custom_call.1} parent=60 // loop_header
        %s2473 = sphi 0, %s2477
        %p2474 = scmp.ge.s32.totalorder %s2473, 10
        %v2478 = vphi 0.0, %v3348
        %v2479 = vphi 0.0, %v3349
        %v2480 = vphi 0.0, %v3350
        %v2481 = vphi 0.0, %v3351
        %v2482 = vphi 0.0, %v3378
        %v2483 = vphi 0.0, %v3379
        %v2484 = vphi 0.0, %v3380
        %v2485 = vphi 0.0, %v3381
        %v2486 = vphi 0.0, %v3408
        %v2487 = vphi 0.0, %v3409
        %v2488 = vphi 0.0, %v3410
        %v2489 = vphi 0.0, %v3411
        %v2490 = vphi 0.0, %v3438
        %v2491 = vphi 0.0, %v3439
        %v2492 = vphi 0.0, %v3440
        %v2493 = vphi 0.0, %v3441
      $region66: #{tpu_custom_call.1} parent=60 // loop_header_branch
        %2476 = sbr.rel (%p2474) target = $region70
      $region67: #{tpu_custom_call.1} parent=60 // loop_body
        %s2494 = smul.u32 %s2473, 736
        %s2495 = sadd.s32 %s2471, %s2494
        %s2496 = scalar_lea.vmem [#allocation2], %s2495
        %v2497 = vld [vmem:[%s2496] sm:$0xff]
        %v2498 = vld [vmem:[%s2496 + $0x8] sm:$0xff]
        %v2499 = vld [vmem:[%s2496 + $0x10] sm:$0xff]
        %v2500 = vld [vmem:[%s2496 + $0x18] sm:$0xff]
        %v2501 = vld [vmem:[%s2496 + $0x20] sm:$0xff]
        %v2502 = vld [vmem:[%s2496 + $0x28] sm:$0xff]
        %v2503 = vld [vmem:[%s2496 + $0x30] sm:$0xff]
        %v2504 = vld [vmem:[%s2496 + $0x38] sm:$0xff]
        %v2505 = vld [vmem:[%s2496 + $0x40] sm:$0xff]
        %v2506 = vld [vmem:[%s2496 + $0x48] sm:$0xff]
        %v2507 = vld [vmem:[%s2496 + $0x50] sm:$0xff]
        %v2508 = vld [vmem:[%s2496 + $0x58] sm:$0xff]
        %s2509 = smul.u32 %s2473, 36
        %s2510 = sld [smem:[#allocation10 + %s2509]]
        %v2511 = vstv %s2510
        %v2512 = vmul.f32 %v2497, %v2511
        %v2513 = vmul.f32 %v2498, %v2511
        %v2514 = vmul.f32 %v2499, %v2511
        %v2515 = vmul.f32 %v2500, %v2511
        %v2516 = vadd.f32 %v2478, %v2512
        %v2517 = vadd.f32 %v2479, %v2513
        %v2518 = vadd.f32 %v2480, %v2514
        %v2519 = vadd.f32 %v2481, %v2515
        %s2520 = sadd.s32 %s2509, 1
        %s2521 = sld [smem:[#allocation10 + %s2520]]
        %v2522 = vstv %s2521
        %v2523 = vmul.f32 %v2497, %v2522
        %v2524 = vmul.f32 %v2498, %v2522
        %v2525 = vmul.f32 %v2499, %v2522
        %v2526 = vmul.f32 %v2500, %v2522
        %v2527 = vadd.f32 %v2482, %v2523
        %v2528 = vadd.f32 %v2483, %v2524
        %v2529 = vadd.f32 %v2484, %v2525
        %v2530 = vadd.f32 %v2485, %v2526
        %s2531 = sadd.s32 %s2509, 2
        %s2532 = sld [smem:[#allocation10 + %s2531]]
        %v2533 = vstv %s2532
        %v2534 = vmul.f32 %v2497, %v2533
        %v2535 = vmul.f32 %v2498, %v2533
        %v2536 = vmul.f32 %v2499, %v2533
        %v2537 = vmul.f32 %v2500, %v2533
        %v2538 = vadd.f32 %v2486, %v2534
        %v2539 = vadd.f32 %v2487, %v2535
        %v2540 = vadd.f32 %v2488, %v2536
        %v2541 = vadd.f32 %v2489, %v2537
        %s2542 = sadd.s32 %s2509, 3
        %s2543 = sld [smem:[#allocation10 + %s2542]]
        %v2544 = vstv %s2543
        %v2545 = vmul.f32 %v2497, %v2544
        %v2546 = vmul.f32 %v2498, %v2544
        %v2547 = vmul.f32 %v2499, %v2544
        %v2548 = vmul.f32 %v2500, %v2544
        %v2549 = vadd.f32 %v2490, %v2545
        %v2550 = vadd.f32 %v2491, %v2546
        %v2551 = vadd.f32 %v2492, %v2547
        %v2552 = vadd.f32 %v2493, %v2548
        %s2553 = sadd.s32 %s2509, 4
        %s2554 = sld [smem:[#allocation10 + %s2553]]
        %v2555 = vstv %s2554
        %v2556 = vmul.f32 %v2497, %v2555
        %v2557 = vmul.f32 %v2498, %v2555
        %v2558 = vmul.f32 %v2499, %v2555
        %v2559 = vmul.f32 %v2500, %v2555
        %v2560 = vmul.f32 %v2501, %v2555
        %vm2566 = vcmask 1046528
        %v2567 = vrot.slane %v2556, 1
        %v2568 = vrot.slane %v2557, 1
        %v2569 = vsel %vm2566, %v2567, %v2568
        %v2570 = vrot.slane %v2558, 1
        %v2571 = vsel %vm2566, %v2568, %v2570
        %v2572 = vrot.slane %v2559, 1
        %v2573 = vsel %vm2566, %v2570, %v2572
        %v2574 = vrot.slane %v2560, 1
        %v2575 = vsel %vm2566, %v2572, %v2574
        %v2580 = vadd.f32 %v2516, %v2569
        %v2581 = vadd.f32 %v2517, %v2571
        %v2582 = vadd.f32 %v2518, %v2573
        %v2583 = vadd.f32 %v2519, %v2575
        %s2584 = sadd.s32 %s2509, 5
        %s2585 = sld [smem:[#allocation10 + %s2584]]
        %v2586 = vstv %s2585
        %v2587 = vmul.f32 %v2497, %v2586
        %v2588 = vmul.f32 %v2498, %v2586
        %v2589 = vmul.f32 %v2499, %v2586
        %v2590 = vmul.f32 %v2500, %v2586
        %v2591 = vmul.f32 %v2501, %v2586
        %v2597 = vrot.slane %v2587, 1
        %v2598 = vrot.slane %v2588, 1
        %v2599 = vsel %vm2566, %v2597, %v2598
        %v2600 = vrot.slane %v2589, 1
        %v2601 = vsel %vm2566, %v2598, %v2600
        %v2602 = vrot.slane %v2590, 1
        %v2603 = vsel %vm2566, %v2600, %v2602
        %v2604 = vrot.slane %v2591, 1
        %v2605 = vsel %vm2566, %v2602, %v2604
        %v2610 = vadd.f32 %v2527, %v2599
        %v2611 = vadd.f32 %v2528, %v2601
        %v2612 = vadd.f32 %v2529, %v2603
        %v2613 = vadd.f32 %v2530, %v2605
        %s2614 = sadd.s32 %s2509, 6
        %s2615 = sld [smem:[#allocation10 + %s2614]]
        %v2616 = vstv %s2615
        %v2617 = vmul.f32 %v2497, %v2616
        %v2618 = vmul.f32 %v2498, %v2616
        %v2619 = vmul.f32 %v2499, %v2616
        %v2620 = vmul.f32 %v2500, %v2616
        %v2621 = vmul.f32 %v2501, %v2616
        %v2627 = vrot.slane %v2617, 1
        %v2628 = vrot.slane %v2618, 1
        %v2629 = vsel %vm2566, %v2627, %v2628
        %v2630 = vrot.slane %v2619, 1
        %v2631 = vsel %vm2566, %v2628, %v2630
        %v2632 = vrot.slane %v2620, 1
        %v2633 = vsel %vm2566, %v2630, %v2632
        %v2634 = vrot.slane %v2621, 1
        %v2635 = vsel %vm2566, %v2632, %v2634
        %v2640 = vadd.f32 %v2538, %v2629
        %v2641 = vadd.f32 %v2539, %v2631
        %v2642 = vadd.f32 %v2540, %v2633
        %v2643 = vadd.f32 %v2541, %v2635
        %s2644 = sadd.s32 %s2509, 7
        %s2645 = sld [smem:[#allocation10 + %s2644]]
        %v2646 = vstv %s2645
        %v2647 = vmul.f32 %v2497, %v2646
        %v2648 = vmul.f32 %v2498, %v2646
        %v2649 = vmul.f32 %v2499, %v2646
        %v2650 = vmul.f32 %v2500, %v2646
        %v2651 = vmul.f32 %v2501, %v2646
        %v2657 = vrot.slane %v2647, 1
        %v2658 = vrot.slane %v2648, 1
        %v2659 = vsel %vm2566, %v2657, %v2658
        %v2660 = vrot.slane %v2649, 1
        %v2661 = vsel %vm2566, %v2658, %v2660
        %v2662 = vrot.slane %v2650, 1
        %v2663 = vsel %vm2566, %v2660, %v2662
        %v2664 = vrot.slane %v2651, 1
        %v2665 = vsel %vm2566, %v2662, %v2664
        %v2670 = vadd.f32 %v2549, %v2659
        %v2671 = vadd.f32 %v2550, %v2661
        %v2672 = vadd.f32 %v2551, %v2663
        %v2673 = vadd.f32 %v2552, %v2665
        %s2674 = sadd.s32 %s2509, 8
        %s2675 = sld [smem:[#allocation10 + %s2674]]
        %v2676 = vstv %s2675
        %v2677 = vmul.f32 %v2497, %v2676
        %v2678 = vmul.f32 %v2498, %v2676
        %v2679 = vmul.f32 %v2499, %v2676
        %v2680 = vmul.f32 %v2500, %v2676
        %v2681 = vmul.f32 %v2501, %v2676
        %vm2687 = vcmask 1045504
        %v2688 = vrot.slane %v2677, 2
        %v2689 = vrot.slane %v2678, 2
        %v2690 = vsel %vm2687, %v2688, %v2689
        %v2691 = vrot.slane %v2679, 2
        %v2692 = vsel %vm2687, %v2689, %v2691
        %v2693 = vrot.slane %v2680, 2
        %v2694 = vsel %vm2687, %v2691, %v2693
        %v2695 = vrot.slane %v2681, 2
        %v2696 = vsel %vm2687, %v2693, %v2695
        %v2701 = vadd.f32 %v2580, %v2690
        %v2702 = vadd.f32 %v2581, %v2692
        %v2703 = vadd.f32 %v2582, %v2694
        %v2704 = vadd.f32 %v2583, %v2696
        %s2705 = sadd.s32 %s2509, 9
        %s2706 = sld [smem:[#allocation10 + %s2705]]
        %v2707 = vstv %s2706
        %v2708 = vmul.f32 %v2497, %v2707
        %v2709 = vmul.f32 %v2498, %v2707
        %v2710 = vmul.f32 %v2499, %v2707
        %v2711 = vmul.f32 %v2500, %v2707
        %v2712 = vmul.f32 %v2501, %v2707
        %v2718 = vrot.slane %v2708, 2
        %v2719 = vrot.slane %v2709, 2
        %v2720 = vsel %vm2687, %v2718, %v2719
        %v2721 = vrot.slane %v2710, 2
        %v2722 = vsel %vm2687, %v2719, %v2721
        %v2723 = vrot.slane %v2711, 2
        %v2724 = vsel %vm2687, %v2721, %v2723
        %v2725 = vrot.slane %v2712, 2
        %v2726 = vsel %vm2687, %v2723, %v2725
        %v2731 = vadd.f32 %v2610, %v2720
        %v2732 = vadd.f32 %v2611, %v2722
        %v2733 = vadd.f32 %v2612, %v2724
        %v2734 = vadd.f32 %v2613, %v2726
        %s2735 = sadd.s32 %s2509, 10
        %s2736 = sld [smem:[#allocation10 + %s2735]]
        %v2737 = vstv %s2736
        %v2738 = vmul.f32 %v2497, %v2737
        %v2739 = vmul.f32 %v2498, %v2737
        %v2740 = vmul.f32 %v2499, %v2737
        %v2741 = vmul.f32 %v2500, %v2737
        %v2742 = vmul.f32 %v2501, %v2737
        %v2748 = vrot.slane %v2738, 2
        %v2749 = vrot.slane %v2739, 2
        %v2750 = vsel %vm2687, %v2748, %v2749
        %v2751 = vrot.slane %v2740, 2
        %v2752 = vsel %vm2687, %v2749, %v2751
        %v2753 = vrot.slane %v2741, 2
        %v2754 = vsel %vm2687, %v2751, %v2753
        %v2755 = vrot.slane %v2742, 2
        %v2756 = vsel %vm2687, %v2753, %v2755
        %v2761 = vadd.f32 %v2640, %v2750
        %v2762 = vadd.f32 %v2641, %v2752
        %v2763 = vadd.f32 %v2642, %v2754
        %v2764 = vadd.f32 %v2643, %v2756
        %s2765 = sadd.s32 %s2509, 11
        %s2766 = sld [smem:[#allocation10 + %s2765]]
        %v2767 = vstv %s2766
        %v2768 = vmul.f32 %v2497, %v2767
        %v2769 = vmul.f32 %v2498, %v2767
        %v2770 = vmul.f32 %v2499, %v2767
        %v2771 = vmul.f32 %v2500, %v2767
        %v2772 = vmul.f32 %v2501, %v2767
        %v2778 = vrot.slane %v2768, 2
        %v2779 = vrot.slane %v2769, 2
        %v2780 = vsel %vm2687, %v2778, %v2779
        %v2781 = vrot.slane %v2770, 2
        %v2782 = vsel %vm2687, %v2779, %v2781
        %v2783 = vrot.slane %v2771, 2
        %v2784 = vsel %vm2687, %v2781, %v2783
        %v2785 = vrot.slane %v2772, 2
        %v2786 = vsel %vm2687, %v2783, %v2785
        %v2791 = vadd.f32 %v2670, %v2780
        %v2792 = vadd.f32 %v2671, %v2782
        %v2793 = vadd.f32 %v2672, %v2784
        %v2794 = vadd.f32 %v2673, %v2786
        %s2795 = sadd.s32 %s2509, 12
        %s2796 = sld [smem:[#allocation10 + %s2795]]
        %v2797 = vstv %s2796
        %v2798 = vmul.f32 %v2500, %v2797
        %v2799 = vmul.f32 %v2501, %v2797
        %v2800 = vmul.f32 %v2502, %v2797
        %v2801 = vmul.f32 %v2503, %v2797
        %v2802 = vmul.f32 %v2504, %v2797
        %vm2808 = vcmask 1043456
        %v2809 = vrot.slane %v2798, 4
        %v2810 = vrot.slane %v2799, 4
        %v2811 = vsel %vm2808, %v2809, %v2810
        %v2812 = vrot.slane %v2800, 4
        %v2813 = vsel %vm2808, %v2810, %v2812
        %v2814 = vrot.slane %v2801, 4
        %v2815 = vsel %vm2808, %v2812, %v2814
        %v2816 = vrot.slane %v2802, 4
        %v2817 = vsel %vm2808, %v2814, %v2816
        %v2822 = vadd.f32 %v2701, %v2811
        %v2823 = vadd.f32 %v2702, %v2813
        %v2824 = vadd.f32 %v2703, %v2815
        %v2825 = vadd.f32 %v2704, %v2817
        %s2826 = sadd.s32 %s2509, 13
        %s2827 = sld [smem:[#allocation10 + %s2826]]
        %v2828 = vstv %s2827
        %v2829 = vmul.f32 %v2500, %v2828
        %v2830 = vmul.f32 %v2501, %v2828
        %v2831 = vmul.f32 %v2502, %v2828
        %v2832 = vmul.f32 %v2503, %v2828
        %v2833 = vmul.f32 %v2504, %v2828
        %v2839 = vrot.slane %v2829, 4
        %v2840 = vrot.slane %v2830, 4
        %v2841 = vsel %vm2808, %v2839, %v2840
        %v2842 = vrot.slane %v2831, 4
        %v2843 = vsel %vm2808, %v2840, %v2842
        %v2844 = vrot.slane %v2832, 4
        %v2845 = vsel %vm2808, %v2842, %v2844
        %v2846 = vrot.slane %v2833, 4
        %v2847 = vsel %vm2808, %v2844, %v2846
        %v2852 = vadd.f32 %v2731, %v2841
        %v2853 = vadd.f32 %v2732, %v2843
        %v2854 = vadd.f32 %v2733, %v2845
        %v2855 = vadd.f32 %v2734, %v2847
        %s2856 = sadd.s32 %s2509, 14
        %s2857 = sld [smem:[#allocation10 + %s2856]]
        %v2858 = vstv %s2857
        %v2859 = vmul.f32 %v2500, %v2858
        %v2860 = vmul.f32 %v2501, %v2858
        %v2861 = vmul.f32 %v2502, %v2858
        %v2862 = vmul.f32 %v2503, %v2858
        %v2863 = vmul.f32 %v2504, %v2858
        %v2869 = vrot.slane %v2859, 4
        %v2870 = vrot.slane %v2860, 4
        %v2871 = vsel %vm2808, %v2869, %v2870
        %v2872 = vrot.slane %v2861, 4
        %v2873 = vsel %vm2808, %v2870, %v2872
        %v2874 = vrot.slane %v2862, 4
        %v2875 = vsel %vm2808, %v2872, %v2874
        %v2876 = vrot.slane %v2863, 4
        %v2877 = vsel %vm2808, %v2874, %v2876
        %v2882 = vadd.f32 %v2761, %v2871
        %v2883 = vadd.f32 %v2762, %v2873
        %v2884 = vadd.f32 %v2763, %v2875
        %v2885 = vadd.f32 %v2764, %v2877
        %s2886 = sadd.s32 %s2509, 15
        %s2887 = sld [smem:[#allocation10 + %s2886]]
        %v2888 = vstv %s2887
        %v2889 = vmul.f32 %v2500, %v2888
        %v2890 = vmul.f32 %v2501, %v2888
        %v2891 = vmul.f32 %v2502, %v2888
        %v2892 = vmul.f32 %v2503, %v2888
        %v2893 = vmul.f32 %v2504, %v2888
        %v2899 = vrot.slane %v2889, 4
        %v2900 = vrot.slane %v2890, 4
        %v2901 = vsel %vm2808, %v2899, %v2900
        %v2902 = vrot.slane %v2891, 4
        %v2903 = vsel %vm2808, %v2900, %v2902
        %v2904 = vrot.slane %v2892, 4
        %v2905 = vsel %vm2808, %v2902, %v2904
        %v2906 = vrot.slane %v2893, 4
        %v2907 = vsel %vm2808, %v2904, %v2906
        %v2912 = vadd.f32 %v2791, %v2901
        %v2913 = vadd.f32 %v2792, %v2903
        %v2914 = vadd.f32 %v2793, %v2905
        %v2915 = vadd.f32 %v2794, %v2907
        %s2916 = sadd.s32 %s2509, 16
        %s2917 = sld [smem:[#allocation10 + %s2916]]
        %v2918 = vstv %s2917
        %v2919 = vmul.f32 %v2500, %v2918
        %v2920 = vmul.f32 %v2501, %v2918
        %v2921 = vmul.f32 %v2502, %v2918
        %v2922 = vmul.f32 %v2503, %v2918
        %v2923 = vmul.f32 %v2504, %v2918
        %vm2929 = vcmask 1042432
        %v2930 = vrot.slane %v2919, 5
        %v2931 = vrot.slane %v2920, 5
        %v2932 = vsel %vm2929, %v2930, %v2931
        %v2933 = vrot.slane %v2921, 5
        %v2934 = vsel %vm2929, %v2931, %v2933
        %v2935 = vrot.slane %v2922, 5
        %v2936 = vsel %vm2929, %v2933, %v2935
        %v2937 = vrot.slane %v2923, 5
        %v2938 = vsel %vm2929, %v2935, %v2937
        %v2943 = vadd.f32 %v2822, %v2932
        %v2944 = vadd.f32 %v2823, %v2934
        %v2945 = vadd.f32 %v2824, %v2936
        %v2946 = vadd.f32 %v2825, %v2938
        %s2947 = sadd.s32 %s2509, 17
        %s2948 = sld [smem:[#allocation10 + %s2947]]
        %v2949 = vstv %s2948
        %v2950 = vmul.f32 %v2500, %v2949
        %v2951 = vmul.f32 %v2501, %v2949
        %v2952 = vmul.f32 %v2502, %v2949
        %v2953 = vmul.f32 %v2503, %v2949
        %v2954 = vmul.f32 %v2504, %v2949
        %v2960 = vrot.slane %v2950, 5
        %v2961 = vrot.slane %v2951, 5
        %v2962 = vsel %vm2929, %v2960, %v2961
        %v2963 = vrot.slane %v2952, 5
        %v2964 = vsel %vm2929, %v2961, %v2963
        %v2965 = vrot.slane %v2953, 5
        %v2966 = vsel %vm2929, %v2963, %v2965
        %v2967 = vrot.slane %v2954, 5
        %v2968 = vsel %vm2929, %v2965, %v2967
        %v2973 = vadd.f32 %v2852, %v2962
        %v2974 = vadd.f32 %v2853, %v2964
        %v2975 = vadd.f32 %v2854, %v2966
        %v2976 = vadd.f32 %v2855, %v2968
        %s2977 = sadd.s32 %s2509, 18
        %s2978 = sld [smem:[#allocation10 + %s2977]]
        %v2979 = vstv %s2978
        %v2980 = vmul.f32 %v2500, %v2979
        %v2981 = vmul.f32 %v2501, %v2979
        %v2982 = vmul.f32 %v2502, %v2979
        %v2983 = vmul.f32 %v2503, %v2979
        %v2984 = vmul.f32 %v2504, %v2979
        %v2990 = vrot.slane %v2980, 5
        %v2991 = vrot.slane %v2981, 5
        %v2992 = vsel %vm2929, %v2990, %v2991
        %v2993 = vrot.slane %v2982, 5
        %v2994 = vsel %vm2929, %v2991, %v2993
        %v2995 = vrot.slane %v2983, 5
        %v2996 = vsel %vm2929, %v2993, %v2995
        %v2997 = vrot.slane %v2984, 5
        %v2998 = vsel %vm2929, %v2995, %v2997
        %v3003 = vadd.f32 %v2882, %v2992
        %v3004 = vadd.f32 %v2883, %v2994
        %v3005 = vadd.f32 %v2884, %v2996
        %v3006 = vadd.f32 %v2885, %v2998
        %s3007 = sadd.s32 %s2509, 19
        %s3008 = sld [smem:[#allocation10 + %s3007]]
        %v3009 = vstv %s3008
        %v3010 = vmul.f32 %v2500, %v3009
        %v3011 = vmul.f32 %v2501, %v3009
        %v3012 = vmul.f32 %v2502, %v3009
        %v3013 = vmul.f32 %v2503, %v3009
        %v3014 = vmul.f32 %v2504, %v3009
        %v3020 = vrot.slane %v3010, 5
        %v3021 = vrot.slane %v3011, 5
        %v3022 = vsel %vm2929, %v3020, %v3021
        %v3023 = vrot.slane %v3012, 5
        %v3024 = vsel %vm2929, %v3021, %v3023
        %v3025 = vrot.slane %v3013, 5
        %v3026 = vsel %vm2929, %v3023, %v3025
        %v3027 = vrot.slane %v3014, 5
        %v3028 = vsel %vm2929, %v3025, %v3027
        %v3033 = vadd.f32 %v2912, %v3022
        %v3034 = vadd.f32 %v2913, %v3024
        %v3035 = vadd.f32 %v2914, %v3026
        %v3036 = vadd.f32 %v2915, %v3028
        %s3037 = sadd.s32 %s2509, 20
        %s3038 = sld [smem:[#allocation10 + %s3037]]
        %v3039 = vstv %s3038
        %v3040 = vmul.f32 %v2500, %v3039
        %v3041 = vmul.f32 %v2501, %v3039
        %v3042 = vmul.f32 %v2502, %v3039
        %v3043 = vmul.f32 %v2503, %v3039
        %v3044 = vmul.f32 %v2504, %v3039
        %vm3050 = vcmask 1041408
        %v3051 = vrot.slane %v3040, 6
        %v3052 = vrot.slane %v3041, 6
        %v3053 = vsel %vm3050, %v3051, %v3052
        %v3054 = vrot.slane %v3042, 6
        %v3055 = vsel %vm3050, %v3052, %v3054
        %v3056 = vrot.slane %v3043, 6
        %v3057 = vsel %vm3050, %v3054, %v3056
        %v3058 = vrot.slane %v3044, 6
        %v3059 = vsel %vm3050, %v3056, %v3058
        %v3064 = vadd.f32 %v2943, %v3053
        %v3065 = vadd.f32 %v2944, %v3055
        %v3066 = vadd.f32 %v2945, %v3057
        %v3067 = vadd.f32 %v2946, %v3059
        %s3068 = sadd.s32 %s2509, 21
        %s3069 = sld [smem:[#allocation10 + %s3068]]
        %v3070 = vstv %s3069
        %v3071 = vmul.f32 %v2500, %v3070
        %v3072 = vmul.f32 %v2501, %v3070
        %v3073 = vmul.f32 %v2502, %v3070
        %v3074 = vmul.f32 %v2503, %v3070
        %v3075 = vmul.f32 %v2504, %v3070
        %v3081 = vrot.slane %v3071, 6
        %v3082 = vrot.slane %v3072, 6
        %v3083 = vsel %vm3050, %v3081, %v3082
        %v3084 = vrot.slane %v3073, 6
        %v3085 = vsel %vm3050, %v3082, %v3084
        %v3086 = vrot.slane %v3074, 6
        %v3087 = vsel %vm3050, %v3084, %v3086
        %v3088 = vrot.slane %v3075, 6
        %v3089 = vsel %vm3050, %v3086, %v3088
        %v3094 = vadd.f32 %v2973, %v3083
        %v3095 = vadd.f32 %v2974, %v3085
        %v3096 = vadd.f32 %v2975, %v3087
        %v3097 = vadd.f32 %v2976, %v3089
        %s3098 = sadd.s32 %s2509, 22
        %s3099 = sld [smem:[#allocation10 + %s3098]]
        %v3100 = vstv %s3099
        %v3101 = vmul.f32 %v2500, %v3100
        %v3102 = vmul.f32 %v2501, %v3100
        %v3103 = vmul.f32 %v2502, %v3100
        %v3104 = vmul.f32 %v2503, %v3100
        %v3105 = vmul.f32 %v2504, %v3100
        %v3111 = vrot.slane %v3101, 6
        %v3112 = vrot.slane %v3102, 6
        %v3113 = vsel %vm3050, %v3111, %v3112
        %v3114 = vrot.slane %v3103, 6
        %v3115 = vsel %vm3050, %v3112, %v3114
        %v3116 = vrot.slane %v3104, 6
        %v3117 = vsel %vm3050, %v3114, %v3116
        %v3118 = vrot.slane %v3105, 6
        %v3119 = vsel %vm3050, %v3116, %v3118
        %v3124 = vadd.f32 %v3003, %v3113
        %v3125 = vadd.f32 %v3004, %v3115
        %v3126 = vadd.f32 %v3005, %v3117
        %v3127 = vadd.f32 %v3006, %v3119
        %s3128 = sadd.s32 %s2509, 23
        %s3129 = sld [smem:[#allocation10 + %s3128]]
        %v3130 = vstv %s3129
        %v3131 = vmul.f32 %v2500, %v3130
        %v3132 = vmul.f32 %v2501, %v3130
        %v3133 = vmul.f32 %v2502, %v3130
        %v3134 = vmul.f32 %v2503, %v3130
        %v3135 = vmul.f32 %v2504, %v3130
        %v3141 = vrot.slane %v3131, 6
        %v3142 = vrot.slane %v3132, 6
        %v3143 = vsel %vm3050, %v3141, %v3142
        %v3144 = vrot.slane %v3133, 6
        %v3145 = vsel %vm3050, %v3142, %v3144
        %v3146 = vrot.slane %v3134, 6
        %v3147 = vsel %vm3050, %v3144, %v3146
        %v3148 = vrot.slane %v3135, 6
        %v3149 = vsel %vm3050, %v3146, %v3148
        %v3154 = vadd.f32 %v3033, %v3143
        %v3155 = vadd.f32 %v3034, %v3145
        %v3156 = vadd.f32 %v3035, %v3147
        %v3157 = vadd.f32 %v3036, %v3149
        %s3158 = sadd.s32 %s2509, 24
        %s3159 = sld [smem:[#allocation10 + %s3158]]
        %v3160 = vstv %s3159
        %v3161 = vmul.f32 %v2504, %v3160
        %v3162 = vmul.f32 %v2505, %v3160
        %v3163 = vmul.f32 %v2506, %v3160
        %v3164 = vmul.f32 %v2507, %v3160
        %v3165 = vadd.f32 %v3064, %v3161
        %v3166 = vadd.f32 %v3065, %v3162
        %v3167 = vadd.f32 %v3066, %v3163
        %v3168 = vadd.f32 %v3067, %v3164
        %s3169 = sadd.s32 %s2509, 25
        %s3170 = sld [smem:[#allocation10 + %s3169]]
        %v3171 = vstv %s3170
        %v3172 = vmul.f32 %v2504, %v3171
        %v3173 = vmul.f32 %v2505, %v3171
        %v3174 = vmul.f32 %v2506, %v3171
        %v3175 = vmul.f32 %v2507, %v3171
        %v3176 = vadd.f32 %v3094, %v3172
        %v3177 = vadd.f32 %v3095, %v3173
        %v3178 = vadd.f32 %v3096, %v3174
        %v3179 = vadd.f32 %v3097, %v3175
        %s3180 = sadd.s32 %s2509, 26
        %s3181 = sld [smem:[#allocation10 + %s3180]]
        %v3182 = vstv %s3181
        %v3183 = vmul.f32 %v2504, %v3182
        %v3184 = vmul.f32 %v2505, %v3182
        %v3185 = vmul.f32 %v2506, %v3182
        %v3186 = vmul.f32 %v2507, %v3182
        %v3187 = vadd.f32 %v3124, %v3183
        %v3188 = vadd.f32 %v3125, %v3184
        %v3189 = vadd.f32 %v3126, %v3185
        %v3190 = vadd.f32 %v3127, %v3186
        %s3191 = sadd.s32 %s2509, 27
        %s3192 = sld [smem:[#allocation10 + %s3191]]
        %v3193 = vstv %s3192
        %v3194 = vmul.f32 %v2504, %v3193
        %v3195 = vmul.f32 %v2505, %v3193
        %v3196 = vmul.f32 %v2506, %v3193
        %v3197 = vmul.f32 %v2507, %v3193
        %v3198 = vadd.f32 %v3154, %v3194
        %v3199 = vadd.f32 %v3155, %v3195
        %v3200 = vadd.f32 %v3156, %v3196
        %v3201 = vadd.f32 %v3157, %v3197
        %s3202 = sadd.s32 %s2509, 28
        %s3203 = sld [smem:[#allocation10 + %s3202]]
        %v3204 = vstv %s3203
        %v3205 = vmul.f32 %v2504, %v3204
        %v3206 = vmul.f32 %v2505, %v3204
        %v3207 = vmul.f32 %v2506, %v3204
        %v3208 = vmul.f32 %v2507, %v3204
        %v3209 = vmul.f32 %v2508, %v3204
        %v3215 = vrot.slane %v3205, 1
        %v3216 = vrot.slane %v3206, 1
        %v3217 = vsel %vm2566, %v3215, %v3216
        %v3218 = vrot.slane %v3207, 1
        %v3219 = vsel %vm2566, %v3216, %v3218
        %v3220 = vrot.slane %v3208, 1
        %v3221 = vsel %vm2566, %v3218, %v3220
        %v3222 = vrot.slane %v3209, 1
        %v3223 = vsel %vm2566, %v3220, %v3222
        %v3228 = vadd.f32 %v3165, %v3217
        %v3229 = vadd.f32 %v3166, %v3219
        %v3230 = vadd.f32 %v3167, %v3221
        %v3231 = vadd.f32 %v3168, %v3223
        %s3232 = sadd.s32 %s2509, 29
        %s3233 = sld [smem:[#allocation10 + %s3232]]
        %v3234 = vstv %s3233
        %v3235 = vmul.f32 %v2504, %v3234
        %v3236 = vmul.f32 %v2505, %v3234
        %v3237 = vmul.f32 %v2506, %v3234
        %v3238 = vmul.f32 %v2507, %v3234
        %v3239 = vmul.f32 %v2508, %v3234
        %v3245 = vrot.slane %v3235, 1
        %v3246 = vrot.slane %v3236, 1
        %v3247 = vsel %vm2566, %v3245, %v3246
        %v3248 = vrot.slane %v3237, 1
        %v3249 = vsel %vm2566, %v3246, %v3248
        %v3250 = vrot.slane %v3238, 1
        %v3251 = vsel %vm2566, %v3248, %v3250
        %v3252 = vrot.slane %v3239, 1
        %v3253 = vsel %vm2566, %v3250, %v3252
        %v3258 = vadd.f32 %v3176, %v3247
        %v3259 = vadd.f32 %v3177, %v3249
        %v3260 = vadd.f32 %v3178, %v3251
        %v3261 = vadd.f32 %v3179, %v3253
        %s3262 = sadd.s32 %s2509, 30
        %s3263 = sld [smem:[#allocation10 + %s3262]]
        %v3264 = vstv %s3263
        %v3265 = vmul.f32 %v2504, %v3264
        %v3266 = vmul.f32 %v2505, %v3264
        %v3267 = vmul.f32 %v2506, %v3264
        %v3268 = vmul.f32 %v2507, %v3264
        %v3269 = vmul.f32 %v2508, %v3264
        %v3275 = vrot.slane %v3265, 1
        %v3276 = vrot.slane %v3266, 1
        %v3277 = vsel %vm2566, %v3275, %v3276
        %v3278 = vrot.slane %v3267, 1
        %v3279 = vsel %vm2566, %v3276, %v3278
        %v3280 = vrot.slane %v3268, 1
        %v3281 = vsel %vm2566, %v3278, %v3280
        %v3282 = vrot.slane %v3269, 1
        %v3283 = vsel %vm2566, %v3280, %v3282
        %v3288 = vadd.f32 %v3187, %v3277
        %v3289 = vadd.f32 %v3188, %v3279
        %v3290 = vadd.f32 %v3189, %v3281
        %v3291 = vadd.f32 %v3190, %v3283
        %s3292 = sadd.s32 %s2509, 31
        %s3293 = sld [smem:[#allocation10 + %s3292]]
        %v3294 = vstv %s3293
        %v3295 = vmul.f32 %v2504, %v3294
        %v3296 = vmul.f32 %v2505, %v3294
        %v3297 = vmul.f32 %v2506, %v3294
        %v3298 = vmul.f32 %v2507, %v3294
        %v3299 = vmul.f32 %v2508, %v3294
        %v3305 = vrot.slane %v3295, 1
        %v3306 = vrot.slane %v3296, 1
        %v3307 = vsel %vm2566, %v3305, %v3306
        %v3308 = vrot.slane %v3297, 1
        %v3309 = vsel %vm2566, %v3306, %v3308
        %v3310 = vrot.slane %v3298, 1
        %v3311 = vsel %vm2566, %v3308, %v3310
        %v3312 = vrot.slane %v3299, 1
        %v3313 = vsel %vm2566, %v3310, %v3312
        %v3318 = vadd.f32 %v3198, %v3307
        %v3319 = vadd.f32 %v3199, %v3309
        %v3320 = vadd.f32 %v3200, %v3311
        %v3321 = vadd.f32 %v3201, %v3313
        %s3322 = sadd.s32 %s2509, 32
        %s3323 = sld [smem:[#allocation10 + %s3322]]
        %v3324 = vstv %s3323
        %v3325 = vmul.f32 %v2504, %v3324
        %v3326 = vmul.f32 %v2505, %v3324
        %v3327 = vmul.f32 %v2506, %v3324
        %v3328 = vmul.f32 %v2507, %v3324
        %v3329 = vmul.f32 %v2508, %v3324
        %v3335 = vrot.slane %v3325, 2
        %v3336 = vrot.slane %v3326, 2
        %v3337 = vsel %vm2687, %v3335, %v3336
        %v3338 = vrot.slane %v3327, 2
        %v3339 = vsel %vm2687, %v3336, %v3338
        %v3340 = vrot.slane %v3328, 2
        %v3341 = vsel %vm2687, %v3338, %v3340
        %v3342 = vrot.slane %v3329, 2
        %v3343 = vsel %vm2687, %v3340, %v3342
        %v3348 = vadd.f32 %v3228, %v3337
        %v3349 = vadd.f32 %v3229, %v3339
        %v3350 = vadd.f32 %v3230, %v3341
        %v3351 = vadd.f32 %v3231, %v3343
        %s3352 = sadd.s32 %s2509, 33
        %s3353 = sld [smem:[#allocation10 + %s3352]]
        %v3354 = vstv %s3353
        %v3355 = vmul.f32 %v2504, %v3354
        %v3356 = vmul.f32 %v2505, %v3354
        %v3357 = vmul.f32 %v2506, %v3354
        %v3358 = vmul.f32 %v2507, %v3354
        %v3359 = vmul.f32 %v2508, %v3354
        %v3365 = vrot.slane %v3355, 2
        %v3366 = vrot.slane %v3356, 2
        %v3367 = vsel %vm2687, %v3365, %v3366
        %v3368 = vrot.slane %v3357, 2
        %v3369 = vsel %vm2687, %v3366, %v3368
        %v3370 = vrot.slane %v3358, 2
        %v3371 = vsel %vm2687, %v3368, %v3370
        %v3372 = vrot.slane %v3359, 2
        %v3373 = vsel %vm2687, %v3370, %v3372
        %v3378 = vadd.f32 %v3258, %v3367
        %v3379 = vadd.f32 %v3259, %v3369
        %v3380 = vadd.f32 %v3260, %v3371
        %v3381 = vadd.f32 %v3261, %v3373
        %s3382 = sadd.s32 %s2509, 34
        %s3383 = sld [smem:[#allocation10 + %s3382]]
        %v3384 = vstv %s3383
        %v3385 = vmul.f32 %v2504, %v3384
        %v3386 = vmul.f32 %v2505, %v3384
        %v3387 = vmul.f32 %v2506, %v3384
        %v3388 = vmul.f32 %v2507, %v3384
        %v3389 = vmul.f32 %v2508, %v3384
        %v3395 = vrot.slane %v3385, 2
        %v3396 = vrot.slane %v3386, 2
        %v3397 = vsel %vm2687, %v3395, %v3396
        %v3398 = vrot.slane %v3387, 2
        %v3399 = vsel %vm2687, %v3396, %v3398
        %v3400 = vrot.slane %v3388, 2
        %v3401 = vsel %vm2687, %v3398, %v3400
        %v3402 = vrot.slane %v3389, 2
        %v3403 = vsel %vm2687, %v3400, %v3402
        %v3408 = vadd.f32 %v3288, %v3397
        %v3409 = vadd.f32 %v3289, %v3399
        %v3410 = vadd.f32 %v3290, %v3401
        %v3411 = vadd.f32 %v3291, %v3403
        %s3412 = sadd.s32 %s2509, 35
        %s3413 = sld [smem:[#allocation10 + %s3412]]
        %v3414 = vstv %s3413
        %v3415 = vmul.f32 %v2504, %v3414
        %v3416 = vmul.f32 %v2505, %v3414
        %v3417 = vmul.f32 %v2506, %v3414
        %v3418 = vmul.f32 %v2507, %v3414
        %v3419 = vmul.f32 %v2508, %v3414
        %v3425 = vrot.slane %v3415, 2
        %v3426 = vrot.slane %v3416, 2
        %v3427 = vsel %vm2687, %v3425, %v3426
        %v3428 = vrot.slane %v3417, 2
        %v3429 = vsel %vm2687, %v3426, %v3428
        %v3430 = vrot.slane %v3418, 2
        %v3431 = vsel %vm2687, %v3428, %v3430
        %v3432 = vrot.slane %v3419, 2
        %v3433 = vsel %vm2687, %v3430, %v3432
        %v3438 = vadd.f32 %v3318, %v3427
        %v3439 = vadd.f32 %v3319, %v3429
        %v3440 = vadd.f32 %v3320, %v3431
        %v3441 = vadd.f32 %v3321, %v3433
      $region68: #{tpu_custom_call.1} parent=60 // loop_footer
        %s2477 = sadd.s32 1, %s2473
      $region69: #{tpu_custom_call.1} parent=60 // loop_footer_branch
        %2472 = sbr.rel target = $region65
      $region70: #{tpu_custom_call.1} parent=60 // loop_exit
        _
      %s3442 = sld [smem:[#allocation11]]
      %v3443 = vstv %s3442
      %v3444 = vadd.f32 %v2478, %v3443
      %v3445 = vadd.f32 %v2479, %v3443
      %v3446 = vadd.f32 %v2480, %v3443
      %v3447 = vadd.f32 %v2481, %v3443
      %v3448 = vmax.f32 %v3444, 0.0
      %v3449 = vmax.f32 %v3445, 0.0
      %v3450 = vmax.f32 %v3446, 0.0
      %v3451 = vmax.f32 %v3447, 0.0
      %s3452 = scalar_lea.vmem [#allocation3], %s2471
      %3453 = vst [vmem:[%s3452] sm:$0xff] %v3448
      %3454 = vst [vmem:[%s3452 + $0x8] sm:$0xff] %v3449
      %3455 = vst [vmem:[%s3452 + $0x10] sm:$0xff] %v3450
      %3456 = vst [vmem:[%s3452 + $0x18] sm:$0xff] %v3451
      %s3457 = sld [smem:[#allocation11 + $0x1]]
      %v3458 = vstv %s3457
      %v3459 = vadd.f32 %v2482, %v3458
      %v3460 = vadd.f32 %v2483, %v3458
      %v3461 = vadd.f32 %v2484, %v3458
      %v3462 = vadd.f32 %v2485, %v3458
      %v3463 = vmax.f32 %v3459, 0.0
      %v3464 = vmax.f32 %v3460, 0.0
      %v3465 = vmax.f32 %v3461, 0.0
      %v3466 = vmax.f32 %v3462, 0.0
      %s3467 = sadd.s32 %s2471, 672
      %s3468 = scalar_lea.vmem [#allocation3], %s3467
      %3469 = vst [vmem:[%s3468] sm:$0xff] %v3463
      %3470 = vst [vmem:[%s3468 + $0x8] sm:$0xff] %v3464
      %3471 = vst [vmem:[%s3468 + $0x10] sm:$0xff] %v3465
      %3472 = vst [vmem:[%s3468 + $0x18] sm:$0xff] %v3466
      %s3473 = sld [smem:[#allocation11 + $0x2]]
      %v3474 = vstv %s3473
      %v3475 = vadd.f32 %v2486, %v3474
      %v3476 = vadd.f32 %v2487, %v3474
      %v3477 = vadd.f32 %v2488, %v3474
      %v3478 = vadd.f32 %v2489, %v3474
      %v3479 = vmax.f32 %v3475, 0.0
      %v3480 = vmax.f32 %v3476, 0.0
      %v3481 = vmax.f32 %v3477, 0.0
      %v3482 = vmax.f32 %v3478, 0.0
      %s3483 = sadd.s32 %s2471, 1344
      %s3484 = scalar_lea.vmem [#allocation3], %s3483
      %3485 = vst [vmem:[%s3484] sm:$0xff] %v3479
      %3486 = vst [vmem:[%s3484 + $0x8] sm:$0xff] %v3480
      %3487 = vst [vmem:[%s3484 + $0x10] sm:$0xff] %v3481
      %3488 = vst [vmem:[%s3484 + $0x18] sm:$0xff] %v3482
      %s3489 = sld [smem:[#allocation11 + $0x3]]
      %v3490 = vstv %s3489
      %v3491 = vadd.f32 %v2490, %v3490
      %v3492 = vadd.f32 %v2491, %v3490
      %v3493 = vadd.f32 %v2492, %v3490
      %v3494 = vadd.f32 %v2493, %v3490
      %v3495 = vmax.f32 %v3491, 0.0
      %v3496 = vmax.f32 %v3492, 0.0
      %v3497 = vmax.f32 %v3493, 0.0
      %v3498 = vmax.f32 %v3494, 0.0
      %s3499 = sadd.s32 %s2471, 2016
      %s3500 = scalar_lea.vmem [#allocation3], %s3499
      %3501 = vst [vmem:[%s3500] sm:$0xff] %v3495
      %3502 = vst [vmem:[%s3500 + $0x8] sm:$0xff] %v3496
      %3503 = vst [vmem:[%s3500 + $0x10] sm:$0xff] %v3497
      %3504 = vst [vmem:[%s3500 + $0x18] sm:$0xff] %v3498
    $region61: #{tpu_custom_call.1} parent=1 // loop_footer
      %s2470 = sadd.s32 1, %s2466
    $region62: #{tpu_custom_call.1} parent=1 // loop_footer_branch
      %2465 = sbr.rel target = $region58
    $region63: #{tpu_custom_call.1} parent=1 // loop_exit
      _
    %v3505 = vld [vmem:[%s5] sm:$0xff]
    %v3506 = vld [vmem:[%s5 + $0x8] sm:$0xff]
    %v3507 = vld [vmem:[%s5 + $0x10] sm:$0xff]
    %v3508 = vld [vmem:[%s5 + $0x18] sm:$0xff]
    %v3509 = vld [vmem:[%s5 + $0x20] sm:$0xff]
    %v3510 = vld [vmem:[%s5 + $0x28] sm:$0xff]
    %v3511 = vld [vmem:[%s5 + $0x30] sm:$0x3]
    %v3512 = vld [vmem:[%s5 + $0x38] sm:$0x3]
    %v3513 = vld [vmem:[%s5 + $0x40] sm:$0x3]
    %v3514 = vld [vmem:[%s5 + $0x48] sm:$0x3]
    %v3515 = vld [vmem:[%s5 + $0x50] sm:$0x3]
    %v3516 = vld [vmem:[%s5 + $0x58] sm:$0x3]
    %v3517 = vld [vmem:[#allocation3] sm:$0xff]
    %v3518 = vld [vmem:[#allocation3 + $0x8] sm:$0xff]
    %v3519 = vld [vmem:[#allocation3 + $0x10] sm:$0xff]
    %v3520 = vld [vmem:[#allocation3 + $0x18] sm:$0xff]
    %v3521 = vld [vmem:[#allocation3 + $0x20] sm:$0xff]
    %v3522 = vld [vmem:[#allocation3 + $0x28] sm:$0xff]
    %v3523 = vld [vmem:[#allocation3 + $0x30] sm:$0xff]
    %v3524 = vld [vmem:[#allocation3 + $0x38] sm:$0xff]
    %v3525 = vld [vmem:[#allocation3 + $0x40] sm:$0xff]
    %v3526 = vld [vmem:[#allocation3 + $0x48] sm:$0xff]
    %v3527 = vld [vmem:[#allocation3 + $0x50] sm:$0xff]
    %v3528 = vld [vmem:[#allocation3 + $0x58] sm:$0xff]
    %v3529 = vld [vmem:[#allocation3 + $0x60] sm:$0xff]
    %v3530 = vld [vmem:[#allocation3 + $0x68] sm:$0xff]
    %v3531 = vld [vmem:[#allocation3 + $0x70] sm:$0xff]
    %v3532 = vld [vmem:[#allocation3 + $0x78] sm:$0xff]
    %v3533 = vld [vmem:[#allocation3 + $0x80] sm:$0xff]
    %v3534 = vld [vmem:[#allocation3 + $0x88] sm:$0xff]
    %v3535 = vld [vmem:[#allocation3 + $0x90] sm:$0xff]
    %v3536 = vld [vmem:[#allocation3 + $0x98] sm:$0xff]
    %v3537 = vld [vmem:[#allocation3 + $0xa0] sm:$0xff]
    %v3538 = vld [vmem:[#allocation3 + $0xa8] sm:$0xff]
    %v3539 = vld [vmem:[#allocation3 + $0xb0] sm:$0xff]
    %v3540 = vld [vmem:[#allocation3 + $0xb8] sm:$0xff]
    %v3541 = vld [vmem:[#allocation3 + $0xc0] sm:$0xff]
    %v3542 = vld [vmem:[#allocation3 + $0xc8] sm:$0xff]
    %v3543 = vld [vmem:[#allocation3 + $0xd0] sm:$0xff]
    %v3544 = vld [vmem:[#allocation3 + $0xd8] sm:$0xff]
    %v3545 = vld [vmem:[#allocation3 + $0xe0] sm:$0xff]
    %v3546 = vld [vmem:[#allocation3 + $0xe8] sm:$0xff]
    %v3547 = vld [vmem:[#allocation3 + $0xf0] sm:$0xff]
    %v3548 = vld [vmem:[#allocation3 + $0xf8] sm:$0xff]
    %v3549 = vld [vmem:[#allocation3 + $0x100] sm:$0xff]
    %v3550 = vld [vmem:[#allocation3 + $0x108] sm:$0xff]
    %v3551 = vld [vmem:[#allocation3 + $0x110] sm:$0xff]
    %v3552 = vld [vmem:[#allocation3 + $0x118] sm:$0xff]
    %v3553 = vld [vmem:[#allocation3 + $0x120] sm:$0xff]
    %v3554 = vld [vmem:[#allocation3 + $0x128] sm:$0xff]
    %v3555 = vld [vmem:[#allocation3 + $0x130] sm:$0xff]
    %v3556 = vld [vmem:[#allocation3 + $0x138] sm:$0xff]
    %v3557 = vld [vmem:[#allocation3 + $0x140] sm:$0xff]
    %v3558 = vld [vmem:[#allocation3 + $0x148] sm:$0xff]
    %v3559 = vld [vmem:[#allocation3 + $0x150] sm:$0xff]
    %v3560 = vld [vmem:[#allocation3 + $0x158] sm:$0xff]
    %v3561 = vld [vmem:[#allocation3 + $0x160] sm:$0xff]
    %v3562 = vld [vmem:[#allocation3 + $0x168] sm:$0xff]
    %v3563 = vld [vmem:[#allocation3 + $0x170] sm:$0xff]
    %v3564 = vld [vmem:[#allocation3 + $0x178] sm:$0xff]
    %v3565 = vld [vmem:[#allocation3 + $0x180] sm:$0xff]
    %v3566 = vld [vmem:[#allocation3 + $0x188] sm:$0xff]
    %v3567 = vld [vmem:[#allocation3 + $0x190] sm:$0xff]
    %v3568 = vld [vmem:[#allocation3 + $0x198] sm:$0xff]
    %v3569 = vld [vmem:[#allocation3 + $0x1a0] sm:$0xff]
    %v3570 = vld [vmem:[#allocation3 + $0x1a8] sm:$0xff]
    %v3571 = vld [vmem:[#allocation3 + $0x1b0] sm:$0xff]
    %v3572 = vld [vmem:[#allocation3 + $0x1b8] sm:$0xff]
    %v3573 = vld [vmem:[#allocation3 + $0x1c0] sm:$0xff]
    %v3574 = vld [vmem:[#allocation3 + $0x1c8] sm:$0xff]
    %v3575 = vld [vmem:[#allocation3 + $0x1d0] sm:$0xff]
    %v3576 = vld [vmem:[#allocation3 + $0x1d8] sm:$0xff]
    %v3577 = vld [vmem:[#allocation3 + $0x1e0] sm:$0xff]
    %v3578 = vld [vmem:[#allocation3 + $0x1e8] sm:$0xff]
    %v3579 = vld [vmem:[#allocation3 + $0x1f0] sm:$0xff]
    %v3580 = vld [vmem:[#allocation3 + $0x1f8] sm:$0xff]
    %v3581 = vld [vmem:[#allocation3 + $0x200] sm:$0xff]
    %v3582 = vld [vmem:[#allocation3 + $0x208] sm:$0xff]
    %v3583 = vld [vmem:[#allocation3 + $0x210] sm:$0xff]
    %v3584 = vld [vmem:[#allocation3 + $0x218] sm:$0xff]
    %v3585 = vld [vmem:[#allocation3 + $0x220] sm:$0xff]
    %v3586 = vld [vmem:[#allocation3 + $0x228] sm:$0xff]
    %v3587 = vld [vmem:[#allocation3 + $0x230] sm:$0xff]
    %v3588 = vld [vmem:[#allocation3 + $0x238] sm:$0xff]
    %v3589 = vld [vmem:[#allocation3 + $0x240] sm:$0xff]
    %v3590 = vld [vmem:[#allocation3 + $0x248] sm:$0xff]
    %v3591 = vld [vmem:[#allocation3 + $0x250] sm:$0xff]
    %v3592 = vld [vmem:[#allocation3 + $0x258] sm:$0xff]
    %v3593 = vld [vmem:[#allocation3 + $0x260] sm:$0xff]
    %v3594 = vld [vmem:[#allocation3 + $0x268] sm:$0xff]
    %v3595 = vld [vmem:[#allocation3 + $0x270] sm:$0xff]
    %v3596 = vld [vmem:[#allocation3 + $0x278] sm:$0xff]
    %v3597 = vld [vmem:[#allocation3 + $0x280] sm:$0xff]
    %v3598 = vld [vmem:[#allocation3 + $0x288] sm:$0xff]
    %v3599 = vld [vmem:[#allocation3 + $0x290] sm:$0xff]
    %v3600 = vld [vmem:[#allocation3 + $0x298] sm:$0xff]
    %s3601 = scalar_lea.vmem %s5, 96
    %v3602 = vld [vmem:[%s3601] sm:$0xff]
    %v3603 = vld [vmem:[%s3601 + $0x8] sm:$0xff]
    %v3604 = vld [vmem:[%s3601 + $0x10] sm:$0xff]
    %v3605 = vld [vmem:[%s3601 + $0x18] sm:$0xff]
    %v3606 = vld [vmem:[%s3601 + $0x20] sm:$0xff]
    %v3607 = vld [vmem:[%s3601 + $0x28] sm:$0xff]
    %v3608 = vld [vmem:[%s3601 + $0x30] sm:$0x3]
    %v3609 = vld [vmem:[%s3601 + $0x38] sm:$0x3]
    %v3610 = vld [vmem:[%s3601 + $0x40] sm:$0x3]
    %v3611 = vld [vmem:[%s3601 + $0x48] sm:$0x3]
    %v3612 = vld [vmem:[%s3601 + $0x50] sm:$0x3]
    %v3613 = vld [vmem:[%s3601 + $0x58] sm:$0x3]
    %s3614 = scalar_lea.vmem [#allocation3], 672
    %v3615 = vld [vmem:[%s3614] sm:$0xff]
    %v3616 = vld [vmem:[%s3614 + $0x8] sm:$0xff]
    %v3617 = vld [vmem:[%s3614 + $0x10] sm:$0xff]
    %v3618 = vld [vmem:[%s3614 + $0x18] sm:$0xff]
    %v3619 = vld [vmem:[%s3614 + $0x20] sm:$0xff]
    %v3620 = vld [vmem:[%s3614 + $0x28] sm:$0xff]
    %v3621 = vld [vmem:[%s3614 + $0x30] sm:$0xff]
    %v3622 = vld [vmem:[%s3614 + $0x38] sm:$0xff]
    %v3623 = vld [vmem:[%s3614 + $0x40] sm:$0xff]
    %v3624 = vld [vmem:[%s3614 + $0x48] sm:$0xff]
    %v3625 = vld [vmem:[%s3614 + $0x50] sm:$0xff]
    %v3626 = vld [vmem:[%s3614 + $0x58] sm:$0xff]
    %v3627 = vld [vmem:[%s3614 + $0x60] sm:$0xff]
    %v3628 = vld [vmem:[%s3614 + $0x68] sm:$0xff]
    %v3629 = vld [vmem:[%s3614 + $0x70] sm:$0xff]
    %v3630 = vld [vmem:[%s3614 + $0x78] sm:$0xff]
    %v3631 = vld [vmem:[%s3614 + $0x80] sm:$0xff]
    %v3632 = vld [vmem:[%s3614 + $0x88] sm:$0xff]
    %v3633 = vld [vmem:[%s3614 + $0x90] sm:$0xff]
    %v3634 = vld [vmem:[%s3614 + $0x98] sm:$0xff]
    %v3635 = vld [vmem:[%s3614 + $0xa0] sm:$0xff]
    %v3636 = vld [vmem:[%s3614 + $0xa8] sm:$0xff]
    %v3637 = vld [vmem:[%s3614 + $0xb0] sm:$0xff]
    %v3638 = vld [vmem:[%s3614 + $0xb8] sm:$0xff]
    %v3639 = vld [vmem:[%s3614 + $0xc0] sm:$0xff]
    %v3640 = vld [vmem:[%s3614 + $0xc8] sm:$0xff]
    %v3641 = vld [vmem:[%s3614 + $0xd0] sm:$0xff]
    %v3642 = vld [vmem:[%s3614 + $0xd8] sm:$0xff]
    %v3643 = vld [vmem:[%s3614 + $0xe0] sm:$0xff]
    %v3644 = vld [vmem:[%s3614 + $0xe8] sm:$0xff]
    %v3645 = vld [vmem:[%s3614 + $0xf0] sm:$0xff]
    %v3646 = vld [vmem:[%s3614 + $0xf8] sm:$0xff]
    %v3647 = vld [vmem:[%s3614 + $0x100] sm:$0xff]
    %v3648 = vld [vmem:[%s3614 + $0x108] sm:$0xff]
    %v3649 = vld [vmem:[%s3614 + $0x110] sm:$0xff]
    %v3650 = vld [vmem:[%s3614 + $0x118] sm:$0xff]
    %v3651 = vld [vmem:[%s3614 + $0x120] sm:$0xff]
    %v3652 = vld [vmem:[%s3614 + $0x128] sm:$0xff]
    %v3653 = vld [vmem:[%s3614 + $0x130] sm:$0xff]
    %v3654 = vld [vmem:[%s3614 + $0x138] sm:$0xff]
    %v3655 = vld [vmem:[%s3614 + $0x140] sm:$0xff]
    %v3656 = vld [vmem:[%s3614 + $0x148] sm:$0xff]
    %v3657 = vld [vmem:[%s3614 + $0x150] sm:$0xff]
    %v3658 = vld [vmem:[%s3614 + $0x158] sm:$0xff]
    %v3659 = vld [vmem:[%s3614 + $0x160] sm:$0xff]
    %v3660 = vld [vmem:[%s3614 + $0x168] sm:$0xff]
    %v3661 = vld [vmem:[%s3614 + $0x170] sm:$0xff]
    %v3662 = vld [vmem:[%s3614 + $0x178] sm:$0xff]
    %v3663 = vld [vmem:[%s3614 + $0x180] sm:$0xff]
    %v3664 = vld [vmem:[%s3614 + $0x188] sm:$0xff]
    %v3665 = vld [vmem:[%s3614 + $0x190] sm:$0xff]
    %v3666 = vld [vmem:[%s3614 + $0x198] sm:$0xff]
    %v3667 = vld [vmem:[%s3614 + $0x1a0] sm:$0xff]
    %v3668 = vld [vmem:[%s3614 + $0x1a8] sm:$0xff]
    %v3669 = vld [vmem:[%s3614 + $0x1b0] sm:$0xff]
    %v3670 = vld [vmem:[%s3614 + $0x1b8] sm:$0xff]
    %v3671 = vld [vmem:[%s3614 + $0x1c0] sm:$0xff]
    %v3672 = vld [vmem:[%s3614 + $0x1c8] sm:$0xff]
    %v3673 = vld [vmem:[%s3614 + $0x1d0] sm:$0xff]
    %v3674 = vld [vmem:[%s3614 + $0x1d8] sm:$0xff]
    %v3675 = vld [vmem:[%s3614 + $0x1e0] sm:$0xff]
    %v3676 = vld [vmem:[%s3614 + $0x1e8] sm:$0xff]
    %v3677 = vld [vmem:[%s3614 + $0x1f0] sm:$0xff]
    %v3678 = vld [vmem:[%s3614 + $0x1f8] sm:$0xff]
    %v3679 = vld [vmem:[%s3614 + $0x200] sm:$0xff]
    %v3680 = vld [vmem:[%s3614 + $0x208] sm:$0xff]
    %v3681 = vld [vmem:[%s3614 + $0x210] sm:$0xff]
    %v3682 = vld [vmem:[%s3614 + $0x218] sm:$0xff]
    %v3683 = vld [vmem:[%s3614 + $0x220] sm:$0xff]
    %v3684 = vld [vmem:[%s3614 + $0x228] sm:$0xff]
    %v3685 = vld [vmem:[%s3614 + $0x230] sm:$0xff]
    %v3686 = vld [vmem:[%s3614 + $0x238] sm:$0xff]
    %v3687 = vld [vmem:[%s3614 + $0x240] sm:$0xff]
    %v3688 = vld [vmem:[%s3614 + $0x248] sm:$0xff]
    %v3689 = vld [vmem:[%s3614 + $0x250] sm:$0xff]
    %v3690 = vld [vmem:[%s3614 + $0x258] sm:$0xff]
    %v3691 = vld [vmem:[%s3614 + $0x260] sm:$0xff]
    %v3692 = vld [vmem:[%s3614 + $0x268] sm:$0xff]
    %v3693 = vld [vmem:[%s3614 + $0x270] sm:$0xff]
    %v3694 = vld [vmem:[%s3614 + $0x278] sm:$0xff]
    %v3695 = vld [vmem:[%s3614 + $0x280] sm:$0xff]
    %v3696 = vld [vmem:[%s3614 + $0x288] sm:$0xff]
    %v3697 = vld [vmem:[%s3614 + $0x290] sm:$0xff]
    %v3698 = vld [vmem:[%s3614 + $0x298] sm:$0xff]
    %vm3699 = vcmask 261120
    %v3701 = vsel %vm3699, %v3607, 0
    %v3704 = vsel %vm3699, %v3613, 0
    %3706 = vmatpush.msra.mxu0 %v3630
    %3707 = vmatpush.msra.mxu0 %v3629
    %3708 = vmatpush.msra.mxu0 %v3628
    %3709 = vmatpush.msra.mxu0 %v3627
    %3710 = vmatpush.msra.mxu0 %v3626
    %3711 = vmatpush.msra.mxu0 %v3625
    %3712 = vmatpush.msra.mxu0 %v3624
    %3713 = vmatpush.msra.mxu0 %v3623
    %3714 = vmatpush.msra.mxu0 %v3622
    %3715 = vmatpush.msra.mxu0 %v3621
    %3716 = vmatpush.msra.mxu0 %v3620
    %3717 = vmatpush.msra.mxu0 %v3619
    %3718 = vmatpush.msra.mxu0 %v3618
    %3719 = vmatpush.msra.mxu0 %v3617
    %3720 = vmatpush.msra.mxu0 %v3616
    %3721 = vmatpush.msra.mxu0 %v3615
    %3722 = vmatmul.f32.gmra.mxu0 %v3602
    %v3723 = vpop.f32.mrf.mxu0
    %v3724 = vadd.f32 0.0, %v3723
    %3725 = vmatmul.f32.gmra.mxu0 %v3608
    %v3726 = vpop.f32.mrf.mxu0
    %v3727 = vadd.f32 0.0, %v3726
    %3728 = vdwg.mxu0
    %3729 = vmatpush.msra.mxu0 %v3646
    %3730 = vmatpush.msra.mxu0 %v3645
    %3731 = vmatpush.msra.mxu0 %v3644
    %3732 = vmatpush.msra.mxu0 %v3643
    %3733 = vmatpush.msra.mxu0 %v3642
    %3734 = vmatpush.msra.mxu0 %v3641
    %3735 = vmatpush.msra.mxu0 %v3640
    %3736 = vmatpush.msra.mxu0 %v3639
    %3737 = vmatpush.msra.mxu0 %v3638
    %3738 = vmatpush.msra.mxu0 %v3637
    %3739 = vmatpush.msra.mxu0 %v3636
    %3740 = vmatpush.msra.mxu0 %v3635
    %3741 = vmatpush.msra.mxu0 %v3634
    %3742 = vmatpush.msra.mxu0 %v3633
    %3743 = vmatpush.msra.mxu0 %v3632
    %3744 = vmatpush.msra.mxu0 %v3631
    %3745 = vmatmul.f32.gmra.mxu0 %v3603
    %v3746 = vpop.f32.mrf.mxu0
    %v3747 = vadd.f32 %v3724, %v3746
    %3748 = vmatmul.f32.gmra.mxu0 %v3609
    %v3749 = vpop.f32.mrf.mxu0
    %v3750 = vadd.f32 %v3727, %v3749
    %3751 = vdwg.mxu0
    %3752 = vmatpush.msra.mxu0 %v3662
    %3753 = vmatpush.msra.mxu0 %v3661
    %3754 = vmatpush.msra.mxu0 %v3660
    %3755 = vmatpush.msra.mxu0 %v3659
    %3756 = vmatpush.msra.mxu0 %v3658
    %3757 = vmatpush.msra.mxu0 %v3657
    %3758 = vmatpush.msra.mxu0 %v3656
    %3759 = vmatpush.msra.mxu0 %v3655
    %3760 = vmatpush.msra.mxu0 %v3654
    %3761 = vmatpush.msra.mxu0 %v3653
    %3762 = vmatpush.msra.mxu0 %v3652
    %3763 = vmatpush.msra.mxu0 %v3651
    %3764 = vmatpush.msra.mxu0 %v3650
    %3765 = vmatpush.msra.mxu0 %v3649
    %3766 = vmatpush.msra.mxu0 %v3648
    %3767 = vmatpush.msra.mxu0 %v3647
    %3768 = vmatmul.f32.gmra.mxu0 %v3604
    %v3769 = vpop.f32.mrf.mxu0
    %v3770 = vadd.f32 %v3747, %v3769
    %3771 = vmatmul.f32.gmra.mxu0 %v3610
    %v3772 = vpop.f32.mrf.mxu0
    %v3773 = vadd.f32 %v3750, %v3772
    %3774 = vdwg.mxu0
    %3775 = vmatpush.msra.mxu0 %v3678
    %3776 = vmatpush.msra.mxu0 %v3677
    %3777 = vmatpush.msra.mxu0 %v3676
    %3778 = vmatpush.msra.mxu0 %v3675
    %3779 = vmatpush.msra.mxu0 %v3674
    %3780 = vmatpush.msra.mxu0 %v3673
    %3781 = vmatpush.msra.mxu0 %v3672
    %3782 = vmatpush.msra.mxu0 %v3671
    %3783 = vmatpush.msra.mxu0 %v3670
    %3784 = vmatpush.msra.mxu0 %v3669
    %3785 = vmatpush.msra.mxu0 %v3668
    %3786 = vmatpush.msra.mxu0 %v3667
    %3787 = vmatpush.msra.mxu0 %v3666
    %3788 = vmatpush.msra.mxu0 %v3665
    %3789 = vmatpush.msra.mxu0 %v3664
    %3790 = vmatpush.msra.mxu0 %v3663
    %3791 = vmatmul.f32.gmra.mxu0 %v3605
    %v3792 = vpop.f32.mrf.mxu0
    %v3793 = vadd.f32 %v3770, %v3792
    %3794 = vmatmul.f32.gmra.mxu0 %v3611
    %v3795 = vpop.f32.mrf.mxu0
    %v3796 = vadd.f32 %v3773, %v3795
    %3797 = vdwg.mxu0
    %3798 = vmatpush.msra.mxu0 %v3694
    %3799 = vmatpush.msra.mxu0 %v3693
    %3800 = vmatpush.msra.mxu0 %v3692
    %3801 = vmatpush.msra.mxu0 %v3691
    %3802 = vmatpush.msra.mxu0 %v3690
    %3803 = vmatpush.msra.mxu0 %v3689
    %3804 = vmatpush.msra.mxu0 %v3688
    %3805 = vmatpush.msra.mxu0 %v3687
    %3806 = vmatpush.msra.mxu0 %v3686
    %3807 = vmatpush.msra.mxu0 %v3685
    %3808 = vmatpush.msra.mxu0 %v3684
    %3809 = vmatpush.msra.mxu0 %v3683
    %3810 = vmatpush.msra.mxu0 %v3682
    %3811 = vmatpush.msra.mxu0 %v3681
    %3812 = vmatpush.msra.mxu0 %v3680
    %3813 = vmatpush.msra.mxu0 %v3679
    %3814 = vmatmul.f32.gmra.mxu0 %v3606
    %v3815 = vpop.f32.mrf.mxu0
    %v3816 = vadd.f32 %v3793, %v3815
    %3817 = vmatmul.f32.gmra.mxu0 %v3612
    %v3818 = vpop.f32.mrf.mxu0
    %v3819 = vadd.f32 %v3796, %v3818
    %3820 = vdwg.mxu0
    %3821 = vmatpush.msra.mxu0 0.0
    %3822 = vmatpush.msra.mxu0 0.0
    %3823 = vmatpush.msra.mxu0 0.0
    %3824 = vmatpush.msra.mxu0 0.0
    %3825 = vmatpush.msra.mxu0 0.0
    %3826 = vmatpush.msra.mxu0 0.0
    %3827 = vmatpush.msra.mxu0 0.0
    %3828 = vmatpush.msra.mxu0 0.0
    %3829 = vmatpush.msra.mxu0 0.0
    %3830 = vmatpush.msra.mxu0 0.0
    %3831 = vmatpush.msra.mxu0 0.0
    %3832 = vmatpush.msra.mxu0 0.0
    %3833 = vmatpush.msra.mxu0 %v3698
    %3834 = vmatpush.msra.mxu0 %v3697
    %3835 = vmatpush.msra.mxu0 %v3696
    %3836 = vmatpush.msra.mxu0 %v3695
    %3837 = vmatmul.f32.gmra.mxu0 %v3701
    %v3838 = vpop.f32.mrf.mxu0
    %v3839 = vadd.f32 %v3816, %v3838
    %3840 = vmatmul.f32.gmra.mxu0 %v3704
    %v3841 = vpop.f32.mrf.mxu0
    %v3842 = vadd.f32 %v3819, %v3841
    %3843 = vdwg.mxu0
    %v3845 = vsel %vm3699, %v3510, 0
    %v3848 = vsel %vm3699, %v3516, 0
    %3850 = vmatpush.msra.mxu0 %v3532
    %3851 = vmatpush.msra.mxu0 %v3531
    %3852 = vmatpush.msra.mxu0 %v3530
    %3853 = vmatpush.msra.mxu0 %v3529
    %3854 = vmatpush.msra.mxu0 %v3528
    %3855 = vmatpush.msra.mxu0 %v3527
    %3856 = vmatpush.msra.mxu0 %v3526
    %3857 = vmatpush.msra.mxu0 %v3525
    %3858 = vmatpush.msra.mxu0 %v3524
    %3859 = vmatpush.msra.mxu0 %v3523
    %3860 = vmatpush.msra.mxu0 %v3522
    %3861 = vmatpush.msra.mxu0 %v3521
    %3862 = vmatpush.msra.mxu0 %v3520
    %3863 = vmatpush.msra.mxu0 %v3519
    %3864 = vmatpush.msra.mxu0 %v3518
    %3865 = vmatpush.msra.mxu0 %v3517
    %3866 = vmatmul.f32.gmra.mxu0 %v3505
    %v3867 = vpop.f32.mrf.mxu0
    %v3868 = vadd.f32 %v3839, %v3867
    %3869 = vmatmul.f32.gmra.mxu0 %v3511
    %v3870 = vpop.f32.mrf.mxu0
    %v3871 = vadd.f32 %v3842, %v3870
    %3872 = vdwg.mxu0
    %3873 = vmatpush.msra.mxu0 %v3548
    %3874 = vmatpush.msra.mxu0 %v3547
    %3875 = vmatpush.msra.mxu0 %v3546
    %3876 = vmatpush.msra.mxu0 %v3545
    %3877 = vmatpush.msra.mxu0 %v3544
    %3878 = vmatpush.msra.mxu0 %v3543
    %3879 = vmatpush.msra.mxu0 %v3542
    %3880 = vmatpush.msra.mxu0 %v3541
    %3881 = vmatpush.msra.mxu0 %v3540
    %3882 = vmatpush.msra.mxu0 %v3539
    %3883 = vmatpush.msra.mxu0 %v3538
    %3884 = vmatpush.msra.mxu0 %v3537
    %3885 = vmatpush.msra.mxu0 %v3536
    %3886 = vmatpush.msra.mxu0 %v3535
    %3887 = vmatpush.msra.mxu0 %v3534
    %3888 = vmatpush.msra.mxu0 %v3533
    %3889 = vmatmul.f32.gmra.mxu0 %v3506
    %v3890 = vpop.f32.mrf.mxu0
    %v3891 = vadd.f32 %v3868, %v3890
    %3892 = vmatmul.f32.gmra.mxu0 %v3512
    %v3893 = vpop.f32.mrf.mxu0
    %v3894 = vadd.f32 %v3871, %v3893
    %3895 = vdwg.mxu0
    %3896 = vmatpush.msra.mxu0 %v3564
    %3897 = vmatpush.msra.mxu0 %v3563
    %3898 = vmatpush.msra.mxu0 %v3562
    %3899 = vmatpush.msra.mxu0 %v3561
    %3900 = vmatpush.msra.mxu0 %v3560
    %3901 = vmatpush.msra.mxu0 %v3559
    %3902 = vmatpush.msra.mxu0 %v3558
    %3903 = vmatpush.msra.mxu0 %v3557
    %3904 = vmatpush.msra.mxu0 %v3556
    %3905 = vmatpush.msra.mxu0 %v3555
    %3906 = vmatpush.msra.mxu0 %v3554
    %3907 = vmatpush.msra.mxu0 %v3553
    %3908 = vmatpush.msra.mxu0 %v3552
    %3909 = vmatpush.msra.mxu0 %v3551
    %3910 = vmatpush.msra.mxu0 %v3550
    %3911 = vmatpush.msra.mxu0 %v3549
    %3912 = vmatmul.f32.gmra.mxu0 %v3507
    %v3913 = vpop.f32.mrf.mxu0
    %v3914 = vadd.f32 %v3891, %v3913
    %3915 = vmatmul.f32.gmra.mxu0 %v3513
    %v3916 = vpop.f32.mrf.mxu0
    %v3917 = vadd.f32 %v3894, %v3916
    %3918 = vdwg.mxu0
    %3919 = vmatpush.msra.mxu0 %v3580
    %3920 = vmatpush.msra.mxu0 %v3579
    %3921 = vmatpush.msra.mxu0 %v3578
    %3922 = vmatpush.msra.mxu0 %v3577
    %3923 = vmatpush.msra.mxu0 %v3576
    %3924 = vmatpush.msra.mxu0 %v3575
    %3925 = vmatpush.msra.mxu0 %v3574
    %3926 = vmatpush.msra.mxu0 %v3573
    %3927 = vmatpush.msra.mxu0 %v3572
    %3928 = vmatpush.msra.mxu0 %v3571
    %3929 = vmatpush.msra.mxu0 %v3570
    %3930 = vmatpush.msra.mxu0 %v3569
    %3931 = vmatpush.msra.mxu0 %v3568
    %3932 = vmatpush.msra.mxu0 %v3567
    %3933 = vmatpush.msra.mxu0 %v3566
    %3934 = vmatpush.msra.mxu0 %v3565
    %3935 = vmatmul.f32.gmra.mxu0 %v3508
    %v3936 = vpop.f32.mrf.mxu0
    %v3937 = vadd.f32 %v3914, %v3936
    %3938 = vmatmul.f32.gmra.mxu0 %v3514
    %v3939 = vpop.f32.mrf.mxu0
    %v3940 = vadd.f32 %v3917, %v3939
    %3941 = vdwg.mxu0
    %3942 = vmatpush.msra.mxu0 %v3596
    %3943 = vmatpush.msra.mxu0 %v3595
    %3944 = vmatpush.msra.mxu0 %v3594
    %3945 = vmatpush.msra.mxu0 %v3593
    %3946 = vmatpush.msra.mxu0 %v3592
    %3947 = vmatpush.msra.mxu0 %v3591
    %3948 = vmatpush.msra.mxu0 %v3590
    %3949 = vmatpush.msra.mxu0 %v3589
    %3950 = vmatpush.msra.mxu0 %v3588
    %3951 = vmatpush.msra.mxu0 %v3587
    %3952 = vmatpush.msra.mxu0 %v3586
    %3953 = vmatpush.msra.mxu0 %v3585
    %3954 = vmatpush.msra.mxu0 %v3584
    %3955 = vmatpush.msra.mxu0 %v3583
    %3956 = vmatpush.msra.mxu0 %v3582
    %3957 = vmatpush.msra.mxu0 %v3581
    %3958 = vmatmul.f32.gmra.mxu0 %v3509
    %v3959 = vpop.f32.mrf.mxu0
    %v3960 = vadd.f32 %v3937, %v3959
    %3961 = vmatmul.f32.gmra.mxu0 %v3515
    %v3962 = vpop.f32.mrf.mxu0
    %v3963 = vadd.f32 %v3940, %v3962
    %3964 = vdwg.mxu0
    %3965 = vmatpush.msra.mxu0 0.0
    %3966 = vmatpush.msra.mxu0 0.0
    %3967 = vmatpush.msra.mxu0 0.0
    %3968 = vmatpush.msra.mxu0 0.0
    %3969 = vmatpush.msra.mxu0 0.0
    %3970 = vmatpush.msra.mxu0 0.0
    %3971 = vmatpush.msra.mxu0 0.0
    %3972 = vmatpush.msra.mxu0 0.0
    %3973 = vmatpush.msra.mxu0 0.0
    %3974 = vmatpush.msra.mxu0 0.0
    %3975 = vmatpush.msra.mxu0 0.0
    %3976 = vmatpush.msra.mxu0 0.0
    %3977 = vmatpush.msra.mxu0 %v3600
    %3978 = vmatpush.msra.mxu0 %v3599
    %3979 = vmatpush.msra.mxu0 %v3598
    %3980 = vmatpush.msra.mxu0 %v3597
    %3981 = vmatmul.f32.gmra.mxu0 %v3845
    %v3982 = vpop.f32.mrf.mxu0
    %v3983 = vadd.f32 %v3960, %v3982
    %3984 = vmatmul.f32.gmra.mxu0 %v3848
    %v3985 = vpop.f32.mrf.mxu0
    %v3986 = vadd.f32 %v3963, %v3985
    %3987 = vdwg.mxu0
    %s3988 = scalar_lea.vmem %s5, 192
    %v3989 = vld [vmem:[%s3988] sm:$0xff]
    %v3990 = vld [vmem:[%s3988 + $0x8] sm:$0xff]
    %v3991 = vld [vmem:[%s3988 + $0x10] sm:$0xff]
    %v3992 = vld [vmem:[%s3988 + $0x18] sm:$0xff]
    %v3993 = vld [vmem:[%s3988 + $0x20] sm:$0xff]
    %v3994 = vld [vmem:[%s3988 + $0x28] sm:$0xff]
    %v3995 = vld [vmem:[%s3988 + $0x30] sm:$0x3]
    %v3996 = vld [vmem:[%s3988 + $0x38] sm:$0x3]
    %v3997 = vld [vmem:[%s3988 + $0x40] sm:$0x3]
    %v3998 = vld [vmem:[%s3988 + $0x48] sm:$0x3]
    %v3999 = vld [vmem:[%s3988 + $0x50] sm:$0x3]
    %v4000 = vld [vmem:[%s3988 + $0x58] sm:$0x3]
    %s4001 = scalar_lea.vmem [#allocation3], 1344
    %v4002 = vld [vmem:[%s4001] sm:$0xff]
    %v4003 = vld [vmem:[%s4001 + $0x8] sm:$0xff]
    %v4004 = vld [vmem:[%s4001 + $0x10] sm:$0xff]
    %v4005 = vld [vmem:[%s4001 + $0x18] sm:$0xff]
    %v4006 = vld [vmem:[%s4001 + $0x20] sm:$0xff]
    %v4007 = vld [vmem:[%s4001 + $0x28] sm:$0xff]
    %v4008 = vld [vmem:[%s4001 + $0x30] sm:$0xff]
    %v4009 = vld [vmem:[%s4001 + $0x38] sm:$0xff]
    %v4010 = vld [vmem:[%s4001 + $0x40] sm:$0xff]
    %v4011 = vld [vmem:[%s4001 + $0x48] sm:$0xff]
    %v4012 = vld [vmem:[%s4001 + $0x50] sm:$0xff]
    %v4013 = vld [vmem:[%s4001 + $0x58] sm:$0xff]
    %v4014 = vld [vmem:[%s4001 + $0x60] sm:$0xff]
    %v4015 = vld [vmem:[%s4001 + $0x68] sm:$0xff]
    %v4016 = vld [vmem:[%s4001 + $0x70] sm:$0xff]
    %v4017 = vld [vmem:[%s4001 + $0x78] sm:$0xff]
    %v4018 = vld [vmem:[%s4001 + $0x80] sm:$0xff]
    %v4019 = vld [vmem:[%s4001 + $0x88] sm:$0xff]
    %v4020 = vld [vmem:[%s4001 + $0x90] sm:$0xff]
    %v4021 = vld [vmem:[%s4001 + $0x98] sm:$0xff]
    %v4022 = vld [vmem:[%s4001 + $0xa0] sm:$0xff]
    %v4023 = vld [vmem:[%s4001 + $0xa8] sm:$0xff]
    %v4024 = vld [vmem:[%s4001 + $0xb0] sm:$0xff]
    %v4025 = vld [vmem:[%s4001 + $0xb8] sm:$0xff]
    %v4026 = vld [vmem:[%s4001 + $0xc0] sm:$0xff]
    %v4027 = vld [vmem:[%s4001 + $0xc8] sm:$0xff]
    %v4028 = vld [vmem:[%s4001 + $0xd0] sm:$0xff]
    %v4029 = vld [vmem:[%s4001 + $0xd8] sm:$0xff]
    %v4030 = vld [vmem:[%s4001 + $0xe0] sm:$0xff]
    %v4031 = vld [vmem:[%s4001 + $0xe8] sm:$0xff]
    %v4032 = vld [vmem:[%s4001 + $0xf0] sm:$0xff]
    %v4033 = vld [vmem:[%s4001 + $0xf8] sm:$0xff]
    %v4034 = vld [vmem:[%s4001 + $0x100] sm:$0xff]
    %v4035 = vld [vmem:[%s4001 + $0x108] sm:$0xff]
    %v4036 = vld [vmem:[%s4001 + $0x110] sm:$0xff]
    %v4037 = vld [vmem:[%s4001 + $0x118] sm:$0xff]
    %v4038 = vld [vmem:[%s4001 + $0x120] sm:$0xff]
    %v4039 = vld [vmem:[%s4001 + $0x128] sm:$0xff]
    %v4040 = vld [vmem:[%s4001 + $0x130] sm:$0xff]
    %v4041 = vld [vmem:[%s4001 + $0x138] sm:$0xff]
    %v4042 = vld [vmem:[%s4001 + $0x140] sm:$0xff]
    %v4043 = vld [vmem:[%s4001 + $0x148] sm:$0xff]
    %v4044 = vld [vmem:[%s4001 + $0x150] sm:$0xff]
    %v4045 = vld [vmem:[%s4001 + $0x158] sm:$0xff]
    %v4046 = vld [vmem:[%s4001 + $0x160] sm:$0xff]
    %v4047 = vld [vmem:[%s4001 + $0x168] sm:$0xff]
    %v4048 = vld [vmem:[%s4001 + $0x170] sm:$0xff]
    %v4049 = vld [vmem:[%s4001 + $0x178] sm:$0xff]
    %v4050 = vld [vmem:[%s4001 + $0x180] sm:$0xff]
    %v4051 = vld [vmem:[%s4001 + $0x188] sm:$0xff]
    %v4052 = vld [vmem:[%s4001 + $0x190] sm:$0xff]
    %v4053 = vld [vmem:[%s4001 + $0x198] sm:$0xff]
    %v4054 = vld [vmem:[%s4001 + $0x1a0] sm:$0xff]
    %v4055 = vld [vmem:[%s4001 + $0x1a8] sm:$0xff]
    %v4056 = vld [vmem:[%s4001 + $0x1b0] sm:$0xff]
    %v4057 = vld [vmem:[%s4001 + $0x1b8] sm:$0xff]
    %v4058 = vld [vmem:[%s4001 + $0x1c0] sm:$0xff]
    %v4059 = vld [vmem:[%s4001 + $0x1c8] sm:$0xff]
    %v4060 = vld [vmem:[%s4001 + $0x1d0] sm:$0xff]
    %v4061 = vld [vmem:[%s4001 + $0x1d8] sm:$0xff]
    %v4062 = vld [vmem:[%s4001 + $0x1e0] sm:$0xff]
    %v4063 = vld [vmem:[%s4001 + $0x1e8] sm:$0xff]
    %v4064 = vld [vmem:[%s4001 + $0x1f0] sm:$0xff]
    %v4065 = vld [vmem:[%s4001 + $0x1f8] sm:$0xff]
    %v4066 = vld [vmem:[%s4001 + $0x200] sm:$0xff]
    %v4067 = vld [vmem:[%s4001 + $0x208] sm:$0xff]
    %v4068 = vld [vmem:[%s4001 + $0x210] sm:$0xff]
    %v4069 = vld [vmem:[%s4001 + $0x218] sm:$0xff]
    %v4070 = vld [vmem:[%s4001 + $0x220] sm:$0xff]
    %v4071 = vld [vmem:[%s4001 + $0x228] sm:$0xff]
    %v4072 = vld [vmem:[%s4001 + $0x230] sm:$0xff]
    %v4073 = vld [vmem:[%s4001 + $0x238] sm:$0xff]
    %v4074 = vld [vmem:[%s4001 + $0x240] sm:$0xff]
    %v4075 = vld [vmem:[%s4001 + $0x248] sm:$0xff]
    %v4076 = vld [vmem:[%s4001 + $0x250] sm:$0xff]
    %v4077 = vld [vmem:[%s4001 + $0x258] sm:$0xff]
    %v4078 = vld [vmem:[%s4001 + $0x260] sm:$0xff]
    %v4079 = vld [vmem:[%s4001 + $0x268] sm:$0xff]
    %v4080 = vld [vmem:[%s4001 + $0x270] sm:$0xff]
    %v4081 = vld [vmem:[%s4001 + $0x278] sm:$0xff]
    %v4082 = vld [vmem:[%s4001 + $0x280] sm:$0xff]
    %v4083 = vld [vmem:[%s4001 + $0x288] sm:$0xff]
    %v4084 = vld [vmem:[%s4001 + $0x290] sm:$0xff]
    %v4085 = vld [vmem:[%s4001 + $0x298] sm:$0xff]
    %v4087 = vsel %vm3699, %v3994, 0
    %v4090 = vsel %vm3699, %v4000, 0
    %4092 = vmatpush.msra.mxu0 %v4017
    %4093 = vmatpush.msra.mxu0 %v4016
    %4094 = vmatpush.msra.mxu0 %v4015
    %4095 = vmatpush.msra.mxu0 %v4014
    %4096 = vmatpush.msra.mxu0 %v4013
    %4097 = vmatpush.msra.mxu0 %v4012
    %4098 = vmatpush.msra.mxu0 %v4011
    %4099 = vmatpush.msra.mxu0 %v4010
    %4100 = vmatpush.msra.mxu0 %v4009
    %4101 = vmatpush.msra.mxu0 %v4008
    %4102 = vmatpush.msra.mxu0 %v4007
    %4103 = vmatpush.msra.mxu0 %v4006
    %4104 = vmatpush.msra.mxu0 %v4005
    %4105 = vmatpush.msra.mxu0 %v4004
    %4106 = vmatpush.msra.mxu0 %v4003
    %4107 = vmatpush.msra.mxu0 %v4002
    %4108 = vmatmul.f32.gmra.mxu0 %v3989
    %v4109 = vpop.f32.mrf.mxu0
    %v4110 = vadd.f32 0.0, %v4109
    %4111 = vmatmul.f32.gmra.mxu0 %v3995
    %v4112 = vpop.f32.mrf.mxu0
    %v4113 = vadd.f32 0.0, %v4112
    %4114 = vdwg.mxu0
    %4115 = vmatpush.msra.mxu0 %v4033
    %4116 = vmatpush.msra.mxu0 %v4032
    %4117 = vmatpush.msra.mxu0 %v4031
    %4118 = vmatpush.msra.mxu0 %v4030
    %4119 = vmatpush.msra.mxu0 %v4029
    %4120 = vmatpush.msra.mxu0 %v4028
    %4121 = vmatpush.msra.mxu0 %v4027
    %4122 = vmatpush.msra.mxu0 %v4026
    %4123 = vmatpush.msra.mxu0 %v4025
    %4124 = vmatpush.msra.mxu0 %v4024
    %4125 = vmatpush.msra.mxu0 %v4023
    %4126 = vmatpush.msra.mxu0 %v4022
    %4127 = vmatpush.msra.mxu0 %v4021
    %4128 = vmatpush.msra.mxu0 %v4020
    %4129 = vmatpush.msra.mxu0 %v4019
    %4130 = vmatpush.msra.mxu0 %v4018
    %4131 = vmatmul.f32.gmra.mxu0 %v3990
    %v4132 = vpop.f32.mrf.mxu0
    %v4133 = vadd.f32 %v4110, %v4132
    %4134 = vmatmul.f32.gmra.mxu0 %v3996
    %v4135 = vpop.f32.mrf.mxu0
    %v4136 = vadd.f32 %v4113, %v4135
    %4137 = vdwg.mxu0
    %4138 = vmatpush.msra.mxu0 %v4049
    %4139 = vmatpush.msra.mxu0 %v4048
    %4140 = vmatpush.msra.mxu0 %v4047
    %4141 = vmatpush.msra.mxu0 %v4046
    %4142 = vmatpush.msra.mxu0 %v4045
    %4143 = vmatpush.msra.mxu0 %v4044
    %4144 = vmatpush.msra.mxu0 %v4043
    %4145 = vmatpush.msra.mxu0 %v4042
    %4146 = vmatpush.msra.mxu0 %v4041
    %4147 = vmatpush.msra.mxu0 %v4040
    %4148 = vmatpush.msra.mxu0 %v4039
    %4149 = vmatpush.msra.mxu0 %v4038
    %4150 = vmatpush.msra.mxu0 %v4037
    %4151 = vmatpush.msra.mxu0 %v4036
    %4152 = vmatpush.msra.mxu0 %v4035
    %4153 = vmatpush.msra.mxu0 %v4034
    %4154 = vmatmul.f32.gmra.mxu0 %v3991
    %v4155 = vpop.f32.mrf.mxu0
    %v4156 = vadd.f32 %v4133, %v4155
    %4157 = vmatmul.f32.gmra.mxu0 %v3997
    %v4158 = vpop.f32.mrf.mxu0
    %v4159 = vadd.f32 %v4136, %v4158
    %4160 = vdwg.mxu0
    %4161 = vmatpush.msra.mxu0 %v4065
    %4162 = vmatpush.msra.mxu0 %v4064
    %4163 = vmatpush.msra.mxu0 %v4063
    %4164 = vmatpush.msra.mxu0 %v4062
    %4165 = vmatpush.msra.mxu0 %v4061
    %4166 = vmatpush.msra.mxu0 %v4060
    %4167 = vmatpush.msra.mxu0 %v4059
    %4168 = vmatpush.msra.mxu0 %v4058
    %4169 = vmatpush.msra.mxu0 %v4057
    %4170 = vmatpush.msra.mxu0 %v4056
    %4171 = vmatpush.msra.mxu0 %v4055
    %4172 = vmatpush.msra.mxu0 %v4054
    %4173 = vmatpush.msra.mxu0 %v4053
    %4174 = vmatpush.msra.mxu0 %v4052
    %4175 = vmatpush.msra.mxu0 %v4051
    %4176 = vmatpush.msra.mxu0 %v4050
    %4177 = vmatmul.f32.gmra.mxu0 %v3992
    %v4178 = vpop.f32.mrf.mxu0
    %v4179 = vadd.f32 %v4156, %v4178
    %4180 = vmatmul.f32.gmra.mxu0 %v3998
    %v4181 = vpop.f32.mrf.mxu0
    %v4182 = vadd.f32 %v4159, %v4181
    %4183 = vdwg.mxu0
    %4184 = vmatpush.msra.mxu0 %v4081
    %4185 = vmatpush.msra.mxu0 %v4080
    %4186 = vmatpush.msra.mxu0 %v4079
    %4187 = vmatpush.msra.mxu0 %v4078
    %4188 = vmatpush.msra.mxu0 %v4077
    %4189 = vmatpush.msra.mxu0 %v4076
    %4190 = vmatpush.msra.mxu0 %v4075
    %4191 = vmatpush.msra.mxu0 %v4074
    %4192 = vmatpush.msra.mxu0 %v4073
    %4193 = vmatpush.msra.mxu0 %v4072
    %4194 = vmatpush.msra.mxu0 %v4071
    %4195 = vmatpush.msra.mxu0 %v4070
    %4196 = vmatpush.msra.mxu0 %v4069
    %4197 = vmatpush.msra.mxu0 %v4068
    %4198 = vmatpush.msra.mxu0 %v4067
    %4199 = vmatpush.msra.mxu0 %v4066
    %4200 = vmatmul.f32.gmra.mxu0 %v3993
    %v4201 = vpop.f32.mrf.mxu0
    %v4202 = vadd.f32 %v4179, %v4201
    %4203 = vmatmul.f32.gmra.mxu0 %v3999
    %v4204 = vpop.f32.mrf.mxu0
    %v4205 = vadd.f32 %v4182, %v4204
    %4206 = vdwg.mxu0
    %4207 = vmatpush.msra.mxu0 0.0
    %4208 = vmatpush.msra.mxu0 0.0
    %4209 = vmatpush.msra.mxu0 0.0
    %4210 = vmatpush.msra.mxu0 0.0
    %4211 = vmatpush.msra.mxu0 0.0
    %4212 = vmatpush.msra.mxu0 0.0
    %4213 = vmatpush.msra.mxu0 0.0
    %4214 = vmatpush.msra.mxu0 0.0
    %4215 = vmatpush.msra.mxu0 0.0
    %4216 = vmatpush.msra.mxu0 0.0
    %4217 = vmatpush.msra.mxu0 0.0
    %4218 = vmatpush.msra.mxu0 0.0
    %4219 = vmatpush.msra.mxu0 %v4085
    %4220 = vmatpush.msra.mxu0 %v4084
    %4221 = vmatpush.msra.mxu0 %v4083
    %4222 = vmatpush.msra.mxu0 %v4082
    %4223 = vmatmul.f32.gmra.mxu0 %v4087
    %v4224 = vpop.f32.mrf.mxu0
    %v4225 = vadd.f32 %v4202, %v4224
    %4226 = vmatmul.f32.gmra.mxu0 %v4090
    %v4227 = vpop.f32.mrf.mxu0
    %v4228 = vadd.f32 %v4205, %v4227
    %4229 = vdwg.mxu0
    %v4230 = vadd.f32 %v3983, %v4225
    %v4231 = vadd.f32 %v3986, %v4228
    %s4232 = scalar_lea.vmem %s5, 288
    %v4233 = vld [vmem:[%s4232] sm:$0xff]
    %v4234 = vld [vmem:[%s4232 + $0x8] sm:$0xff]
    %v4235 = vld [vmem:[%s4232 + $0x10] sm:$0xff]
    %v4236 = vld [vmem:[%s4232 + $0x18] sm:$0xff]
    %v4237 = vld [vmem:[%s4232 + $0x20] sm:$0xff]
    %v4238 = vld [vmem:[%s4232 + $0x28] sm:$0xff]
    %v4239 = vld [vmem:[%s4232 + $0x30] sm:$0x3]
    %v4240 = vld [vmem:[%s4232 + $0x38] sm:$0x3]
    %v4241 = vld [vmem:[%s4232 + $0x40] sm:$0x3]
    %v4242 = vld [vmem:[%s4232 + $0x48] sm:$0x3]
    %v4243 = vld [vmem:[%s4232 + $0x50] sm:$0x3]
    %v4244 = vld [vmem:[%s4232 + $0x58] sm:$0x3]
    %s4245 = scalar_lea.vmem [#allocation3], 2016
    %v4246 = vld [vmem:[%s4245] sm:$0xff]
    %v4247 = vld [vmem:[%s4245 + $0x8] sm:$0xff]
    %v4248 = vld [vmem:[%s4245 + $0x10] sm:$0xff]
    %v4249 = vld [vmem:[%s4245 + $0x18] sm:$0xff]
    %v4250 = vld [vmem:[%s4245 + $0x20] sm:$0xff]
    %v4251 = vld [vmem:[%s4245 + $0x28] sm:$0xff]
    %v4252 = vld [vmem:[%s4245 + $0x30] sm:$0xff]
    %v4253 = vld [vmem:[%s4245 + $0x38] sm:$0xff]
    %v4254 = vld [vmem:[%s4245 + $0x40] sm:$0xff]
    %v4255 = vld [vmem:[%s4245 + $0x48] sm:$0xff]
    %v4256 = vld [vmem:[%s4245 + $0x50] sm:$0xff]
    %v4257 = vld [vmem:[%s4245 + $0x58] sm:$0xff]
    %v4258 = vld [vmem:[%s4245 + $0x60] sm:$0xff]
    %v4259 = vld [vmem:[%s4245 + $0x68] sm:$0xff]
    %v4260 = vld [vmem:[%s4245 + $0x70] sm:$0xff]
    %v4261 = vld [vmem:[%s4245 + $0x78] sm:$0xff]
    %v4262 = vld [vmem:[%s4245 + $0x80] sm:$0xff]
    %v4263 = vld [vmem:[%s4245 + $0x88] sm:$0xff]
    %v4264 = vld [vmem:[%s4245 + $0x90] sm:$0xff]
    %v4265 = vld [vmem:[%s4245 + $0x98] sm:$0xff]
    %v4266 = vld [vmem:[%s4245 + $0xa0] sm:$0xff]
    %v4267 = vld [vmem:[%s4245 + $0xa8] sm:$0xff]
    %v4268 = vld [vmem:[%s4245 + $0xb0] sm:$0xff]
    %v4269 = vld [vmem:[%s4245 + $0xb8] sm:$0xff]
    %v4270 = vld [vmem:[%s4245 + $0xc0] sm:$0xff]
    %v4271 = vld [vmem:[%s4245 + $0xc8] sm:$0xff]
    %v4272 = vld [vmem:[%s4245 + $0xd0] sm:$0xff]
    %v4273 = vld [vmem:[%s4245 + $0xd8] sm:$0xff]
    %v4274 = vld [vmem:[%s4245 + $0xe0] sm:$0xff]
    %v4275 = vld [vmem:[%s4245 + $0xe8] sm:$0xff]
    %v4276 = vld [vmem:[%s4245 + $0xf0] sm:$0xff]
    %v4277 = vld [vmem:[%s4245 + $0xf8] sm:$0xff]
    %v4278 = vld [vmem:[%s4245 + $0x100] sm:$0xff]
    %v4279 = vld [vmem:[%s4245 + $0x108] sm:$0xff]
    %v4280 = vld [vmem:[%s4245 + $0x110] sm:$0xff]
    %v4281 = vld [vmem:[%s4245 + $0x118] sm:$0xff]
    %v4282 = vld [vmem:[%s4245 + $0x120] sm:$0xff]
    %v4283 = vld [vmem:[%s4245 + $0x128] sm:$0xff]
    %v4284 = vld [vmem:[%s4245 + $0x130] sm:$0xff]
    %v4285 = vld [vmem:[%s4245 + $0x138] sm:$0xff]
    %v4286 = vld [vmem:[%s4245 + $0x140] sm:$0xff]
    %v4287 = vld [vmem:[%s4245 + $0x148] sm:$0xff]
    %v4288 = vld [vmem:[%s4245 + $0x150] sm:$0xff]
    %v4289 = vld [vmem:[%s4245 + $0x158] sm:$0xff]
    %v4290 = vld [vmem:[%s4245 + $0x160] sm:$0xff]
    %v4291 = vld [vmem:[%s4245 + $0x168] sm:$0xff]
    %v4292 = vld [vmem:[%s4245 + $0x170] sm:$0xff]
    %v4293 = vld [vmem:[%s4245 + $0x178] sm:$0xff]
    %v4294 = vld [vmem:[%s4245 + $0x180] sm:$0xff]
    %v4295 = vld [vmem:[%s4245 + $0x188] sm:$0xff]
    %v4296 = vld [vmem:[%s4245 + $0x190] sm:$0xff]
    %v4297 = vld [vmem:[%s4245 + $0x198] sm:$0xff]
    %v4298 = vld [vmem:[%s4245 + $0x1a0] sm:$0xff]
    %v4299 = vld [vmem:[%s4245 + $0x1a8] sm:$0xff]
    %v4300 = vld [vmem:[%s4245 + $0x1b0] sm:$0xff]
    %v4301 = vld [vmem:[%s4245 + $0x1b8] sm:$0xff]
    %v4302 = vld [vmem:[%s4245 + $0x1c0] sm:$0xff]
    %v4303 = vld [vmem:[%s4245 + $0x1c8] sm:$0xff]
    %v4304 = vld [vmem:[%s4245 + $0x1d0] sm:$0xff]
    %v4305 = vld [vmem:[%s4245 + $0x1d8] sm:$0xff]
    %v4306 = vld [vmem:[%s4245 + $0x1e0] sm:$0xff]
    %v4307 = vld [vmem:[%s4245 + $0x1e8] sm:$0xff]
    %v4308 = vld [vmem:[%s4245 + $0x1f0] sm:$0xff]
    %v4309 = vld [vmem:[%s4245 + $0x1f8] sm:$0xff]
    %v4310 = vld [vmem:[%s4245 + $0x200] sm:$0xff]
    %v4311 = vld [vmem:[%s4245 + $0x208] sm:$0xff]
    %v4312 = vld [vmem:[%s4245 + $0x210] sm:$0xff]
    %v4313 = vld [vmem:[%s4245 + $0x218] sm:$0xff]
    %v4314 = vld [vmem:[%s4245 + $0x220] sm:$0xff]
    %v4315 = vld [vmem:[%s4245 + $0x228] sm:$0xff]
    %v4316 = vld [vmem:[%s4245 + $0x230] sm:$0xff]
    %v4317 = vld [vmem:[%s4245 + $0x238] sm:$0xff]
    %v4318 = vld [vmem:[%s4245 + $0x240] sm:$0xff]
    %v4319 = vld [vmem:[%s4245 + $0x248] sm:$0xff]
    %v4320 = vld [vmem:[%s4245 + $0x250] sm:$0xff]
    %v4321 = vld [vmem:[%s4245 + $0x258] sm:$0xff]
    %v4322 = vld [vmem:[%s4245 + $0x260] sm:$0xff]
    %v4323 = vld [vmem:[%s4245 + $0x268] sm:$0xff]
    %v4324 = vld [vmem:[%s4245 + $0x270] sm:$0xff]
    %v4325 = vld [vmem:[%s4245 + $0x278] sm:$0xff]
    %v4326 = vld [vmem:[%s4245 + $0x280] sm:$0xff]
    %v4327 = vld [vmem:[%s4245 + $0x288] sm:$0xff]
    %v4328 = vld [vmem:[%s4245 + $0x290] sm:$0xff]
    %v4329 = vld [vmem:[%s4245 + $0x298] sm:$0xff]
    %v4331 = vsel %vm3699, %v4238, 0
    %v4334 = vsel %vm3699, %v4244, 0
    %4336 = vmatpush.msra.mxu0 %v4261
    %4337 = vmatpush.msra.mxu0 %v4260
    %4338 = vmatpush.msra.mxu0 %v4259
    %4339 = vmatpush.msra.mxu0 %v4258
    %4340 = vmatpush.msra.mxu0 %v4257
    %4341 = vmatpush.msra.mxu0 %v4256
    %4342 = vmatpush.msra.mxu0 %v4255
    %4343 = vmatpush.msra.mxu0 %v4254
    %4344 = vmatpush.msra.mxu0 %v4253
    %4345 = vmatpush.msra.mxu0 %v4252
    %4346 = vmatpush.msra.mxu0 %v4251
    %4347 = vmatpush.msra.mxu0 %v4250
    %4348 = vmatpush.msra.mxu0 %v4249
    %4349 = vmatpush.msra.mxu0 %v4248
    %4350 = vmatpush.msra.mxu0 %v4247
    %4351 = vmatpush.msra.mxu0 %v4246
    %4352 = vmatmul.f32.gmra.mxu0 %v4233
    %v4353 = vpop.f32.mrf.mxu0
    %v4354 = vadd.f32 0.0, %v4353
    %4355 = vmatmul.f32.gmra.mxu0 %v4239
    %v4356 = vpop.f32.mrf.mxu0
    %v4357 = vadd.f32 0.0, %v4356
    %4358 = vdwg.mxu0
    %4359 = vmatpush.msra.mxu0 %v4277
    %4360 = vmatpush.msra.mxu0 %v4276
    %4361 = vmatpush.msra.mxu0 %v4275
    %4362 = vmatpush.msra.mxu0 %v4274
    %4363 = vmatpush.msra.mxu0 %v4273
    %4364 = vmatpush.msra.mxu0 %v4272
    %4365 = vmatpush.msra.mxu0 %v4271
    %4366 = vmatpush.msra.mxu0 %v4270
    %4367 = vmatpush.msra.mxu0 %v4269
    %4368 = vmatpush.msra.mxu0 %v4268
    %4369 = vmatpush.msra.mxu0 %v4267
    %4370 = vmatpush.msra.mxu0 %v4266
    %4371 = vmatpush.msra.mxu0 %v4265
    %4372 = vmatpush.msra.mxu0 %v4264
    %4373 = vmatpush.msra.mxu0 %v4263
    %4374 = vmatpush.msra.mxu0 %v4262
    %4375 = vmatmul.f32.gmra.mxu0 %v4234
    %v4376 = vpop.f32.mrf.mxu0
    %v4377 = vadd.f32 %v4354, %v4376
    %4378 = vmatmul.f32.gmra.mxu0 %v4240
    %v4379 = vpop.f32.mrf.mxu0
    %v4380 = vadd.f32 %v4357, %v4379
    %4381 = vdwg.mxu0
    %4382 = vmatpush.msra.mxu0 %v4293
    %4383 = vmatpush.msra.mxu0 %v4292
    %4384 = vmatpush.msra.mxu0 %v4291
    %4385 = vmatpush.msra.mxu0 %v4290
    %4386 = vmatpush.msra.mxu0 %v4289
    %4387 = vmatpush.msra.mxu0 %v4288
    %4388 = vmatpush.msra.mxu0 %v4287
    %4389 = vmatpush.msra.mxu0 %v4286
    %4390 = vmatpush.msra.mxu0 %v4285
    %4391 = vmatpush.msra.mxu0 %v4284
    %4392 = vmatpush.msra.mxu0 %v4283
    %4393 = vmatpush.msra.mxu0 %v4282
    %4394 = vmatpush.msra.mxu0 %v4281
    %4395 = vmatpush.msra.mxu0 %v4280
    %4396 = vmatpush.msra.mxu0 %v4279
    %4397 = vmatpush.msra.mxu0 %v4278
    %4398 = vmatmul.f32.gmra.mxu0 %v4235
    %v4399 = vpop.f32.mrf.mxu0
    %v4400 = vadd.f32 %v4377, %v4399
    %4401 = vmatmul.f32.gmra.mxu0 %v4241
    %v4402 = vpop.f32.mrf.mxu0
    %v4403 = vadd.f32 %v4380, %v4402
    %4404 = vdwg.mxu0
    %4405 = vmatpush.msra.mxu0 %v4309
    %4406 = vmatpush.msra.mxu0 %v4308
    %4407 = vmatpush.msra.mxu0 %v4307
    %4408 = vmatpush.msra.mxu0 %v4306
    %4409 = vmatpush.msra.mxu0 %v4305
    %4410 = vmatpush.msra.mxu0 %v4304
    %4411 = vmatpush.msra.mxu0 %v4303
    %4412 = vmatpush.msra.mxu0 %v4302
    %4413 = vmatpush.msra.mxu0 %v4301
    %4414 = vmatpush.msra.mxu0 %v4300
    %4415 = vmatpush.msra.mxu0 %v4299
    %4416 = vmatpush.msra.mxu0 %v4298
    %4417 = vmatpush.msra.mxu0 %v4297
    %4418 = vmatpush.msra.mxu0 %v4296
    %4419 = vmatpush.msra.mxu0 %v4295
    %4420 = vmatpush.msra.mxu0 %v4294
    %4421 = vmatmul.f32.gmra.mxu0 %v4236
    %v4422 = vpop.f32.mrf.mxu0
    %v4423 = vadd.f32 %v4400, %v4422
    %4424 = vmatmul.f32.gmra.mxu0 %v4242
    %v4425 = vpop.f32.mrf.mxu0
    %v4426 = vadd.f32 %v4403, %v4425
    %4427 = vdwg.mxu0
    %4428 = vmatpush.msra.mxu0 %v4325
    %4429 = vmatpush.msra.mxu0 %v4324
    %4430 = vmatpush.msra.mxu0 %v4323
    %4431 = vmatpush.msra.mxu0 %v4322
    %4432 = vmatpush.msra.mxu0 %v4321
    %4433 = vmatpush.msra.mxu0 %v4320
    %4434 = vmatpush.msra.mxu0 %v4319
    %4435 = vmatpush.msra.mxu0 %v4318
    %4436 = vmatpush.msra.mxu0 %v4317
    %4437 = vmatpush.msra.mxu0 %v4316
    %4438 = vmatpush.msra.mxu0 %v4315
    %4439 = vmatpush.msra.mxu0 %v4314
    %4440 = vmatpush.msra.mxu0 %v4313
    %4441 = vmatpush.msra.mxu0 %v4312
    %4442 = vmatpush.msra.mxu0 %v4311
    %4443 = vmatpush.msra.mxu0 %v4310
    %4444 = vmatmul.f32.gmra.mxu0 %v4237
    %v4445 = vpop.f32.mrf.mxu0
    %v4446 = vadd.f32 %v4423, %v4445
    %4447 = vmatmul.f32.gmra.mxu0 %v4243
    %v4448 = vpop.f32.mrf.mxu0
    %v4449 = vadd.f32 %v4426, %v4448
    %4450 = vdwg.mxu0
    %4451 = vmatpush.msra.mxu0 0.0
    %4452 = vmatpush.msra.mxu0 0.0
    %4453 = vmatpush.msra.mxu0 0.0
    %4454 = vmatpush.msra.mxu0 0.0
    %4455 = vmatpush.msra.mxu0 0.0
    %4456 = vmatpush.msra.mxu0 0.0
    %4457 = vmatpush.msra.mxu0 0.0
    %4458 = vmatpush.msra.mxu0 0.0
    %4459 = vmatpush.msra.mxu0 0.0
    %4460 = vmatpush.msra.mxu0 0.0
    %4461 = vmatpush.msra.mxu0 0.0
    %4462 = vmatpush.msra.mxu0 0.0
    %4463 = vmatpush.msra.mxu0 %v4329
    %4464 = vmatpush.msra.mxu0 %v4328
    %4465 = vmatpush.msra.mxu0 %v4327
    %4466 = vmatpush.msra.mxu0 %v4326
    %4467 = vmatmul.f32.gmra.mxu0 %v4331
    %v4468 = vpop.f32.mrf.mxu0
    %v4469 = vadd.f32 %v4446, %v4468
    %4470 = vmatmul.f32.gmra.mxu0 %v4334
    %v4471 = vpop.f32.mrf.mxu0
    %v4472 = vadd.f32 %v4449, %v4471
    %4473 = vdwg.mxu0
    %v4474 = vadd.f32 %v4230, %v4469
    %v4475 = vadd.f32 %v4231, %v4472
    %v4476 = vld [vmem:[%s6] sm:$0xff]
    %v4477 = vld [vmem:[%s6 + $0x8] sm:$0x3]
    %4479 = vset.pattern.permute.xlu0 0
    %4480 = vperm.xlu0 %4479, %v4476
    %v4481 = vpop.permute.xlu0 %4480
    %4484 = vset.pattern.permute.xlu0 0
    %4485 = vperm.xlu0 %4484, %v4477
    %v4486 = vpop.permute.xlu0 %4485
    %v4488 = vadd.f32 %v4474, %v4481
    %v4489 = vadd.f32 %v4475, %v4486
    %vm4490 = vcmask 1041408
    %v4491 = vsel %vm4490, %v4489, -inf
    %v4492 = vmax.f32 %v4488, %v4491
    %v4493 = vrot.slane %v4492, 4
    %v4494 = vmax.f32 %v4492, %v4493
    %v4495 = vrot.slane %v4494, 2
    %v4496 = vmax.f32 %v4494, %v4495
    %v4497 = vrot.slane %v4496, 1
    %v4498 = vmax.f32 %v4496, %v4497
    %v4499 = vsub.f32 %v4488, %v4498
    %v4500 = vsub.f32 %v4489, %v4498
    %v4501 = vmul.f32 %v4499, 1.442695
    %v4502 = vpow.pop %v4501
    %v4503 = vmul.f32 %v4500, 1.442695
    %v4504 = vpow.pop %v4503
    %v4505 = vsel %vm4490, %v4504, 0.0
    %v4506 = vadd.f32 %v4502, %v4505
    %v4507 = vrot.slane %v4506, 4
    %v4508 = vadd.f32 %v4506, %v4507
    %v4509 = vrot.slane %v4508, 2
    %v4510 = vadd.f32 %v4508, %v4509
    %v4511 = vrot.slane %v4510, 1
    %v4512 = vadd.f32 %v4510, %v4511
    %v4513 = vrcp.pop %v4512
    %v4514 = vmul.f32 %v4512, %v4513
    %v4515 = vsub.f32 2.0, %v4514
    %v4516 = vmul.f32 %v4513, %v4515
    %v4517 = vmul.f32 %v4502, %v4516
    %v4518 = vmul.f32 %v4504, %v4516
    %4519 = vst [vmem:[#allocation14] sm:$0xff] %v4517
    %4520 = vst [vmem:[#allocation14 + $0x8] sm:$0x3] %v4518
    // Predicated region
    $region71: #{tpu_custom_call.1} parent=1 // pred_check
      _
    $region72: #{tpu_custom_call.1} parent=1 // pred_check_branch
      %4522 = sbr.rel (0) target = $region74
    $region73: #{tpu_custom_call.1} parent=1 // pred_region
      %4524 = vsyncadd [#allocation6], 0
      %s4525 = sshll.u32 [#allocation14], 4
      %s4526 = int_to_ptr.vmem [resolvable:$true] %s4525
      %s4527 = sshll.u32 %s7, 4
      %s4528 = int_to_ptr.hbm [resolvable:$true] %s4527
      %4533 = dma.vmem_to_hbm [thread:$0]  %s4526, 256, %s4528, [#allocation6], 128, 128, 8
    $region74: #{tpu_custom_call.1} parent=1 // pred_fallthru
      _
    // Predicated region
    $region75: #{tpu_custom_call.1} parent=1 // pred_check
      _
    $region76: #{tpu_custom_call.1} parent=1 // pred_check_branch
      %4535 = sbr.rel (0) target = $region78
    $region77: #{tpu_custom_call.1} parent=1 // pred_region
      %4537 = dma.done [#allocation6], 256
    $region78: #{tpu_custom_call.1} parent=1 // pred_fallthru
      _
    %4538 = vsyncpa [#allocation5], 1
    %4539 = vsyncpa [#allocation6], 1
    %4540 = vsyncpa [#allocation7], 1
    %4541 = vsyncpa [#allocation9], 1
    %4542 = vsyncpa [#allocation12], 1

</llo_original>
